<compile_context>
chip_gen: v5e
topology: v5e:2x2
jax: 0.10.0
libtpu: 0.0.40
codegen_flags: <defaults>
</compile_context>

<pallas_src>
import functools

import numpy as np
import jax
import jax.numpy as jnp
from jax.experimental import pallas as pl
from jax.experimental.pallas import tpu as pltpu

# Network configuration (DCGAN discriminator for 32x32 RGB):
#   Conv2d(3,   64, 4, 2, 1) + LeakyReLU(0.2)             -> (N,  64, 16, 16)
#   Conv2d(64, 128, 4, 2, 1) + BatchNorm + LeakyReLU(0.2) -> (N, 128,  8,  8)
#   Conv2d(128,256, 4, 2, 1) + BatchNorm + LeakyReLU(0.2) -> (N, 256,  4,  4)
#   Conv2d(256,  1, 4, 1, 0) + Sigmoid                    -> (N,   1,  1,  1)
IMG = 32
KK = 16                                  # 4x4 kernel taps
P1, P2, P3 = 16 * 16, 8 * 8, 4 * 4       # spatial positions after layers 1..3
C1, C2, C3 = 64, 128, 256
EPS = 1e-5
SLOPE = 0.2


def _leaky(x):
    # LeakyReLU(0.2): max(x, 0.2*x) is equivalent for 0 < slope < 1 and drops
    # the compare+select of jnp.where.
    return jnp.maximum(x, SLOPE * x)


# ---------------------------------------------------------------------------
# Fused kernel: the whole discriminator forward in one VMEM-resident body
# ---------------------------------------------------------------------------
def _disc_kernel(p1_ref, w1_ref, s2_ref, w2_ref, g2_ref, b2_ref,
                 s3_ref, w3_ref, g3_ref, b3_ref, w4_ref, o_ref, *, n_batch):
    f32 = jnp.float32
    bf16 = jnp.bfloat16
    n = n_batch

    # ---- layer 1: conv1 (single im2col matmul) ------------------------------
    a1 = jnp.dot(p1_ref[...], w1_ref[...], preferred_element_type=f32)  # (N*P1, C1)
    # Pack batch into lanes -> (P1, N*C1): lane-dense operand for the shared
    # selection matmul; LeakyReLU runs once on the packed layout.
    a1L = jnp.concatenate([a1[i * P1:(i + 1) * P1, :] for i in range(n)], axis=1)
    a1L = _leaky(a1L).astype(bf16)                                      # (P1, N*C1)

    # ---- layer 2: one selection matmul + one conv matmul (taps in K) --------
    # sel2 row (t*P2 + p) holds, for every image (lanes), the layer-2 input
    # pixel read by output position p at kernel tap t (all-zero rows = padding).
    sel2 = jnp.dot(s2_ref[...], a1L, preferred_element_type=f32).astype(bf16)
    per_img = []
    for i in range(n):                       # slab re-layout: (t,p,n) -> (n,p,t)
        s = sel2[:, i * C1:(i + 1) * C1]                                # (KK*P2, C1)
        per_img.append(jnp.concatenate(
            [s[t * P2:(t + 1) * P2, :] for t in range(KK)], axis=1))    # (P2, KK*C1)
    patches2 = jnp.concatenate(per_img, axis=0)                         # (N*P2, KK*C1)
    acc2 = jnp.dot(patches2, w2_ref[...], preferred_element_type=f32)   # (N*P2, C2)

    # BatchNorm2d (training batch stats, biased variance) folded into one
    # per-channel scale/shift; epilogue math stays f32 (v5e-safe).
    mu = jnp.mean(acc2, axis=0, keepdims=True)
    var = jnp.maximum(jnp.mean(acc2 * acc2, axis=0, keepdims=True) - mu * mu, 0.0)
    scale = jax.lax.rsqrt(var + EPS) * g2_ref[...]
    shift = b2_ref[...] - mu * scale
    a2 = _leaky(acc2 * scale + shift).astype(bf16)                      # (N*P2, C2)

    # ---- layer 3: same structure ---------------------------------------------
    a2L = jnp.concatenate([a2[i * P2:(i + 1) * P2, :] for i in range(n)], axis=1)
    sel3 = jnp.dot(s3_ref[...], a2L, preferred_element_type=f32).astype(bf16)
    per_img = []
    for i in range(n):
        s = sel3[:, i * C2:(i + 1) * C2]                                # (KK*P3, C2)
        per_img.append(jnp.concatenate(
            [s[t * P3:(t + 1) * P3, :] for t in range(KK)], axis=1))    # (P3, KK*C2)
    patches3 = jnp.concatenate(per_img, axis=0)                         # (N*P3, KK*C2)
    acc3 = jnp.dot(patches3, w3_ref[...], preferred_element_type=f32)   # (N*P3, C3)

    mu = jnp.mean(acc3, axis=0, keepdims=True)
    var = jnp.maximum(jnp.mean(acc3 * acc3, axis=0, keepdims=True) - mu * mu, 0.0)
    scale = jax.lax.rsqrt(var + EPS) * g3_ref[...]
    shift = b3_ref[...] - mu * scale
    y3 = _leaky(acc3 * scale + shift)                                   # (N*P3, C3) f32

    # ---- layer 4 (4x4 valid conv -> 1x1) + sigmoid, batched, single store ----
    # conv4 collapses the whole 4x4x256 activation: VPU multiply + reductions
    # (no degenerate (N,4096)x(4096,1) matvec).  Leading-dim reshape only.
    z = y3.reshape(n, P3, C3) * w4_ref[...][None, :, :]                 # (N, P3, C3)
    logits = jnp.sum(jnp.sum(z, axis=1), axis=1, keepdims=True)         # (N, 1)
    o_ref[...] = 1.0 / (1.0 + jnp.exp(-logits))                         # Sigmoid


def _full_block_spec(shape):
    nd = len(shape)
    return pl.BlockSpec(shape, lambda i, _nd=nd: (0,) * _nd)


def fused_discriminator(p1, kp, *, n_batch):
    args = (p1, kp["w1"], kp["s2"], kp["w2"], kp["g2"], kp["b2"],
            kp["s3"], kp["w3"], kp["g3"], kp["b3"], kp["w4"])
    return pl.pallas_call(
        functools.partial(_disc_kernel, n_batch=n_batch),
        out_shape=jax.ShapeDtypeStruct((n_batch, 1), jnp.float32),
        grid_spec=pl.GridSpec(
            grid=(1,),
            in_specs=[_full_block_spec(a.shape) for a in args],
            out_specs=pl.BlockSpec((n_batch, 1), lambda i: (0, 0)),
        ),
        compiler_params=pltpu.CompilerParams(
            dimension_semantics=("arbitrary",),
            # Resident weights + selection matrices + intermediates are ~4 MiB;
            # 32 MiB is safe on v5e/v6e (128 MiB) and v7x (64 MiB) alike.
            vmem_limit_bytes=32 * 1024 * 1024),
    )(*args)


# ---------------------------------------------------------------------------
# One-time parameter preparation (no per-forward transposes / casts)
# ---------------------------------------------------------------------------
def _selection_matrix(h_in, w_in, h_out, w_out, k, stride, pad):
    """(k*k*h_out*w_out, h_in*w_in) 0/1 matrix S so that S @ x_spatial yields,
    for every (tap, output position), the input pixel read by a k x k conv
    with the given stride/padding (all-zero rows realize zero padding)."""
    s = np.zeros((k * k * h_out * w_out, h_in * w_in), np.float32)
    for i in range(k):
        for j in range(k):
            base = (i * k + j) * h_out * w_out
            for ho in range(h_out):
                h = stride * ho + i - pad
                if not 0 <= h < h_in:
                    continue
                for wo in range(w_out):
                    w = stride * wo + j - pad
                    if 0 <= w < w_in:
                        s[base + ho * w_out + wo, h * w_in + w] = 1.0
    return jnp.asarray(s, jnp.bfloat16)


def init_raw_params(key):
    """PyTorch-layout parameters: Conv2d weights (Cout, Cin, kh, kw) ~ N(0, .02),
    BatchNorm2d weight = 1 / bias = 0 (module defaults, bias=False convs)."""
    shapes = [(C1, 3, 4, 4), (C2, C1, 4, 4), (C3, C2, 4, 4), (1, C3, 4, 4)]
    ws = []
    for s in shapes:
        key, sub = jax.random.split(key)
        ws.append(0.02 * jax.random.normal(sub, s, jnp.float32))
    return dict(
        w1=ws[0], w2=ws[1], w3=ws[2], w4=ws[3],
        g2=jnp.ones((1, C2), jnp.float32), b2=jnp.zeros((1, C2), jnp.float32),
        g3=jnp.ones((1, C3), jnp.float32), b3=jnp.zeros((1, C3), jnp.float32))


def prepare_kernel_params(raw):
    """Re-layout weights once: contraction axis ordered (kh, kw, cin) so all 16
    taps sit in the K dimension of a single matmul per conv; bf16 pre-cast."""
    w1 = raw["w1"].transpose(2, 3, 1, 0).reshape(KK * 3, C1).astype(jnp.bfloat16)
    w2 = raw["w2"].transpose(2, 3, 1, 0).reshape(KK * C1, C2).astype(jnp.bfloat16)
    w3 = raw["w3"].transpose(2, 3, 1, 0).reshape(KK * C2, C3).astype(jnp.bfloat16)
    # layer-4 weights stay f32: applied on the VPU in the f32 epilogue
    w4 = raw["w4"][0].transpose(1, 2, 0).reshape(P3, C3).astype(jnp.float32)
    return dict(w1=w1, w2=w2, w3=w3, w4=w4,
                s2=_selection_matrix(16, 16, 8, 8, 4, 2, 1),   # (1024, 256)
                s3=_selection_matrix(8, 8, 4, 4, 4, 2, 1),     # (256,  64)
                g2=raw["g2"], b2=raw["b2"], g3=raw["g3"], b3=raw["b3"])


# ---------------------------------------------------------------------------
# Forward pass (matches nn.Sequential semantics; BN in training/batch-stat mode)
# ---------------------------------------------------------------------------
def discriminator_forward(x_nchw, kp):
    """x: (N, 3, 32, 32) -> (N, 1, 1, 1)."""
    n = x_nchw.shape[0]
    # bf16 BEFORE pad/slice/concat: halves HBM bytes of the host-side im2col.
    x = jnp.transpose(x_nchw, (0, 2, 3, 1)).astype(jnp.bfloat16)         # NHWC
    xp = jnp.pad(x, ((0, 0), (1, 1), (1, 1), (0, 0)))                    # pad = 1
    # Lane-dense im2col of the *input image only*: 16 strided spatial slices
    # + channel concat (no 5-D stack/transpose).  K order = (kh, kw, c).
    cols = [xp[:, i:i + 2 * 16 - 1:2, j:j + 2 * 16 - 1:2, :]
            for i in range(4) for j in range(4)]
    p1 = jnp.concatenate(cols, axis=-1).reshape(n * P1, KK * 3)
    scores = fused_discriminator(p1, kp, n_batch=n)
    return scores.reshape(n, 1, 1, 1)


if __name__ == "__main__":
    key = jax.random.PRNGKey(0)
    pkey, xkey = jax.random.split(key)
    params = prepare_kernel_params(init_raw_params(pkey))

    # DCGAN discriminator expects 32x32 RGB so the final 4x4/s1/p0 conv
    # collapses spatial dims to 1x1.  Small batch of 2.
    x = jax.random.normal(xkey, (2, 3, IMG, IMG), jnp.float32)

    fwd = jax.jit(discriminator_forward)
    y = jax.block_until_ready(fwd(x, params))

    assert y.shape == (2, 1, 1, 1), y.shape
    assert bool(jnp.all(jnp.isfinite(y)))
    assert bool(jnp.all((y >= 0.0) & (y <= 1.0)))
    print("KERNEL_OK")
</pallas_src>

<mosaic_0001>
module attributes {stable_mosaic.version = 11 : i64} {
  func.func @_disc_kernel(%arg0: i32, %arg1: memref<512x48xbf16, #tpu.memory_space<vmem>>, %arg2: memref<48x64xbf16, #tpu.memory_space<vmem>>, %arg3: memref<1024x256xbf16, #tpu.memory_space<vmem>>, %arg4: memref<1024x128xbf16, #tpu.memory_space<vmem>>, %arg5: memref<1x128xf32, #tpu.memory_space<vmem>>, %arg6: memref<1x128xf32, #tpu.memory_space<vmem>>, %arg7: memref<256x64xbf16, #tpu.memory_space<vmem>>, %arg8: memref<2048x256xbf16, #tpu.memory_space<vmem>>, %arg9: memref<1x256xf32, #tpu.memory_space<vmem>>, %arg10: memref<1x256xf32, #tpu.memory_space<vmem>>, %arg11: memref<16x256xf32, #tpu.memory_space<vmem>>, %arg12: memref<2x1xf32, #tpu.memory_space<vmem>>) attributes {dimension_semantics = [#tpu.dimension_semantics<arbitrary>], iteration_bounds = array<i64: 1>, scalar_prefetch = 0 : i64, scratch_operands = 0 : i64, tpu.core_type = #tpu.core_type<tc>, window_params = [{pipeline_mode = #tpu.pipeline_mode<synchronous>, transform_indices = @transform_0, window_bounds = array<i64: 512, 48>}, {pipeline_mode = #tpu.pipeline_mode<synchronous>, transform_indices = @transform_1, window_bounds = array<i64: 48, 64>}, {pipeline_mode = #tpu.pipeline_mode<synchronous>, transform_indices = @transform_2, window_bounds = array<i64: 1024, 256>}, {pipeline_mode = #tpu.pipeline_mode<synchronous>, transform_indices = @transform_3, window_bounds = array<i64: 1024, 128>}, {pipeline_mode = #tpu.pipeline_mode<synchronous>, transform_indices = @transform_4, window_bounds = array<i64: 1, 128>}, {pipeline_mode = #tpu.pipeline_mode<synchronous>, transform_indices = @transform_5, window_bounds = array<i64: 1, 128>}, {pipeline_mode = #tpu.pipeline_mode<synchronous>, transform_indices = @transform_6, window_bounds = array<i64: 256, 64>}, {pipeline_mode = #tpu.pipeline_mode<synchronous>, transform_indices = @transform_7, window_bounds = array<i64: 2048, 256>}, {pipeline_mode = #tpu.pipeline_mode<synchronous>, transform_indices = @transform_8, window_bounds = array<i64: 1, 256>}, {pipeline_mode = #tpu.pipeline_mode<synchronous>, transform_indices = @transform_9, window_bounds = array<i64: 1, 256>}, {pipeline_mode = #tpu.pipeline_mode<synchronous>, transform_indices = @transform_10, window_bounds = array<i64: 16, 256>}, {pipeline_mode = #tpu.pipeline_mode<synchronous>, transform_indices = @transform_11, window_bounds = array<i64: 2, 1>}]} {
    %c0 = arith.constant 0 : index
    %c0_0 = arith.constant 0 : index
    %0 = vector.load %arg1[%c0, %c0_0] : memref<512x48xbf16, #tpu.memory_space<vmem>>, vector<512x48xbf16>
    %c0_1 = arith.constant 0 : index
    %c0_2 = arith.constant 0 : index
    %1 = vector.load %arg2[%c0_1, %c0_2] : memref<48x64xbf16, #tpu.memory_space<vmem>>, vector<48x64xbf16>
    %cst = arith.constant dense<0.000000e+00> : vector<512x64xf32>
    %2 = tpu.matmul %0, %1, %cst {dimension_numbers = #tpu.dot_dimension_numbers<[1], [0], [0], [1], [0, 0, 1, 1], [], []>} : vector<512x48xbf16>, vector<48x64xbf16>, vector<512x64xf32> -> vector<512x64xf32>
    %3 = vector.extract_strided_slice %2 {offsets = [0, 0], sizes = [256, 64], strides = [1, 1]} : vector<512x64xf32> to vector<256x64xf32>
    %4 = vector.extract_strided_slice %2 {offsets = [256, 0], sizes = [256, 64], strides = [1, 1]} : vector<512x64xf32> to vector<256x64xf32>
    %5 = tpu.concatenate %3, %4 in 1 : vector<256x64xf32>, vector<256x64xf32> -> vector<256x128xf32>
    %cst_3 = arith.constant 2.000000e-01 : f32
    %6 = vector.broadcast %cst_3 : f32 to vector<256x128xf32>
    %7 = arith.mulf %6, %5 : vector<256x128xf32>
    %8 = arith.maximumf %5, %7 : vector<256x128xf32>
    %9 = arith.truncf %8 : vector<256x128xf32> to vector<256x128xbf16>
    %c0_4 = arith.constant 0 : index
    %c0_5 = arith.constant 0 : index
    %10 = vector.load %arg3[%c0_4, %c0_5] : memref<1024x256xbf16, #tpu.memory_space<vmem>>, vector<1024x256xbf16>
    %cst_6 = arith.constant dense<0.000000e+00> : vector<1024x128xf32>
    %11 = tpu.matmul %10, %9, %cst_6 {dimension_numbers = #tpu.dot_dimension_numbers<[1], [0], [0], [1], [0, 0, 1, 1], [], []>} : vector<1024x256xbf16>, vector<256x128xbf16>, vector<1024x128xf32> -> vector<1024x128xf32>
    %12 = arith.truncf %11 : vector<1024x128xf32> to vector<1024x128xbf16>
    %13 = vector.extract_strided_slice %12 {offsets = [0, 0], sizes = [1024, 64], strides = [1, 1]} : vector<1024x128xbf16> to vector<1024x64xbf16>
    %14 = vector.extract_strided_slice %13 {offsets = [0, 0], sizes = [64, 64], strides = [1, 1]} : vector<1024x64xbf16> to vector<64x64xbf16>
    %15 = vector.extract_strided_slice %13 {offsets = [64, 0], sizes = [64, 64], strides = [1, 1]} : vector<1024x64xbf16> to vector<64x64xbf16>
    %16 = vector.extract_strided_slice %13 {offsets = [128, 0], sizes = [64, 64], strides = [1, 1]} : vector<1024x64xbf16> to vector<64x64xbf16>
    %17 = vector.extract_strided_slice %13 {offsets = [192, 0], sizes = [64, 64], strides = [1, 1]} : vector<1024x64xbf16> to vector<64x64xbf16>
    %18 = vector.extract_strided_slice %13 {offsets = [256, 0], sizes = [64, 64], strides = [1, 1]} : vector<1024x64xbf16> to vector<64x64xbf16>
    %19 = vector.extract_strided_slice %13 {offsets = [320, 0], sizes = [64, 64], strides = [1, 1]} : vector<1024x64xbf16> to vector<64x64xbf16>
    %20 = vector.extract_strided_slice %13 {offsets = [384, 0], sizes = [64, 64], strides = [1, 1]} : vector<1024x64xbf16> to vector<64x64xbf16>
    %21 = vector.extract_strided_slice %13 {offsets = [448, 0], sizes = [64, 64], strides = [1, 1]} : vector<1024x64xbf16> to vector<64x64xbf16>
    %22 = vector.extract_strided_slice %13 {offsets = [512, 0], sizes = [64, 64], strides = [1, 1]} : vector<1024x64xbf16> to vector<64x64xbf16>
    %23 = vector.extract_strided_slice %13 {offsets = [576, 0], sizes = [64, 64], strides = [1, 1]} : vector<1024x64xbf16> to vector<64x64xbf16>
    %24 = vector.extract_strided_slice %13 {offsets = [640, 0], sizes = [64, 64], strides = [1, 1]} : vector<1024x64xbf16> to vector<64x64xbf16>
    %25 = vector.extract_strided_slice %13 {offsets = [704, 0], sizes = [64, 64], strides = [1, 1]} : vector<1024x64xbf16> to vector<64x64xbf16>
    %26 = vector.extract_strided_slice %13 {offsets = [768, 0], sizes = [64, 64], strides = [1, 1]} : vector<1024x64xbf16> to vector<64x64xbf16>
    %27 = vector.extract_strided_slice %13 {offsets = [832, 0], sizes = [64, 64], strides = [1, 1]} : vector<1024x64xbf16> to vector<64x64xbf16>
    %28 = vector.extract_strided_slice %13 {offsets = [896, 0], sizes = [64, 64], strides = [1, 1]} : vector<1024x64xbf16> to vector<64x64xbf16>
    %29 = vector.extract_strided_slice %13 {offsets = [960, 0], sizes = [64, 64], strides = [1, 1]} : vector<1024x64xbf16> to vector<64x64xbf16>
    %30 = tpu.concatenate %14, %15, %16, %17, %18, %19, %20, %21, %22, %23, %24, %25, %26, %27, %28, %29 in 1 : vector<64x64xbf16>, vector<64x64xbf16>, vector<64x64xbf16>, vector<64x64xbf16>, vector<64x64xbf16>, vector<64x64xbf16>, vector<64x64xbf16>, vector<64x64xbf16>, vector<64x64xbf16>, vector<64x64xbf16>, vector<64x64xbf16>, vector<64x64xbf16>, vector<64x64xbf16>, vector<64x64xbf16>, vector<64x64xbf16>, vector<64x64xbf16> -> vector<64x1024xbf16>
    %31 = vector.extract_strided_slice %12 {offsets = [0, 64], sizes = [1024, 64], strides = [1, 1]} : vector<1024x128xbf16> to vector<1024x64xbf16>
    %32 = vector.extract_strided_slice %31 {offsets = [0, 0], sizes = [64, 64], strides = [1, 1]} : vector<1024x64xbf16> to vector<64x64xbf16>
    %33 = vector.extract_strided_slice %31 {offsets = [64, 0], sizes = [64, 64], strides = [1, 1]} : vector<1024x64xbf16> to vector<64x64xbf16>
    %34 = vector.extract_strided_slice %31 {offsets = [128, 0], sizes = [64, 64], strides = [1, 1]} : vector<1024x64xbf16> to vector<64x64xbf16>
    %35 = vector.extract_strided_slice %31 {offsets = [192, 0], sizes = [64, 64], strides = [1, 1]} : vector<1024x64xbf16> to vector<64x64xbf16>
    %36 = vector.extract_strided_slice %31 {offsets = [256, 0], sizes = [64, 64], strides = [1, 1]} : vector<1024x64xbf16> to vector<64x64xbf16>
    %37 = vector.extract_strided_slice %31 {offsets = [320, 0], sizes = [64, 64], strides = [1, 1]} : vector<1024x64xbf16> to vector<64x64xbf16>
    %38 = vector.extract_strided_slice %31 {offsets = [384, 0], sizes = [64, 64], strides = [1, 1]} : vector<1024x64xbf16> to vector<64x64xbf16>
    %39 = vector.extract_strided_slice %31 {offsets = [448, 0], sizes = [64, 64], strides = [1, 1]} : vector<1024x64xbf16> to vector<64x64xbf16>
    %40 = vector.extract_strided_slice %31 {offsets = [512, 0], sizes = [64, 64], strides = [1, 1]} : vector<1024x64xbf16> to vector<64x64xbf16>
    %41 = vector.extract_strided_slice %31 {offsets = [576, 0], sizes = [64, 64], strides = [1, 1]} : vector<1024x64xbf16> to vector<64x64xbf16>
    %42 = vector.extract_strided_slice %31 {offsets = [640, 0], sizes = [64, 64], strides = [1, 1]} : vector<1024x64xbf16> to vector<64x64xbf16>
    %43 = vector.extract_strided_slice %31 {offsets = [704, 0], sizes = [64, 64], strides = [1, 1]} : vector<1024x64xbf16> to vector<64x64xbf16>
    %44 = vector.extract_strided_slice %31 {offsets = [768, 0], sizes = [64, 64], strides = [1, 1]} : vector<1024x64xbf16> to vector<64x64xbf16>
    %45 = vector.extract_strided_slice %31 {offsets = [832, 0], sizes = [64, 64], strides = [1, 1]} : vector<1024x64xbf16> to vector<64x64xbf16>
    %46 = vector.extract_strided_slice %31 {offsets = [896, 0], sizes = [64, 64], strides = [1, 1]} : vector<1024x64xbf16> to vector<64x64xbf16>
    %47 = vector.extract_strided_slice %31 {offsets = [960, 0], sizes = [64, 64], strides = [1, 1]} : vector<1024x64xbf16> to vector<64x64xbf16>
    %48 = tpu.concatenate %32, %33, %34, %35, %36, %37, %38, %39, %40, %41, %42, %43, %44, %45, %46, %47 in 1 : vector<64x64xbf16>, vector<64x64xbf16>, vector<64x64xbf16>, vector<64x64xbf16>, vector<64x64xbf16>, vector<64x64xbf16>, vector<64x64xbf16>, vector<64x64xbf16>, vector<64x64xbf16>, vector<64x64xbf16>, vector<64x64xbf16>, vector<64x64xbf16>, vector<64x64xbf16>, vector<64x64xbf16>, vector<64x64xbf16>, vector<64x64xbf16> -> vector<64x1024xbf16>
    %49 = tpu.concatenate %30, %48 in 0 : vector<64x1024xbf16>, vector<64x1024xbf16> -> vector<128x1024xbf16>
    %c0_7 = arith.constant 0 : index
    %c0_8 = arith.constant 0 : index
    %50 = vector.load %arg4[%c0_7, %c0_8] : memref<1024x128xbf16, #tpu.memory_space<vmem>>, vector<1024x128xbf16>
    %cst_9 = arith.constant dense<0.000000e+00> : vector<128x128xf32>
    %51 = tpu.matmul %49, %50, %cst_9 {dimension_numbers = #tpu.dot_dimension_numbers<[1], [0], [0], [1], [0, 0, 1, 1], [], []>} : vector<128x1024xbf16>, vector<1024x128xbf16>, vector<128x128xf32> -> vector<128x128xf32>
    %cst_10 = arith.constant dense<0.000000e+00> : vector<128xf32>
    %52 = vector.multi_reduction <add>, %51, %cst_10 [0] : vector<128x128xf32> to vector<128xf32>
    %53 = vector.shape_cast %52 : vector<128xf32> to vector<1x128xf32>
    %cst_11 = arith.constant 1.280000e+02 : f32
    %54 = vector.broadcast %cst_11 : f32 to vector<1x128xf32>
    %55 = arith.divf %53, %54 : vector<1x128xf32>
    %56 = arith.mulf %51, %51 : vector<128x128xf32>
    %cst_12 = arith.constant dense<0.000000e+00> : vector<128xf32>
    %57 = vector.multi_reduction <add>, %56, %cst_12 [0] : vector<128x128xf32> to vector<128xf32>
    %58 = vector.shape_cast %57 : vector<128xf32> to vector<1x128xf32>
    %cst_13 = arith.constant 1.280000e+02 : f32
    %59 = vector.broadcast %cst_13 : f32 to vector<1x128xf32>
    %60 = arith.divf %58, %59 : vector<1x128xf32>
    %61 = arith.mulf %55, %55 : vector<1x128xf32>
    %62 = arith.subf %60, %61 : vector<1x128xf32>
    %cst_14 = arith.constant 0.000000e+00 : f32
    %63 = vector.broadcast %cst_14 : f32 to vector<1x128xf32>
    %64 = arith.maximumf %62, %63 : vector<1x128xf32>
    %cst_15 = arith.constant 9.99999974E-6 : f32
    %65 = vector.broadcast %cst_15 : f32 to vector<1x128xf32>
    %66 = arith.addf %64, %65 : vector<1x128xf32>
    %67 = math.rsqrt %66 : vector<1x128xf32>
    %c0_16 = arith.constant 0 : index
    %c0_17 = arith.constant 0 : index
    %68 = vector.load %arg5[%c0_16, %c0_17] : memref<1x128xf32, #tpu.memory_space<vmem>>, vector<1x128xf32>
    %69 = arith.mulf %67, %68 : vector<1x128xf32>
    %c0_18 = arith.constant 0 : index
    %c0_19 = arith.constant 0 : index
    %70 = vector.load %arg6[%c0_18, %c0_19] : memref<1x128xf32, #tpu.memory_space<vmem>>, vector<1x128xf32>
    %71 = arith.mulf %55, %69 : vector<1x128xf32>
    %72 = arith.subf %70, %71 : vector<1x128xf32>
    %73 = vector.broadcast %69 : vector<1x128xf32> to vector<128x128xf32>
    %74 = arith.mulf %51, %73 : vector<128x128xf32>
    %75 = vector.broadcast %72 : vector<1x128xf32> to vector<128x128xf32>
    %76 = arith.addf %74, %75 : vector<128x128xf32>
    %cst_20 = arith.constant 2.000000e-01 : f32
    %77 = vector.broadcast %cst_20 : f32 to vector<128x128xf32>
    %78 = arith.mulf %77, %76 : vector<128x128xf32>
    %79 = arith.maximumf %76, %78 : vector<128x128xf32>
    %80 = arith.truncf %79 : vector<128x128xf32> to vector<128x128xbf16>
    %81 = vector.extract_strided_slice %80 {offsets = [0, 0], sizes = [64, 128], strides = [1, 1]} : vector<128x128xbf16> to vector<64x128xbf16>
    %82 = vector.extract_strided_slice %80 {offsets = [64, 0], sizes = [64, 128], strides = [1, 1]} : vector<128x128xbf16> to vector<64x128xbf16>
    %83 = tpu.concatenate %81, %82 in 1 : vector<64x128xbf16>, vector<64x128xbf16> -> vector<64x256xbf16>
    %c0_21 = arith.constant 0 : index
    %c0_22 = arith.constant 0 : index
    %84 = vector.load %arg7[%c0_21, %c0_22] : memref<256x64xbf16, #tpu.memory_space<vmem>>, vector<256x64xbf16>
    %cst_23 = arith.constant dense<0.000000e+00> : vector<256x256xf32>
    %85 = tpu.matmul %84, %83, %cst_23 {dimension_numbers = #tpu.dot_dimension_numbers<[1], [0], [0], [1], [0, 0, 1, 1], [], []>} : vector<256x64xbf16>, vector<64x256xbf16>, vector<256x256xf32> -> vector<256x256xf32>
    %86 = arith.truncf %85 : vector<256x256xf32> to vector<256x256xbf16>
    %87 = vector.extract_strided_slice %86 {offsets = [0, 0], sizes = [256, 128], strides = [1, 1]} : vector<256x256xbf16> to vector<256x128xbf16>
    %88 = vector.extract_strided_slice %87 {offsets = [0, 0], sizes = [16, 128], strides = [1, 1]} : vector<256x128xbf16> to vector<16x128xbf16>
    %89 = vector.extract_strided_slice %87 {offsets = [16, 0], sizes = [16, 128], strides = [1, 1]} : vector<256x128xbf16> to vector<16x128xbf16>
    %90 = vector.extract_strided_slice %87 {offsets = [32, 0], sizes = [16, 128], strides = [1, 1]} : vector<256x128xbf16> to vector<16x128xbf16>
    %91 = vector.extract_strided_slice %87 {offsets = [48, 0], sizes = [16, 128], strides = [1, 1]} : vector<256x128xbf16> to vector<16x128xbf16>
    %92 = vector.extract_strided_slice %87 {offsets = [64, 0], sizes = [16, 128], strides = [1, 1]} : vector<256x128xbf16> to vector<16x128xbf16>
    %93 = vector.extract_strided_slice %87 {offsets = [80, 0], sizes = [16, 128], strides = [1, 1]} : vector<256x128xbf16> to vector<16x128xbf16>
    %94 = vector.extract_strided_slice %87 {offsets = [96, 0], sizes = [16, 128], strides = [1, 1]} : vector<256x128xbf16> to vector<16x128xbf16>
    %95 = vector.extract_strided_slice %87 {offsets = [112, 0], sizes = [16, 128], strides = [1, 1]} : vector<256x128xbf16> to vector<16x128xbf16>
    %96 = vector.extract_strided_slice %87 {offsets = [128, 0], sizes = [16, 128], strides = [1, 1]} : vector<256x128xbf16> to vector<16x128xbf16>
    %97 = vector.extract_strided_slice %87 {offsets = [144, 0], sizes = [16, 128], strides = [1, 1]} : vector<256x128xbf16> to vector<16x128xbf16>
    %98 = vector.extract_strided_slice %87 {offsets = [160, 0], sizes = [16, 128], strides = [1, 1]} : vector<256x128xbf16> to vector<16x128xbf16>
    %99 = vector.extract_strided_slice %87 {offsets = [176, 0], sizes = [16, 128], strides = [1, 1]} : vector<256x128xbf16> to vector<16x128xbf16>
    %100 = vector.extract_strided_slice %87 {offsets = [192, 0], sizes = [16, 128], strides = [1, 1]} : vector<256x128xbf16> to vector<16x128xbf16>
    %101 = vector.extract_strided_slice %87 {offsets = [208, 0], sizes = [16, 128], strides = [1, 1]} : vector<256x128xbf16> to vector<16x128xbf16>
    %102 = vector.extract_strided_slice %87 {offsets = [224, 0], sizes = [16, 128], strides = [1, 1]} : vector<256x128xbf16> to vector<16x128xbf16>
    %103 = vector.extract_strided_slice %87 {offsets = [240, 0], sizes = [16, 128], strides = [1, 1]} : vector<256x128xbf16> to vector<16x128xbf16>
    %104 = tpu.concatenate %88, %89, %90, %91, %92, %93, %94, %95, %96, %97, %98, %99, %100, %101, %102, %103 in 1 : vector<16x128xbf16>, vector<16x128xbf16>, vector<16x128xbf16>, vector<16x128xbf16>, vector<16x128xbf16>, vector<16x128xbf16>, vector<16x128xbf16>, vector<16x128xbf16>, vector<16x128xbf16>, vector<16x128xbf16>, vector<16x128xbf16>, vector<16x128xbf16>, vector<16x128xbf16>, vector<16x128xbf16>, vector<16x128xbf16>, vector<16x128xbf16> -> vector<16x2048xbf16>
    %105 = vector.extract_strided_slice %86 {offsets = [0, 128], sizes = [256, 128], strides = [1, 1]} : vector<256x256xbf16> to vector<256x128xbf16>
    %106 = vector.extract_strided_slice %105 {offsets = [0, 0], sizes = [16, 128], strides = [1, 1]} : vector<256x128xbf16> to vector<16x128xbf16>
    %107 = vector.extract_strided_slice %105 {offsets = [16, 0], sizes = [16, 128], strides = [1, 1]} : vector<256x128xbf16> to vector<16x128xbf16>
    %108 = vector.extract_strided_slice %105 {offsets = [32, 0], sizes = [16, 128], strides = [1, 1]} : vector<256x128xbf16> to vector<16x128xbf16>
    %109 = vector.extract_strided_slice %105 {offsets = [48, 0], sizes = [16, 128], strides = [1, 1]} : vector<256x128xbf16> to vector<16x128xbf16>
    %110 = vector.extract_strided_slice %105 {offsets = [64, 0], sizes = [16, 128], strides = [1, 1]} : vector<256x128xbf16> to vector<16x128xbf16>
    %111 = vector.extract_strided_slice %105 {offsets = [80, 0], sizes = [16, 128], strides = [1, 1]} : vector<256x128xbf16> to vector<16x128xbf16>
    %112 = vector.extract_strided_slice %105 {offsets = [96, 0], sizes = [16, 128], strides = [1, 1]} : vector<256x128xbf16> to vector<16x128xbf16>
    %113 = vector.extract_strided_slice %105 {offsets = [112, 0], sizes = [16, 128], strides = [1, 1]} : vector<256x128xbf16> to vector<16x128xbf16>
    %114 = vector.extract_strided_slice %105 {offsets = [128, 0], sizes = [16, 128], strides = [1, 1]} : vector<256x128xbf16> to vector<16x128xbf16>
    %115 = vector.extract_strided_slice %105 {offsets = [144, 0], sizes = [16, 128], strides = [1, 1]} : vector<256x128xbf16> to vector<16x128xbf16>
    %116 = vector.extract_strided_slice %105 {offsets = [160, 0], sizes = [16, 128], strides = [1, 1]} : vector<256x128xbf16> to vector<16x128xbf16>
    %117 = vector.extract_strided_slice %105 {offsets = [176, 0], sizes = [16, 128], strides = [1, 1]} : vector<256x128xbf16> to vector<16x128xbf16>
    %118 = vector.extract_strided_slice %105 {offsets = [192, 0], sizes = [16, 128], strides = [1, 1]} : vector<256x128xbf16> to vector<16x128xbf16>
    %119 = vector.extract_strided_slice %105 {offsets = [208, 0], sizes = [16, 128], strides = [1, 1]} : vector<256x128xbf16> to vector<16x128xbf16>
    %120 = vector.extract_strided_slice %105 {offsets = [224, 0], sizes = [16, 128], strides = [1, 1]} : vector<256x128xbf16> to vector<16x128xbf16>
    %121 = vector.extract_strided_slice %105 {offsets = [240, 0], sizes = [16, 128], strides = [1, 1]} : vector<256x128xbf16> to vector<16x128xbf16>
    %122 = tpu.concatenate %106, %107, %108, %109, %110, %111, %112, %113, %114, %115, %116, %117, %118, %119, %120, %121 in 1 : vector<16x128xbf16>, vector<16x128xbf16>, vector<16x128xbf16>, vector<16x128xbf16>, vector<16x128xbf16>, vector<16x128xbf16>, vector<16x128xbf16>, vector<16x128xbf16>, vector<16x128xbf16>, vector<16x128xbf16>, vector<16x128xbf16>, vector<16x128xbf16>, vector<16x128xbf16>, vector<16x128xbf16>, vector<16x128xbf16>, vector<16x128xbf16> -> vector<16x2048xbf16>
    %123 = tpu.concatenate %104, %122 in 0 : vector<16x2048xbf16>, vector<16x2048xbf16> -> vector<32x2048xbf16>
    %c0_24 = arith.constant 0 : index
    %c0_25 = arith.constant 0 : index
    %124 = vector.load %arg8[%c0_24, %c0_25] : memref<2048x256xbf16, #tpu.memory_space<vmem>>, vector<2048x256xbf16>
    %cst_26 = arith.constant dense<0.000000e+00> : vector<32x256xf32>
    %125 = tpu.matmul %123, %124, %cst_26 {dimension_numbers = #tpu.dot_dimension_numbers<[1], [0], [0], [1], [0, 0, 1, 1], [], []>} : vector<32x2048xbf16>, vector<2048x256xbf16>, vector<32x256xf32> -> vector<32x256xf32>
    %cst_27 = arith.constant dense<0.000000e+00> : vector<256xf32>
    %126 = vector.multi_reduction <add>, %125, %cst_27 [0] : vector<32x256xf32> to vector<256xf32>
    %127 = vector.shape_cast %126 : vector<256xf32> to vector<1x256xf32>
    %cst_28 = arith.constant 3.200000e+01 : f32
    %128 = vector.broadcast %cst_28 : f32 to vector<1x256xf32>
    %129 = arith.divf %127, %128 : vector<1x256xf32>
    %130 = arith.mulf %125, %125 : vector<32x256xf32>
    %cst_29 = arith.constant dense<0.000000e+00> : vector<256xf32>
    %131 = vector.multi_reduction <add>, %130, %cst_29 [0] : vector<32x256xf32> to vector<256xf32>
    %132 = vector.shape_cast %131 : vector<256xf32> to vector<1x256xf32>
    %cst_30 = arith.constant 3.200000e+01 : f32
    %133 = vector.broadcast %cst_30 : f32 to vector<1x256xf32>
    %134 = arith.divf %132, %133 : vector<1x256xf32>
    %135 = arith.mulf %129, %129 : vector<1x256xf32>
    %136 = arith.subf %134, %135 : vector<1x256xf32>
    %cst_31 = arith.constant 0.000000e+00 : f32
    %137 = vector.broadcast %cst_31 : f32 to vector<1x256xf32>
    %138 = arith.maximumf %136, %137 : vector<1x256xf32>
    %cst_32 = arith.constant 9.99999974E-6 : f32
    %139 = vector.broadcast %cst_32 : f32 to vector<1x256xf32>
    %140 = arith.addf %138, %139 : vector<1x256xf32>
    %141 = math.rsqrt %140 : vector<1x256xf32>
    %c0_33 = arith.constant 0 : index
    %c0_34 = arith.constant 0 : index
    %142 = vector.load %arg9[%c0_33, %c0_34] : memref<1x256xf32, #tpu.memory_space<vmem>>, vector<1x256xf32>
    %143 = arith.mulf %141, %142 : vector<1x256xf32>
    %c0_35 = arith.constant 0 : index
    %c0_36 = arith.constant 0 : index
    %144 = vector.load %arg10[%c0_35, %c0_36] : memref<1x256xf32, #tpu.memory_space<vmem>>, vector<1x256xf32>
    %145 = arith.mulf %129, %143 : vector<1x256xf32>
    %146 = arith.subf %144, %145 : vector<1x256xf32>
    %147 = vector.broadcast %143 : vector<1x256xf32> to vector<32x256xf32>
    %148 = arith.mulf %125, %147 : vector<32x256xf32>
    %149 = vector.broadcast %146 : vector<1x256xf32> to vector<32x256xf32>
    %150 = arith.addf %148, %149 : vector<32x256xf32>
    %cst_37 = arith.constant 2.000000e-01 : f32
    %151 = vector.broadcast %cst_37 : f32 to vector<32x256xf32>
    %152 = arith.mulf %151, %150 : vector<32x256xf32>
    %153 = arith.maximumf %150, %152 : vector<32x256xf32>
    %154 = vector.shape_cast %153 : vector<32x256xf32> to vector<2x16x256xf32>
    %c0_38 = arith.constant 0 : index
    %c0_39 = arith.constant 0 : index
    %155 = vector.load %arg11[%c0_38, %c0_39] : memref<16x256xf32, #tpu.memory_space<vmem>>, vector<16x256xf32>
    %156 = vector.shape_cast %155 : vector<16x256xf32> to vector<1x16x256xf32>
    %157 = vector.broadcast %156 : vector<1x16x256xf32> to vector<2x16x256xf32>
    %158 = arith.mulf %154, %157 : vector<2x16x256xf32>
    %cst_40 = arith.constant dense<0.000000e+00> : vector<2x256xf32>
    %159 = vector.multi_reduction <add>, %158, %cst_40 [1] : vector<2x16x256xf32> to vector<2x256xf32>
    %cst_41 = arith.constant dense<0.000000e+00> : vector<2xf32>
    %160 = vector.multi_reduction <add>, %159, %cst_41 [1] : vector<2x256xf32> to vector<2xf32>
    %161 = vector.shape_cast %160 : vector<2xf32> to vector<2x1xf32>
    %cst_42 = arith.constant 0.000000e+00 : f32
    %162 = vector.broadcast %cst_42 : f32 to vector<2x1xf32>
    %163 = arith.subf %162, %161 : vector<2x1xf32>
    %164 = math.exp %163 : vector<2x1xf32>
    %cst_43 = arith.constant 1.000000e+00 : f32
    %165 = vector.broadcast %cst_43 : f32 to vector<2x1xf32>
    %166 = arith.addf %165, %164 : vector<2x1xf32>
    %cst_44 = arith.constant 1.000000e+00 : f32
    %167 = vector.broadcast %cst_44 : f32 to vector<2x1xf32>
    %168 = arith.divf %167, %166 : vector<2x1xf32>
    %c0_45 = arith.constant 0 : index
    %c0_46 = arith.constant 0 : index
    %169 = vector.load %arg12[%c0_45, %c0_46] : memref<2x1xf32, #tpu.memory_space<vmem>>, vector<2x1xf32>
    tpu.vector_store %arg12[%c0_45, %c0_46], %168 {strides = array<i32>} : memref<2x1xf32, #tpu.memory_space<vmem>>, vector<2x1xf32>,
    return
  }
  func.func @transform_0(%arg0: i32) -> (i32, i32) {
    %c0_i32 = arith.constant 0 : i32
    %c0_i32_0 = arith.constant 0 : i32
    %c0_i32_1 = arith.constant 0 : i32
    return %c0_i32, %c0_i32_0 : i32, i32
  }
  func.func @transform_1(%arg0: i32) -> (i32, i32) {
    %c0_i32 = arith.constant 0 : i32
    %c0_i32_0 = arith.constant 0 : i32
    %c0_i32_1 = arith.constant 0 : i32
    return %c0_i32, %c0_i32_0 : i32, i32
  }
  func.func @transform_2(%arg0: i32) -> (i32, i32) {
    %c0_i32 = arith.constant 0 : i32
    %c0_i32_0 = arith.constant 0 : i32
    %c0_i32_1 = arith.constant 0 : i32
    return %c0_i32, %c0_i32_0 : i32, i32
  }
  func.func @transform_3(%arg0: i32) -> (i32, i32) {
    %c0_i32 = arith.constant 0 : i32
    %c0_i32_0 = arith.constant 0 : i32
    %c0_i32_1 = arith.constant 0 : i32
    return %c0_i32, %c0_i32_0 : i32, i32
  }
  func.func @transform_4(%arg0: i32) -> (i32, i32) {
    %c0_i32 = arith.constant 0 : i32
    %c0_i32_0 = arith.constant 0 : i32
    %c0_i32_1 = arith.constant 0 : i32
    return %c0_i32, %c0_i32_0 : i32, i32
  }
  func.func @transform_5(%arg0: i32) -> (i32, i32) {
    %c0_i32 = arith.constant 0 : i32
    %c0_i32_0 = arith.constant 0 : i32
    %c0_i32_1 = arith.constant 0 : i32
    return %c0_i32, %c0_i32_0 : i32, i32
  }
  func.func @transform_6(%arg0: i32) -> (i32, i32) {
    %c0_i32 = arith.constant 0 : i32
    %c0_i32_0 = arith.constant 0 : i32
    %c0_i32_1 = arith.constant 0 : i32
    return %c0_i32, %c0_i32_0 : i32, i32
  }
  func.func @transform_7(%arg0: i32) -> (i32, i32) {
    %c0_i32 = arith.constant 0 : i32
    %c0_i32_0 = arith.constant 0 : i32
    %c0_i32_1 = arith.constant 0 : i32
    return %c0_i32, %c0_i32_0 : i32, i32
  }
  func.func @transform_8(%arg0: i32) -> (i32, i32) {
    %c0_i32 = arith.constant 0 : i32
    %c0_i32_0 = arith.constant 0 : i32
    %c0_i32_1 = arith.constant 0 : i32
    return %c0_i32, %c0_i32_0 : i32, i32
  }
  func.func @transform_9(%arg0: i32) -> (i32, i32) {
    %c0_i32 = arith.constant 0 : i32
    %c0_i32_0 = arith.constant 0 : i32
    %c0_i32_1 = arith.constant 0 : i32
    return %c0_i32, %c0_i32_0 : i32, i32
  }
  func.func @transform_10(%arg0: i32) -> (i32, i32) {
    %c0_i32 = arith.constant 0 : i32
    %c0_i32_0 = arith.constant 0 : i32
    %c0_i32_1 = arith.constant 0 : i32
    return %c0_i32, %c0_i32_0 : i32, i32
  }
  func.func @transform_11(%arg0: i32) -> (i32, i32) {
    %c0_i32 = arith.constant 0 : i32
    %c0_i32_0 = arith.constant 0 : i32
    %c0_i32_1 = arith.constant 0 : i32
    return %c0_i32, %c0_i32_0 : i32, i32
  }
}

</mosaic_0001>

<llo_original>
// kernel: discriminator_forward.1
$region0: #{discriminator_forward.1}
  #allocation0 [shape = 'u32[]', space=smem, size = 0x4, offset = 0x4, fixed_abs, tag = 'smem constant byte address 0x4 - core index']
  #allocation1 [shape = 'u32[72,128]{1,0:T(1,128)}', space=vmem, size = 0x9000, scoped, tag = 'internal scratch']
  %s0 = inlined_call_operand.vmem [shape: bf16[512,48], index: 0, kind: input, shape index: {}]
  %s1 = inlined_call_operand.vmem [shape: bf16[48,64], index: 1, kind: input, shape index: {}]
  %s2 = inlined_call_operand.vmem [shape: bf16[1024,256], index: 2, kind: input, shape index: {}]
  %s3 = inlined_call_operand.vmem [shape: bf16[1024,128], index: 3, kind: input, shape index: {}]
  %s4 = inlined_call_operand.vmem [shape: f32[1,128], index: 4, kind: input, shape index: {}]
  %s5 = inlined_call_operand.vmem [shape: f32[1,128], index: 5, kind: input, shape index: {}]
  %s6 = inlined_call_operand.vmem [shape: bf16[256,64], index: 6, kind: input, shape index: {}]
  %s7 = inlined_call_operand.vmem [shape: bf16[2048,256], index: 7, kind: input, shape index: {}]
  %s8 = inlined_call_operand.vmem [shape: f32[1,256], index: 8, kind: input, shape index: {}]
  %s9 = inlined_call_operand.vmem [shape: f32[1,256], index: 9, kind: input, shape index: {}]
  %s10 = inlined_call_operand.vmem [shape: f32[16,256], index: 10, kind: input, shape index: {}]
  %s11 = inlined_call_operand.vmem [shape: f32[2,1], index: 11, kind: output, shape index: {}]
  %s12 = sld [smem:[#allocation0]]
  $region54: #{discriminator_forward.1} parent=0
    _
  %s14 = ssub.s32 1, %s12
  %s15 = scalar_select 0, %s14, %s12
  // Predicated region
  $region2: #{discriminator_forward.1} parent=0 // pred_check
    _
  $region3: #{discriminator_forward.1} parent=0 // pred_check_branch
    %17 = sbr.rel (0) target = $region5
  $region4: #{discriminator_forward.1} parent=0 // pred_region
    _
  $region5: #{discriminator_forward.1} parent=0 // pred_fallthru
    _
  // Predicated region
  $region6: #{discriminator_forward.1} parent=0 // pred_check
    _
  $region7: #{discriminator_forward.1} parent=0 // pred_check_branch
    %19 = sbr.rel (0) target = $region9
  $region8: #{discriminator_forward.1} parent=0 // pred_region
    _
  $region9: #{discriminator_forward.1} parent=0 // pred_fallthru
    _
  // Predicated region
  $region10: #{discriminator_forward.1} parent=0 // pred_check
    _
  $region11: #{discriminator_forward.1} parent=0 // pred_check_branch
    %21 = sbr.rel (0) target = $region13
  $region12: #{discriminator_forward.1} parent=0 // pred_region
    _
  $region13: #{discriminator_forward.1} parent=0 // pred_fallthru
    _
  // Predicated region
  $region14: #{discriminator_forward.1} parent=0 // pred_check
    _
  $region15: #{discriminator_forward.1} parent=0 // pred_check_branch
    %23 = sbr.rel (0) target = $region17
  $region16: #{discriminator_forward.1} parent=0 // pred_region
    _
  $region17: #{discriminator_forward.1} parent=0 // pred_fallthru
    _
  // Predicated region
  $region18: #{discriminator_forward.1} parent=0 // pred_check
    _
  $region19: #{discriminator_forward.1} parent=0 // pred_check_branch
    %25 = sbr.rel (0) target = $region21
  $region20: #{discriminator_forward.1} parent=0 // pred_region
    _
  $region21: #{discriminator_forward.1} parent=0 // pred_fallthru
    _
  // Predicated region
  $region22: #{discriminator_forward.1} parent=0 // pred_check
    _
  $region23: #{discriminator_forward.1} parent=0 // pred_check_branch
    %27 = sbr.rel (0) target = $region25
  $region24: #{discriminator_forward.1} parent=0 // pred_region
    _
  $region25: #{discriminator_forward.1} parent=0 // pred_fallthru
    _
  // Predicated region
  $region26: #{discriminator_forward.1} parent=0 // pred_check
    _
  $region27: #{discriminator_forward.1} parent=0 // pred_check_branch
    %29 = sbr.rel (0) target = $region29
  $region28: #{discriminator_forward.1} parent=0 // pred_region
    _
  $region29: #{discriminator_forward.1} parent=0 // pred_fallthru
    _
  // Predicated region
  $region30: #{discriminator_forward.1} parent=0 // pred_check
    _
  $region31: #{discriminator_forward.1} parent=0 // pred_check_branch
    %31 = sbr.rel (0) target = $region33
  $region32: #{discriminator_forward.1} parent=0 // pred_region
    _
  $region33: #{discriminator_forward.1} parent=0 // pred_fallthru
    _
  // Predicated region
  $region34: #{discriminator_forward.1} parent=0 // pred_check
    _
  $region35: #{discriminator_forward.1} parent=0 // pred_check_branch
    %33 = sbr.rel (0) target = $region37
  $region36: #{discriminator_forward.1} parent=0 // pred_region
    _
  $region37: #{discriminator_forward.1} parent=0 // pred_fallthru
    _
  // Predicated region
  $region38: #{discriminator_forward.1} parent=0 // pred_check
    _
  $region39: #{discriminator_forward.1} parent=0 // pred_check_branch
    %35 = sbr.rel (0) target = $region41
  $region40: #{discriminator_forward.1} parent=0 // pred_region
    _
  $region41: #{discriminator_forward.1} parent=0 // pred_fallthru
    _
  // Predicated region
  $region42: #{discriminator_forward.1} parent=0 // pred_check
    _
  $region43: #{discriminator_forward.1} parent=0 // pred_check_branch
    %37 = sbr.rel (0) target = $region45
  $region44: #{discriminator_forward.1} parent=0 // pred_region
    _
  $region45: #{discriminator_forward.1} parent=0 // pred_fallthru
    _
  %v39 = vld [vmem:[%s0] sm:$0xf]
  %v40 = vld [vmem:[%s0 + $0x4] sm:$0xf]
  %v41 = vld [vmem:[%s0 + $0x8] sm:$0xf]
  %v42 = vld [vmem:[%s0 + $0xc] sm:$0xf]
  %v43 = vld [vmem:[%s0 + $0x10] sm:$0xf]
  %v44 = vld [vmem:[%s0 + $0x14] sm:$0xf]
  %v45 = vld [vmem:[%s0 + $0x18] sm:$0xf]
  %v46 = vld [vmem:[%s0 + $0x1c] sm:$0xf]
  %v47 = vld [vmem:[%s0 + $0x20] sm:$0xf]
  %v48 = vld [vmem:[%s0 + $0x24] sm:$0xf]
  %v49 = vld [vmem:[%s0 + $0x28] sm:$0xf]
  %v50 = vld [vmem:[%s0 + $0x2c] sm:$0xf]
  %v51 = vld [vmem:[%s0 + $0x30] sm:$0xf]
  %v52 = vld [vmem:[%s0 + $0x34] sm:$0xf]
  %v53 = vld [vmem:[%s0 + $0x38] sm:$0xf]
  %v54 = vld [vmem:[%s0 + $0x3c] sm:$0xf]
  %v55 = vld [vmem:[%s0 + $0x40] sm:$0xf]
  %v56 = vld [vmem:[%s0 + $0x44] sm:$0xf]
  %v57 = vld [vmem:[%s0 + $0x48] sm:$0xf]
  %v58 = vld [vmem:[%s0 + $0x4c] sm:$0xf]
  %v59 = vld [vmem:[%s0 + $0x50] sm:$0xf]
  %v60 = vld [vmem:[%s0 + $0x54] sm:$0xf]
  %v61 = vld [vmem:[%s0 + $0x58] sm:$0xf]
  %v62 = vld [vmem:[%s0 + $0x5c] sm:$0xf]
  %v63 = vld [vmem:[%s0 + $0x60] sm:$0xf]
  %v64 = vld [vmem:[%s0 + $0x64] sm:$0xf]
  %v65 = vld [vmem:[%s0 + $0x68] sm:$0xf]
  %v66 = vld [vmem:[%s0 + $0x6c] sm:$0xf]
  %v67 = vld [vmem:[%s0 + $0x70] sm:$0xf]
  %v68 = vld [vmem:[%s0 + $0x74] sm:$0xf]
  %v69 = vld [vmem:[%s0 + $0x78] sm:$0xf]
  %v70 = vld [vmem:[%s0 + $0x7c] sm:$0xf]
  %v71 = vld [vmem:[%s0 + $0x80] sm:$0xf]
  %v72 = vld [vmem:[%s0 + $0x84] sm:$0xf]
  %v73 = vld [vmem:[%s0 + $0x88] sm:$0xf]
  %v74 = vld [vmem:[%s0 + $0x8c] sm:$0xf]
  %v75 = vld [vmem:[%s0 + $0x90] sm:$0xf]
  %v76 = vld [vmem:[%s0 + $0x94] sm:$0xf]
  %v77 = vld [vmem:[%s0 + $0x98] sm:$0xf]
  %v78 = vld [vmem:[%s0 + $0x9c] sm:$0xf]
  %v79 = vld [vmem:[%s0 + $0xa0] sm:$0xf]
  %v80 = vld [vmem:[%s0 + $0xa4] sm:$0xf]
  %v81 = vld [vmem:[%s0 + $0xa8] sm:$0xf]
  %v82 = vld [vmem:[%s0 + $0xac] sm:$0xf]
  %v83 = vld [vmem:[%s0 + $0xb0] sm:$0xf]
  %v84 = vld [vmem:[%s0 + $0xb4] sm:$0xf]
  %v85 = vld [vmem:[%s0 + $0xb8] sm:$0xf]
  %v86 = vld [vmem:[%s0 + $0xbc] sm:$0xf]
  %v87 = vld [vmem:[%s0 + $0xc0] sm:$0xf]
  %v88 = vld [vmem:[%s0 + $0xc4] sm:$0xf]
  %v89 = vld [vmem:[%s0 + $0xc8] sm:$0xf]
  %v90 = vld [vmem:[%s0 + $0xcc] sm:$0xf]
  %v91 = vld [vmem:[%s0 + $0xd0] sm:$0xf]
  %v92 = vld [vmem:[%s0 + $0xd4] sm:$0xf]
  %v93 = vld [vmem:[%s0 + $0xd8] sm:$0xf]
  %v94 = vld [vmem:[%s0 + $0xdc] sm:$0xf]
  %v95 = vld [vmem:[%s0 + $0xe0] sm:$0xf]
  %v96 = vld [vmem:[%s0 + $0xe4] sm:$0xf]
  %v97 = vld [vmem:[%s0 + $0xe8] sm:$0xf]
  %v98 = vld [vmem:[%s0 + $0xec] sm:$0xf]
  %v99 = vld [vmem:[%s0 + $0xf0] sm:$0xf]
  %v100 = vld [vmem:[%s0 + $0xf4] sm:$0xf]
  %v101 = vld [vmem:[%s0 + $0xf8] sm:$0xf]
  %v102 = vld [vmem:[%s0 + $0xfc] sm:$0xf]
  %v103 = vld [vmem:[%s1] sm:$0xf]
  %v104 = vld [vmem:[%s1 + $0x4] sm:$0xf]
  %v105 = vld [vmem:[%s1 + $0x8] sm:$0xf]
  %v106 = vld [vmem:[%s1 + $0xc] sm:$0xf]
  %v107 = vld [vmem:[%s1 + $0x10] sm:$0xf]
  %v108 = vld [vmem:[%s1 + $0x14] sm:$0xf]
  %v173 = vunpack.c.l.b16 %v39
  %v174 = vunpack.c.l.b16 %v40
  %v175 = vunpack.c.l.b16 %v41
  %v176 = vunpack.c.l.b16 %v42
  %v177 = vunpack.c.l.b16 %v43
  %v178 = vunpack.c.l.b16 %v44
  %v179 = vunpack.c.l.b16 %v45
  %v180 = vunpack.c.l.b16 %v46
  %v181 = vunpack.c.l.b16 %v47
  %v182 = vunpack.c.l.b16 %v48
  %v183 = vunpack.c.l.b16 %v49
  %v184 = vunpack.c.l.b16 %v50
  %v185 = vunpack.c.l.b16 %v51
  %v186 = vunpack.c.l.b16 %v52
  %v187 = vunpack.c.l.b16 %v53
  %v188 = vunpack.c.l.b16 %v54
  %v189 = vunpack.c.l.b16 %v55
  %v190 = vunpack.c.l.b16 %v56
  %v191 = vunpack.c.l.b16 %v57
  %v192 = vunpack.c.l.b16 %v58
  %v193 = vunpack.c.l.b16 %v59
  %v194 = vunpack.c.l.b16 %v60
  %v195 = vunpack.c.l.b16 %v61
  %v196 = vunpack.c.l.b16 %v62
  %v197 = vunpack.c.l.b16 %v63
  %v198 = vunpack.c.l.b16 %v64
  %v199 = vunpack.c.l.b16 %v65
  %v200 = vunpack.c.l.b16 %v66
  %v201 = vunpack.c.l.b16 %v67
  %v202 = vunpack.c.l.b16 %v68
  %v203 = vunpack.c.l.b16 %v69
  %v204 = vunpack.c.l.b16 %v70
  %v205 = vunpack.c.l.b16 %v71
  %v206 = vunpack.c.l.b16 %v72
  %v207 = vunpack.c.l.b16 %v73
  %v208 = vunpack.c.l.b16 %v74
  %v209 = vunpack.c.l.b16 %v75
  %v210 = vunpack.c.l.b16 %v76
  %v211 = vunpack.c.l.b16 %v77
  %v212 = vunpack.c.l.b16 %v78
  %v213 = vunpack.c.l.b16 %v79
  %v214 = vunpack.c.l.b16 %v80
  %v215 = vunpack.c.l.b16 %v81
  %v216 = vunpack.c.l.b16 %v82
  %v217 = vunpack.c.l.b16 %v83
  %v218 = vunpack.c.l.b16 %v84
  %v219 = vunpack.c.l.b16 %v85
  %v220 = vunpack.c.l.b16 %v86
  %v221 = vunpack.c.l.b16 %v87
  %v222 = vunpack.c.l.b16 %v88
  %v223 = vunpack.c.l.b16 %v89
  %v224 = vunpack.c.l.b16 %v90
  %v225 = vunpack.c.l.b16 %v91
  %v226 = vunpack.c.l.b16 %v92
  %v227 = vunpack.c.l.b16 %v93
  %v228 = vunpack.c.l.b16 %v94
  %v229 = vunpack.c.l.b16 %v95
  %v230 = vunpack.c.l.b16 %v96
  %v231 = vunpack.c.l.b16 %v97
  %v232 = vunpack.c.l.b16 %v98
  %v233 = vunpack.c.l.b16 %v99
  %v234 = vunpack.c.l.b16 %v100
  %v235 = vunpack.c.l.b16 %v101
  %v236 = vunpack.c.l.b16 %v102
  %v237 = vpack.c.b16 %v174, %v173
  %v238 = vpack.c.b16 %v176, %v175
  %v239 = vpack.c.b16 %v178, %v177
  %v240 = vpack.c.b16 %v180, %v179
  %v241 = vpack.c.b16 %v182, %v181
  %v242 = vpack.c.b16 %v184, %v183
  %v243 = vpack.c.b16 %v186, %v185
  %v244 = vpack.c.b16 %v188, %v187
  %v245 = vpack.c.b16 %v190, %v189
  %v246 = vpack.c.b16 %v192, %v191
  %v247 = vpack.c.b16 %v194, %v193
  %v248 = vpack.c.b16 %v196, %v195
  %v249 = vpack.c.b16 %v198, %v197
  %v250 = vpack.c.b16 %v200, %v199
  %v251 = vpack.c.b16 %v202, %v201
  %v252 = vpack.c.b16 %v204, %v203
  %v253 = vpack.c.b16 %v206, %v205
  %v254 = vpack.c.b16 %v208, %v207
  %v255 = vpack.c.b16 %v210, %v209
  %v256 = vpack.c.b16 %v212, %v211
  %v257 = vpack.c.b16 %v214, %v213
  %v258 = vpack.c.b16 %v216, %v215
  %v259 = vpack.c.b16 %v218, %v217
  %v260 = vpack.c.b16 %v220, %v219
  %v261 = vpack.c.b16 %v222, %v221
  %v262 = vpack.c.b16 %v224, %v223
  %v263 = vpack.c.b16 %v226, %v225
  %v264 = vpack.c.b16 %v228, %v227
  %v265 = vpack.c.b16 %v230, %v229
  %v266 = vpack.c.b16 %v232, %v231
  %v267 = vpack.c.b16 %v234, %v233
  %v268 = vpack.c.b16 %v236, %v235
  %v275 = vunpack.c.l.b16 %v103
  %v276 = vunpack.c.l.b16 %v104
  %v277 = vunpack.c.l.b16 %v105
  %v278 = vunpack.c.l.b16 %v106
  %v279 = vunpack.c.l.b16 %v107
  %v280 = vunpack.c.l.b16 %v108
  %v281 = vpack.c.b16 %v276, %v275
  %v282 = vpack.c.b16 %v278, %v277
  %v283 = vpack.c.b16 %v280, %v279
  %vm287 = vcmask 392192
  %v289 = vsel %vm287, %v237, 0
  %v292 = vsel %vm287, %v238, 0
  %v295 = vsel %vm287, %v239, 0
  %v298 = vsel %vm287, %v240, 0
  %v301 = vsel %vm287, %v241, 0
  %v304 = vsel %vm287, %v242, 0
  %v307 = vsel %vm287, %v243, 0
  %v310 = vsel %vm287, %v244, 0
  %v313 = vsel %vm287, %v245, 0
  %v316 = vsel %vm287, %v246, 0
  %v319 = vsel %vm287, %v247, 0
  %v322 = vsel %vm287, %v248, 0
  %v325 = vsel %vm287, %v249, 0
  %v328 = vsel %vm287, %v250, 0
  %v331 = vsel %vm287, %v251, 0
  %v334 = vsel %vm287, %v252, 0
  %v337 = vsel %vm287, %v253, 0
  %v340 = vsel %vm287, %v254, 0
  %v343 = vsel %vm287, %v255, 0
  %v346 = vsel %vm287, %v256, 0
  %v349 = vsel %vm287, %v257, 0
  %v352 = vsel %vm287, %v258, 0
  %v355 = vsel %vm287, %v259, 0
  %v358 = vsel %vm287, %v260, 0
  %v361 = vsel %vm287, %v261, 0
  %v364 = vsel %vm287, %v262, 0
  %v367 = vsel %vm287, %v263, 0
  %v370 = vsel %vm287, %v264, 0
  %v373 = vsel %vm287, %v265, 0
  %v376 = vsel %vm287, %v266, 0
  %v379 = vsel %vm287, %v267, 0
  %v382 = vsel %vm287, %v268, 0
  %384 = vmatpush.bf16.msra.mxu0 0
  %385 = vmatpush.bf16.msra.mxu0 0
  %386 = vmatpush.bf16.msra.mxu0 0
  %387 = vmatpush.bf16.msra.mxu0 0
  %388 = vmatpush.bf16.msra.mxu0 0
  %389 = vmatpush.bf16.msra.mxu0 %v283
  %390 = vmatpush.bf16.msra.mxu0 %v282
  %391 = vmatpush.bf16.msra.mxu0 %v281
  %392 = vmatmul.bf16.gmra.mxu0 %v289
  %v393 = vpop.f32.mrf.mxu0
  %v394 = vadd.f32 0.0, %v393
  %v395 = vpop.f32.mrf.mxu0
  %v396 = vadd.f32 0.0, %v395
  %397 = vmatmul.bf16.gmra.mxu0 %v292
  %v398 = vpop.f32.mrf.mxu0
  %v399 = vadd.f32 0.0, %v398
  %v400 = vpop.f32.mrf.mxu0
  %v401 = vadd.f32 0.0, %v400
  %402 = vmatmul.bf16.gmra.mxu0 %v295
  %v403 = vpop.f32.mrf.mxu0
  %v404 = vadd.f32 0.0, %v403
  %v405 = vpop.f32.mrf.mxu0
  %v406 = vadd.f32 0.0, %v405
  %407 = vmatmul.bf16.gmra.mxu0 %v298
  %v408 = vpop.f32.mrf.mxu0
  %v409 = vadd.f32 0.0, %v408
  %v410 = vpop.f32.mrf.mxu0
  %v411 = vadd.f32 0.0, %v410
  %412 = vmatmul.bf16.gmra.mxu0 %v301
  %v413 = vpop.f32.mrf.mxu0
  %v414 = vadd.f32 0.0, %v413
  %v415 = vpop.f32.mrf.mxu0
  %v416 = vadd.f32 0.0, %v415
  %417 = vmatmul.bf16.gmra.mxu0 %v304
  %v418 = vpop.f32.mrf.mxu0
  %v419 = vadd.f32 0.0, %v418
  %v420 = vpop.f32.mrf.mxu0
  %v421 = vadd.f32 0.0, %v420
  %422 = vmatmul.bf16.gmra.mxu0 %v307
  %v423 = vpop.f32.mrf.mxu0
  %v424 = vadd.f32 0.0, %v423
  %v425 = vpop.f32.mrf.mxu0
  %v426 = vadd.f32 0.0, %v425
  %427 = vmatmul.bf16.gmra.mxu0 %v310
  %v428 = vpop.f32.mrf.mxu0
  %v429 = vadd.f32 0.0, %v428
  %v430 = vpop.f32.mrf.mxu0
  %v431 = vadd.f32 0.0, %v430
  %432 = vmatmul.bf16.gmra.mxu0 %v313
  %v433 = vpop.f32.mrf.mxu0
  %v434 = vadd.f32 0.0, %v433
  %v435 = vpop.f32.mrf.mxu0
  %v436 = vadd.f32 0.0, %v435
  %437 = vmatmul.bf16.gmra.mxu0 %v316
  %v438 = vpop.f32.mrf.mxu0
  %v439 = vadd.f32 0.0, %v438
  %v440 = vpop.f32.mrf.mxu0
  %v441 = vadd.f32 0.0, %v440
  %442 = vmatmul.bf16.gmra.mxu0 %v319
  %v443 = vpop.f32.mrf.mxu0
  %v444 = vadd.f32 0.0, %v443
  %v445 = vpop.f32.mrf.mxu0
  %v446 = vadd.f32 0.0, %v445
  %447 = vmatmul.bf16.gmra.mxu0 %v322
  %v448 = vpop.f32.mrf.mxu0
  %v449 = vadd.f32 0.0, %v448
  %v450 = vpop.f32.mrf.mxu0
  %v451 = vadd.f32 0.0, %v450
  %452 = vmatmul.bf16.gmra.mxu0 %v325
  %v453 = vpop.f32.mrf.mxu0
  %v454 = vadd.f32 0.0, %v453
  %v455 = vpop.f32.mrf.mxu0
  %v456 = vadd.f32 0.0, %v455
  %457 = vmatmul.bf16.gmra.mxu0 %v328
  %v458 = vpop.f32.mrf.mxu0
  %v459 = vadd.f32 0.0, %v458
  %v460 = vpop.f32.mrf.mxu0
  %v461 = vadd.f32 0.0, %v460
  %462 = vmatmul.bf16.gmra.mxu0 %v331
  %v463 = vpop.f32.mrf.mxu0
  %v464 = vadd.f32 0.0, %v463
  %v465 = vpop.f32.mrf.mxu0
  %v466 = vadd.f32 0.0, %v465
  %467 = vmatmul.bf16.gmra.mxu0 %v334
  %v468 = vpop.f32.mrf.mxu0
  %v469 = vadd.f32 0.0, %v468
  %v470 = vpop.f32.mrf.mxu0
  %v471 = vadd.f32 0.0, %v470
  %472 = vmatmul.bf16.gmra.mxu0 %v337
  %v473 = vpop.f32.mrf.mxu0
  %v474 = vadd.f32 0.0, %v473
  %v475 = vpop.f32.mrf.mxu0
  %v476 = vadd.f32 0.0, %v475
  %477 = vmatmul.bf16.gmra.mxu0 %v340
  %v478 = vpop.f32.mrf.mxu0
  %v479 = vadd.f32 0.0, %v478
  %v480 = vpop.f32.mrf.mxu0
  %v481 = vadd.f32 0.0, %v480
  %482 = vmatmul.bf16.gmra.mxu0 %v343
  %v483 = vpop.f32.mrf.mxu0
  %v484 = vadd.f32 0.0, %v483
  %v485 = vpop.f32.mrf.mxu0
  %v486 = vadd.f32 0.0, %v485
  %487 = vmatmul.bf16.gmra.mxu0 %v346
  %v488 = vpop.f32.mrf.mxu0
  %v489 = vadd.f32 0.0, %v488
  %v490 = vpop.f32.mrf.mxu0
  %v491 = vadd.f32 0.0, %v490
  %492 = vmatmul.bf16.gmra.mxu0 %v349
  %v493 = vpop.f32.mrf.mxu0
  %v494 = vadd.f32 0.0, %v493
  %v495 = vpop.f32.mrf.mxu0
  %v496 = vadd.f32 0.0, %v495
  %497 = vmatmul.bf16.gmra.mxu0 %v352
  %v498 = vpop.f32.mrf.mxu0
  %v499 = vadd.f32 0.0, %v498
  %v500 = vpop.f32.mrf.mxu0
  %v501 = vadd.f32 0.0, %v500
  %502 = vmatmul.bf16.gmra.mxu0 %v355
  %v503 = vpop.f32.mrf.mxu0
  %v504 = vadd.f32 0.0, %v503
  %v505 = vpop.f32.mrf.mxu0
  %v506 = vadd.f32 0.0, %v505
  %507 = vmatmul.bf16.gmra.mxu0 %v358
  %v508 = vpop.f32.mrf.mxu0
  %v509 = vadd.f32 0.0, %v508
  %v510 = vpop.f32.mrf.mxu0
  %v511 = vadd.f32 0.0, %v510
  %512 = vmatmul.bf16.gmra.mxu0 %v361
  %v513 = vpop.f32.mrf.mxu0
  %v514 = vadd.f32 0.0, %v513
  %v515 = vpop.f32.mrf.mxu0
  %v516 = vadd.f32 0.0, %v515
  %517 = vmatmul.bf16.gmra.mxu0 %v364
  %v518 = vpop.f32.mrf.mxu0
  %v519 = vadd.f32 0.0, %v518
  %v520 = vpop.f32.mrf.mxu0
  %v521 = vadd.f32 0.0, %v520
  %522 = vmatmul.bf16.gmra.mxu0 %v367
  %v523 = vpop.f32.mrf.mxu0
  %v524 = vadd.f32 0.0, %v523
  %v525 = vpop.f32.mrf.mxu0
  %v526 = vadd.f32 0.0, %v525
  %527 = vmatmul.bf16.gmra.mxu0 %v370
  %v528 = vpop.f32.mrf.mxu0
  %v529 = vadd.f32 0.0, %v528
  %v530 = vpop.f32.mrf.mxu0
  %v531 = vadd.f32 0.0, %v530
  %532 = vmatmul.bf16.gmra.mxu0 %v373
  %v533 = vpop.f32.mrf.mxu0
  %v534 = vadd.f32 0.0, %v533
  %v535 = vpop.f32.mrf.mxu0
  %v536 = vadd.f32 0.0, %v535
  %537 = vmatmul.bf16.gmra.mxu0 %v376
  %v538 = vpop.f32.mrf.mxu0
  %v539 = vadd.f32 0.0, %v538
  %v540 = vpop.f32.mrf.mxu0
  %v541 = vadd.f32 0.0, %v540
  %542 = vmatmul.bf16.gmra.mxu0 %v379
  %v543 = vpop.f32.mrf.mxu0
  %v544 = vadd.f32 0.0, %v543
  %v545 = vpop.f32.mrf.mxu0
  %v546 = vadd.f32 0.0, %v545
  %547 = vmatmul.bf16.gmra.mxu0 %v382
  %v548 = vpop.f32.mrf.mxu0
  %v549 = vadd.f32 0.0, %v548
  %v550 = vpop.f32.mrf.mxu0
  %v551 = vadd.f32 0.0, %v550
  %552 = vdwg.mxu0
  %585 = vrot.lane.b32.xlu0 %v474, 64
  %v586 = vpop.permute.xlu0 %585
  %587 = vrot.lane.b32.xlu0 %v476, 64
  %v588 = vpop.permute.xlu0 %587
  %589 = vrot.lane.b32.xlu0 %v479, 64
  %v590 = vpop.permute.xlu0 %589
  %591 = vrot.lane.b32.xlu0 %v481, 64
  %v592 = vpop.permute.xlu0 %591
  %593 = vrot.lane.b32.xlu0 %v484, 64
  %v594 = vpop.permute.xlu0 %593
  %595 = vrot.lane.b32.xlu0 %v486, 64
  %v596 = vpop.permute.xlu0 %595
  %597 = vrot.lane.b32.xlu0 %v489, 64
  %v598 = vpop.permute.xlu0 %597
  %599 = vrot.lane.b32.xlu0 %v491, 64
  %v600 = vpop.permute.xlu0 %599
  %601 = vrot.lane.b32.xlu0 %v494, 64
  %v602 = vpop.permute.xlu0 %601
  %603 = vrot.lane.b32.xlu0 %v496, 64
  %v604 = vpop.permute.xlu0 %603
  %605 = vrot.lane.b32.xlu0 %v499, 64
  %v606 = vpop.permute.xlu0 %605
  %607 = vrot.lane.b32.xlu0 %v501, 64
  %v608 = vpop.permute.xlu0 %607
  %609 = vrot.lane.b32.xlu0 %v504, 64
  %v610 = vpop.permute.xlu0 %609
  %611 = vrot.lane.b32.xlu0 %v506, 64
  %v612 = vpop.permute.xlu0 %611
  %613 = vrot.lane.b32.xlu0 %v509, 64
  %v614 = vpop.permute.xlu0 %613
  %615 = vrot.lane.b32.xlu0 %v511, 64
  %v616 = vpop.permute.xlu0 %615
  %617 = vrot.lane.b32.xlu0 %v514, 64
  %v618 = vpop.permute.xlu0 %617
  %619 = vrot.lane.b32.xlu0 %v516, 64
  %v620 = vpop.permute.xlu0 %619
  %621 = vrot.lane.b32.xlu0 %v519, 64
  %v622 = vpop.permute.xlu0 %621
  %623 = vrot.lane.b32.xlu0 %v521, 64
  %v624 = vpop.permute.xlu0 %623
  %625 = vrot.lane.b32.xlu0 %v524, 64
  %v626 = vpop.permute.xlu0 %625
  %627 = vrot.lane.b32.xlu0 %v526, 64
  %v628 = vpop.permute.xlu0 %627
  %629 = vrot.lane.b32.xlu0 %v529, 64
  %v630 = vpop.permute.xlu0 %629
  %631 = vrot.lane.b32.xlu0 %v531, 64
  %v632 = vpop.permute.xlu0 %631
  %633 = vrot.lane.b32.xlu0 %v534, 64
  %v634 = vpop.permute.xlu0 %633
  %635 = vrot.lane.b32.xlu0 %v536, 64
  %v636 = vpop.permute.xlu0 %635
  %637 = vrot.lane.b32.xlu0 %v539, 64
  %v638 = vpop.permute.xlu0 %637
  %639 = vrot.lane.b32.xlu0 %v541, 64
  %v640 = vpop.permute.xlu0 %639
  %641 = vrot.lane.b32.xlu0 %v544, 64
  %v642 = vpop.permute.xlu0 %641
  %643 = vrot.lane.b32.xlu0 %v546, 64
  %v644 = vpop.permute.xlu0 %643
  %645 = vrot.lane.b32.xlu0 %v549, 64
  %v646 = vpop.permute.xlu0 %645
  %647 = vrot.lane.b32.xlu0 %v551, 64
  %v648 = vpop.permute.xlu0 %647
  %vm681 = vcmask 523264
  %v682 = vsel %vm681, %v394, %v586
  %v683 = vsel %vm681, %v396, %v588
  %v684 = vsel %vm681, %v399, %v590
  %v685 = vsel %vm681, %v401, %v592
  %v686 = vsel %vm681, %v404, %v594
  %v687 = vsel %vm681, %v406, %v596
  %v688 = vsel %vm681, %v409, %v598
  %v689 = vsel %vm681, %v411, %v600
  %v690 = vsel %vm681, %v414, %v602
  %v691 = vsel %vm681, %v416, %v604
  %v692 = vsel %vm681, %v419, %v606
  %v693 = vsel %vm681, %v421, %v608
  %v694 = vsel %vm681, %v424, %v610
  %v695 = vsel %vm681, %v426, %v612
  %v696 = vsel %vm681, %v429, %v614
  %v697 = vsel %vm681, %v431, %v616
  %v698 = vsel %vm681, %v434, %v618
  %v699 = vsel %vm681, %v436, %v620
  %v700 = vsel %vm681, %v439, %v622
  %v701 = vsel %vm681, %v441, %v624
  %v702 = vsel %vm681, %v444, %v626
  %v703 = vsel %vm681, %v446, %v628
  %v704 = vsel %vm681, %v449, %v630
  %v705 = vsel %vm681, %v451, %v632
  %v706 = vsel %vm681, %v454, %v634
  %v707 = vsel %vm681, %v456, %v636
  %v708 = vsel %vm681, %v459, %v638
  %v709 = vsel %vm681, %v461, %v640
  %v710 = vsel %vm681, %v464, %v642
  %v711 = vsel %vm681, %v466, %v644
  %v712 = vsel %vm681, %v469, %v646
  %v713 = vsel %vm681, %v471, %v648
  %v714 = vmul.f32 %v682, 0.2
  %v715 = vmul.f32 %v683, 0.2
  %v716 = vmul.f32 %v684, 0.2
  %v717 = vmul.f32 %v685, 0.2
  %v718 = vmul.f32 %v686, 0.2
  %v719 = vmul.f32 %v687, 0.2
  %v720 = vmul.f32 %v688, 0.2
  %v721 = vmul.f32 %v689, 0.2
  %v722 = vmul.f32 %v690, 0.2
  %v723 = vmul.f32 %v691, 0.2
  %v724 = vmul.f32 %v692, 0.2
  %v725 = vmul.f32 %v693, 0.2
  %v726 = vmul.f32 %v694, 0.2
  %v727 = vmul.f32 %v695, 0.2
  %v728 = vmul.f32 %v696, 0.2
  %v729 = vmul.f32 %v697, 0.2
  %v730 = vmul.f32 %v698, 0.2
  %v731 = vmul.f32 %v699, 0.2
  %v732 = vmul.f32 %v700, 0.2
  %v733 = vmul.f32 %v701, 0.2
  %v734 = vmul.f32 %v702, 0.2
  %v735 = vmul.f32 %v703, 0.2
  %v736 = vmul.f32 %v704, 0.2
  %v737 = vmul.f32 %v705, 0.2
  %v738 = vmul.f32 %v706, 0.2
  %v739 = vmul.f32 %v707, 0.2
  %v740 = vmul.f32 %v708, 0.2
  %v741 = vmul.f32 %v709, 0.2
  %v742 = vmul.f32 %v710, 0.2
  %v743 = vmul.f32 %v711, 0.2
  %v744 = vmul.f32 %v712, 0.2
  %v745 = vmul.f32 %v713, 0.2
  %v746 = vmax.f32 %v682, %v714
  %v747 = vmax.f32 %v683, %v715
  %v748 = vmax.f32 %v684, %v716
  %v749 = vmax.f32 %v685, %v717
  %v750 = vmax.f32 %v686, %v718
  %v751 = vmax.f32 %v687, %v719
  %v752 = vmax.f32 %v688, %v720
  %v753 = vmax.f32 %v689, %v721
  %v754 = vmax.f32 %v690, %v722
  %v755 = vmax.f32 %v691, %v723
  %v756 = vmax.f32 %v692, %v724
  %v757 = vmax.f32 %v693, %v725
  %v758 = vmax.f32 %v694, %v726
  %v759 = vmax.f32 %v695, %v727
  %v760 = vmax.f32 %v696, %v728
  %v761 = vmax.f32 %v697, %v729
  %v762 = vmax.f32 %v698, %v730
  %v763 = vmax.f32 %v699, %v731
  %v764 = vmax.f32 %v700, %v732
  %v765 = vmax.f32 %v701, %v733
  %v766 = vmax.f32 %v702, %v734
  %v767 = vmax.f32 %v703, %v735
  %v768 = vmax.f32 %v704, %v736
  %v769 = vmax.f32 %v705, %v737
  %v770 = vmax.f32 %v706, %v738
  %v771 = vmax.f32 %v707, %v739
  %v772 = vmax.f32 %v708, %v740
  %v773 = vmax.f32 %v709, %v741
  %v774 = vmax.f32 %v710, %v742
  %v775 = vmax.f32 %v711, %v743
  %v776 = vmax.f32 %v712, %v744
  %v777 = vmax.f32 %v713, %v745
  %v778 = vpack.c.bf16 %v747, %v746
  %v779 = vpack.c.bf16 %v749, %v748
  %v780 = vpack.c.bf16 %v751, %v750
  %v781 = vpack.c.bf16 %v753, %v752
  %v782 = vpack.c.bf16 %v755, %v754
  %v783 = vpack.c.bf16 %v757, %v756
  %v784 = vpack.c.bf16 %v759, %v758
  %v785 = vpack.c.bf16 %v761, %v760
  %v786 = vpack.c.bf16 %v763, %v762
  %v787 = vpack.c.bf16 %v765, %v764
  %v788 = vpack.c.bf16 %v767, %v766
  %v789 = vpack.c.bf16 %v769, %v768
  %v790 = vpack.c.bf16 %v771, %v770
  %v791 = vpack.c.bf16 %v773, %v772
  %v792 = vpack.c.bf16 %v775, %v774
  %v793 = vpack.c.bf16 %v777, %v776
  %v794 = vld [vmem:[%s2] sm:$0xff]
  %v795 = vld [vmem:[%s2 + $0x8] sm:$0xff]
  %v796 = vld [vmem:[%s2 + $0x10] sm:$0xff]
  %v797 = vld [vmem:[%s2 + $0x18] sm:$0xff]
  %v798 = vld [vmem:[%s2 + $0x20] sm:$0xff]
  %v799 = vld [vmem:[%s2 + $0x28] sm:$0xff]
  %v800 = vld [vmem:[%s2 + $0x30] sm:$0xff]
  %v801 = vld [vmem:[%s2 + $0x38] sm:$0xff]
  %v802 = vld [vmem:[%s2 + $0x40] sm:$0xff]
  %v803 = vld [vmem:[%s2 + $0x48] sm:$0xff]
  %v804 = vld [vmem:[%s2 + $0x50] sm:$0xff]
  %v805 = vld [vmem:[%s2 + $0x58] sm:$0xff]
  %v806 = vld [vmem:[%s2 + $0x60] sm:$0xff]
  %v807 = vld [vmem:[%s2 + $0x68] sm:$0xff]
  %v808 = vld [vmem:[%s2 + $0x70] sm:$0xff]
  %v809 = vld [vmem:[%s2 + $0x78] sm:$0xff]
  %v810 = vld [vmem:[%s2 + $0x80] sm:$0xff]
  %v811 = vld [vmem:[%s2 + $0x88] sm:$0xff]
  %v812 = vld [vmem:[%s2 + $0x90] sm:$0xff]
  %v813 = vld [vmem:[%s2 + $0x98] sm:$0xff]
  %v814 = vld [vmem:[%s2 + $0xa0] sm:$0xff]
  %v815 = vld [vmem:[%s2 + $0xa8] sm:$0xff]
  %v816 = vld [vmem:[%s2 + $0xb0] sm:$0xff]
  %v817 = vld [vmem:[%s2 + $0xb8] sm:$0xff]
  %v818 = vld [vmem:[%s2 + $0xc0] sm:$0xff]
  %v819 = vld [vmem:[%s2 + $0xc8] sm:$0xff]
  %v820 = vld [vmem:[%s2 + $0xd0] sm:$0xff]
  %v821 = vld [vmem:[%s2 + $0xd8] sm:$0xff]
  %v822 = vld [vmem:[%s2 + $0xe0] sm:$0xff]
  %v823 = vld [vmem:[%s2 + $0xe8] sm:$0xff]
  %v824 = vld [vmem:[%s2 + $0xf0] sm:$0xff]
  %v825 = vld [vmem:[%s2 + $0xf8] sm:$0xff]
  %v826 = vld [vmem:[%s2 + $0x100] sm:$0xff]
  %v827 = vld [vmem:[%s2 + $0x108] sm:$0xff]
  %v828 = vld [vmem:[%s2 + $0x110] sm:$0xff]
  %v829 = vld [vmem:[%s2 + $0x118] sm:$0xff]
  %v830 = vld [vmem:[%s2 + $0x120] sm:$0xff]
  %v831 = vld [vmem:[%s2 + $0x128] sm:$0xff]
  %v832 = vld [vmem:[%s2 + $0x130] sm:$0xff]
  %v833 = vld [vmem:[%s2 + $0x138] sm:$0xff]
  %v834 = vld [vmem:[%s2 + $0x140] sm:$0xff]
  %v835 = vld [vmem:[%s2 + $0x148] sm:$0xff]
  %v836 = vld [vmem:[%s2 + $0x150] sm:$0xff]
  %v837 = vld [vmem:[%s2 + $0x158] sm:$0xff]
  %v838 = vld [vmem:[%s2 + $0x160] sm:$0xff]
  %v839 = vld [vmem:[%s2 + $0x168] sm:$0xff]
  %v840 = vld [vmem:[%s2 + $0x170] sm:$0xff]
  %v841 = vld [vmem:[%s2 + $0x178] sm:$0xff]
  %v842 = vld [vmem:[%s2 + $0x180] sm:$0xff]
  %v843 = vld [vmem:[%s2 + $0x188] sm:$0xff]
  %v844 = vld [vmem:[%s2 + $0x190] sm:$0xff]
  %v845 = vld [vmem:[%s2 + $0x198] sm:$0xff]
  %v846 = vld [vmem:[%s2 + $0x1a0] sm:$0xff]
  %v847 = vld [vmem:[%s2 + $0x1a8] sm:$0xff]
  %v848 = vld [vmem:[%s2 + $0x1b0] sm:$0xff]
  %v849 = vld [vmem:[%s2 + $0x1b8] sm:$0xff]
  %v850 = vld [vmem:[%s2 + $0x1c0] sm:$0xff]
  %v851 = vld [vmem:[%s2 + $0x1c8] sm:$0xff]
  %v852 = vld [vmem:[%s2 + $0x1d0] sm:$0xff]
  %v853 = vld [vmem:[%s2 + $0x1d8] sm:$0xff]
  %v854 = vld [vmem:[%s2 + $0x1e0] sm:$0xff]
  %v855 = vld [vmem:[%s2 + $0x1e8] sm:$0xff]
  %v856 = vld [vmem:[%s2 + $0x1f0] sm:$0xff]
  %v857 = vld [vmem:[%s2 + $0x1f8] sm:$0xff]
  %v858 = vld [vmem:[%s2 + $0x200] sm:$0xff]
  %v859 = vld [vmem:[%s2 + $0x208] sm:$0xff]
  %v860 = vld [vmem:[%s2 + $0x210] sm:$0xff]
  %v861 = vld [vmem:[%s2 + $0x218] sm:$0xff]
  %v862 = vld [vmem:[%s2 + $0x220] sm:$0xff]
  %v863 = vld [vmem:[%s2 + $0x228] sm:$0xff]
  %v864 = vld [vmem:[%s2 + $0x230] sm:$0xff]
  %v865 = vld [vmem:[%s2 + $0x238] sm:$0xff]
  %v866 = vld [vmem:[%s2 + $0x240] sm:$0xff]
  %v867 = vld [vmem:[%s2 + $0x248] sm:$0xff]
  %v868 = vld [vmem:[%s2 + $0x250] sm:$0xff]
  %v869 = vld [vmem:[%s2 + $0x258] sm:$0xff]
  %v870 = vld [vmem:[%s2 + $0x260] sm:$0xff]
  %v871 = vld [vmem:[%s2 + $0x268] sm:$0xff]
  %v872 = vld [vmem:[%s2 + $0x270] sm:$0xff]
  %v873 = vld [vmem:[%s2 + $0x278] sm:$0xff]
  %v874 = vld [vmem:[%s2 + $0x280] sm:$0xff]
  %v875 = vld [vmem:[%s2 + $0x288] sm:$0xff]
  %v876 = vld [vmem:[%s2 + $0x290] sm:$0xff]
  %v877 = vld [vmem:[%s2 + $0x298] sm:$0xff]
  %v878 = vld [vmem:[%s2 + $0x2a0] sm:$0xff]
  %v879 = vld [vmem:[%s2 + $0x2a8] sm:$0xff]
  %v880 = vld [vmem:[%s2 + $0x2b0] sm:$0xff]
  %v881 = vld [vmem:[%s2 + $0x2b8] sm:$0xff]
  %v882 = vld [vmem:[%s2 + $0x2c0] sm:$0xff]
  %v883 = vld [vmem:[%s2 + $0x2c8] sm:$0xff]
  %v884 = vld [vmem:[%s2 + $0x2d0] sm:$0xff]
  %v885 = vld [vmem:[%s2 + $0x2d8] sm:$0xff]
  %v886 = vld [vmem:[%s2 + $0x2e0] sm:$0xff]
  %v887 = vld [vmem:[%s2 + $0x2e8] sm:$0xff]
  %v888 = vld [vmem:[%s2 + $0x2f0] sm:$0xff]
  %v889 = vld [vmem:[%s2 + $0x2f8] sm:$0xff]
  %v890 = vld [vmem:[%s2 + $0x300] sm:$0xff]
  %v891 = vld [vmem:[%s2 + $0x308] sm:$0xff]
  %v892 = vld [vmem:[%s2 + $0x310] sm:$0xff]
  %v893 = vld [vmem:[%s2 + $0x318] sm:$0xff]
  %v894 = vld [vmem:[%s2 + $0x320] sm:$0xff]
  %v895 = vld [vmem:[%s2 + $0x328] sm:$0xff]
  %v896 = vld [vmem:[%s2 + $0x330] sm:$0xff]
  %v897 = vld [vmem:[%s2 + $0x338] sm:$0xff]
  %v898 = vld [vmem:[%s2 + $0x340] sm:$0xff]
  %v899 = vld [vmem:[%s2 + $0x348] sm:$0xff]
  %v900 = vld [vmem:[%s2 + $0x350] sm:$0xff]
  %v901 = vld [vmem:[%s2 + $0x358] sm:$0xff]
  %v902 = vld [vmem:[%s2 + $0x360] sm:$0xff]
  %v903 = vld [vmem:[%s2 + $0x368] sm:$0xff]
  %v904 = vld [vmem:[%s2 + $0x370] sm:$0xff]
  %v905 = vld [vmem:[%s2 + $0x378] sm:$0xff]
  %v906 = vld [vmem:[%s2 + $0x380] sm:$0xff]
  %v907 = vld [vmem:[%s2 + $0x388] sm:$0xff]
  %v908 = vld [vmem:[%s2 + $0x390] sm:$0xff]
  %v909 = vld [vmem:[%s2 + $0x398] sm:$0xff]
  %v910 = vld [vmem:[%s2 + $0x3a0] sm:$0xff]
  %v911 = vld [vmem:[%s2 + $0x3a8] sm:$0xff]
  %v912 = vld [vmem:[%s2 + $0x3b0] sm:$0xff]
  %v913 = vld [vmem:[%s2 + $0x3b8] sm:$0xff]
  %v914 = vld [vmem:[%s2 + $0x3c0] sm:$0xff]
  %v915 = vld [vmem:[%s2 + $0x3c8] sm:$0xff]
  %v916 = vld [vmem:[%s2 + $0x3d0] sm:$0xff]
  %v917 = vld [vmem:[%s2 + $0x3d8] sm:$0xff]
  %v918 = vld [vmem:[%s2 + $0x3e0] sm:$0xff]
  %v919 = vld [vmem:[%s2 + $0x3e8] sm:$0xff]
  %v920 = vld [vmem:[%s2 + $0x3f0] sm:$0xff]
  %v921 = vld [vmem:[%s2 + $0x3f8] sm:$0xff]
  %v1050 = vunpack.c.l.b16 %v794
  %v1051 = vunpack.c.h.b16 %v794
  %v1052 = vunpack.c.l.b16 %v795
  %v1053 = vunpack.c.h.b16 %v795
  %v1054 = vunpack.c.l.b16 %v796
  %v1055 = vunpack.c.h.b16 %v796
  %v1056 = vunpack.c.l.b16 %v797
  %v1057 = vunpack.c.h.b16 %v797
  %v1058 = vunpack.c.l.b16 %v798
  %v1059 = vunpack.c.h.b16 %v798
  %v1060 = vunpack.c.l.b16 %v799
  %v1061 = vunpack.c.h.b16 %v799
  %v1062 = vunpack.c.l.b16 %v800
  %v1063 = vunpack.c.h.b16 %v800
  %v1064 = vunpack.c.l.b16 %v801
  %v1065 = vunpack.c.h.b16 %v801
  %v1066 = vunpack.c.l.b16 %v802
  %v1067 = vunpack.c.h.b16 %v802
  %v1068 = vunpack.c.l.b16 %v803
  %v1069 = vunpack.c.h.b16 %v803
  %v1070 = vunpack.c.l.b16 %v804
  %v1071 = vunpack.c.h.b16 %v804
  %v1072 = vunpack.c.l.b16 %v805
  %v1073 = vunpack.c.h.b16 %v805
  %v1074 = vunpack.c.l.b16 %v806
  %v1075 = vunpack.c.h.b16 %v806
  %v1076 = vunpack.c.l.b16 %v807
  %v1077 = vunpack.c.h.b16 %v807
  %v1078 = vunpack.c.l.b16 %v808
  %v1079 = vunpack.c.h.b16 %v808
  %v1080 = vunpack.c.l.b16 %v809
  %v1081 = vunpack.c.h.b16 %v809
  %v1082 = vunpack.c.l.b16 %v810
  %v1083 = vunpack.c.h.b16 %v810
  %v1084 = vunpack.c.l.b16 %v811
  %v1085 = vunpack.c.h.b16 %v811
  %v1086 = vunpack.c.l.b16 %v812
  %v1087 = vunpack.c.h.b16 %v812
  %v1088 = vunpack.c.l.b16 %v813
  %v1089 = vunpack.c.h.b16 %v813
  %v1090 = vunpack.c.l.b16 %v814
  %v1091 = vunpack.c.h.b16 %v814
  %v1092 = vunpack.c.l.b16 %v815
  %v1093 = vunpack.c.h.b16 %v815
  %v1094 = vunpack.c.l.b16 %v816
  %v1095 = vunpack.c.h.b16 %v816
  %v1096 = vunpack.c.l.b16 %v817
  %v1097 = vunpack.c.h.b16 %v817
  %v1098 = vunpack.c.l.b16 %v818
  %v1099 = vunpack.c.h.b16 %v818
  %v1100 = vunpack.c.l.b16 %v819
  %v1101 = vunpack.c.h.b16 %v819
  %v1102 = vunpack.c.l.b16 %v820
  %v1103 = vunpack.c.h.b16 %v820
  %v1104 = vunpack.c.l.b16 %v821
  %v1105 = vunpack.c.h.b16 %v821
  %v1106 = vunpack.c.l.b16 %v822
  %v1107 = vunpack.c.h.b16 %v822
  %v1108 = vunpack.c.l.b16 %v823
  %v1109 = vunpack.c.h.b16 %v823
  %v1110 = vunpack.c.l.b16 %v824
  %v1111 = vunpack.c.h.b16 %v824
  %v1112 = vunpack.c.l.b16 %v825
  %v1113 = vunpack.c.h.b16 %v825
  %v1114 = vunpack.c.l.b16 %v826
  %v1115 = vunpack.c.h.b16 %v826
  %v1116 = vunpack.c.l.b16 %v827
  %v1117 = vunpack.c.h.b16 %v827
  %v1118 = vunpack.c.l.b16 %v828
  %v1119 = vunpack.c.h.b16 %v828
  %v1120 = vunpack.c.l.b16 %v829
  %v1121 = vunpack.c.h.b16 %v829
  %v1122 = vunpack.c.l.b16 %v830
  %v1123 = vunpack.c.h.b16 %v830
  %v1124 = vunpack.c.l.b16 %v831
  %v1125 = vunpack.c.h.b16 %v831
  %v1126 = vunpack.c.l.b16 %v832
  %v1127 = vunpack.c.h.b16 %v832
  %v1128 = vunpack.c.l.b16 %v833
  %v1129 = vunpack.c.h.b16 %v833
  %v1130 = vunpack.c.l.b16 %v834
  %v1131 = vunpack.c.h.b16 %v834
  %v1132 = vunpack.c.l.b16 %v835
  %v1133 = vunpack.c.h.b16 %v835
  %v1134 = vunpack.c.l.b16 %v836
  %v1135 = vunpack.c.h.b16 %v836
  %v1136 = vunpack.c.l.b16 %v837
  %v1137 = vunpack.c.h.b16 %v837
  %v1138 = vunpack.c.l.b16 %v838
  %v1139 = vunpack.c.h.b16 %v838
  %v1140 = vunpack.c.l.b16 %v839
  %v1141 = vunpack.c.h.b16 %v839
  %v1142 = vunpack.c.l.b16 %v840
  %v1143 = vunpack.c.h.b16 %v840
  %v1144 = vunpack.c.l.b16 %v841
  %v1145 = vunpack.c.h.b16 %v841
  %v1146 = vunpack.c.l.b16 %v842
  %v1147 = vunpack.c.h.b16 %v842
  %v1148 = vunpack.c.l.b16 %v843
  %v1149 = vunpack.c.h.b16 %v843
  %v1150 = vunpack.c.l.b16 %v844
  %v1151 = vunpack.c.h.b16 %v844
  %v1152 = vunpack.c.l.b16 %v845
  %v1153 = vunpack.c.h.b16 %v845
  %v1154 = vunpack.c.l.b16 %v846
  %v1155 = vunpack.c.h.b16 %v846
  %v1156 = vunpack.c.l.b16 %v847
  %v1157 = vunpack.c.h.b16 %v847
  %v1158 = vunpack.c.l.b16 %v848
  %v1159 = vunpack.c.h.b16 %v848
  %v1160 = vunpack.c.l.b16 %v849
  %v1161 = vunpack.c.h.b16 %v849
  %v1162 = vunpack.c.l.b16 %v850
  %v1163 = vunpack.c.h.b16 %v850
  %v1164 = vunpack.c.l.b16 %v851
  %v1165 = vunpack.c.h.b16 %v851
  %v1166 = vunpack.c.l.b16 %v852
  %v1167 = vunpack.c.h.b16 %v852
  %v1168 = vunpack.c.l.b16 %v853
  %v1169 = vunpack.c.h.b16 %v853
  %v1170 = vunpack.c.l.b16 %v854
  %v1171 = vunpack.c.h.b16 %v854
  %v1172 = vunpack.c.l.b16 %v855
  %v1173 = vunpack.c.h.b16 %v855
  %v1174 = vunpack.c.l.b16 %v856
  %v1175 = vunpack.c.h.b16 %v856
  %v1176 = vunpack.c.l.b16 %v857
  %v1177 = vunpack.c.h.b16 %v857
  %v1178 = vunpack.c.l.b16 %v858
  %v1179 = vunpack.c.h.b16 %v858
  %v1180 = vunpack.c.l.b16 %v859
  %v1181 = vunpack.c.h.b16 %v859
  %v1182 = vunpack.c.l.b16 %v860
  %v1183 = vunpack.c.h.b16 %v860
  %v1184 = vunpack.c.l.b16 %v861
  %v1185 = vunpack.c.h.b16 %v861
  %v1186 = vunpack.c.l.b16 %v862
  %v1187 = vunpack.c.h.b16 %v862
  %v1188 = vunpack.c.l.b16 %v863
  %v1189 = vunpack.c.h.b16 %v863
  %v1190 = vunpack.c.l.b16 %v864
  %v1191 = vunpack.c.h.b16 %v864
  %v1192 = vunpack.c.l.b16 %v865
  %v1193 = vunpack.c.h.b16 %v865
  %v1194 = vunpack.c.l.b16 %v866
  %v1195 = vunpack.c.h.b16 %v866
  %v1196 = vunpack.c.l.b16 %v867
  %v1197 = vunpack.c.h.b16 %v867
  %v1198 = vunpack.c.l.b16 %v868
  %v1199 = vunpack.c.h.b16 %v868
  %v1200 = vunpack.c.l.b16 %v869
  %v1201 = vunpack.c.h.b16 %v869
  %v1202 = vunpack.c.l.b16 %v870
  %v1203 = vunpack.c.h.b16 %v870
  %v1204 = vunpack.c.l.b16 %v871
  %v1205 = vunpack.c.h.b16 %v871
  %v1206 = vunpack.c.l.b16 %v872
  %v1207 = vunpack.c.h.b16 %v872
  %v1208 = vunpack.c.l.b16 %v873
  %v1209 = vunpack.c.h.b16 %v873
  %v1210 = vunpack.c.l.b16 %v874
  %v1211 = vunpack.c.h.b16 %v874
  %v1212 = vunpack.c.l.b16 %v875
  %v1213 = vunpack.c.h.b16 %v875
  %v1214 = vunpack.c.l.b16 %v876
  %v1215 = vunpack.c.h.b16 %v876
  %v1216 = vunpack.c.l.b16 %v877
  %v1217 = vunpack.c.h.b16 %v877
  %v1218 = vunpack.c.l.b16 %v878
  %v1219 = vunpack.c.h.b16 %v878
  %v1220 = vunpack.c.l.b16 %v879
  %v1221 = vunpack.c.h.b16 %v879
  %v1222 = vunpack.c.l.b16 %v880
  %v1223 = vunpack.c.h.b16 %v880
  %v1224 = vunpack.c.l.b16 %v881
  %v1225 = vunpack.c.h.b16 %v881
  %v1226 = vunpack.c.l.b16 %v882
  %v1227 = vunpack.c.h.b16 %v882
  %v1228 = vunpack.c.l.b16 %v883
  %v1229 = vunpack.c.h.b16 %v883
  %v1230 = vunpack.c.l.b16 %v884
  %v1231 = vunpack.c.h.b16 %v884
  %v1232 = vunpack.c.l.b16 %v885
  %v1233 = vunpack.c.h.b16 %v885
  %v1234 = vunpack.c.l.b16 %v886
  %v1235 = vunpack.c.h.b16 %v886
  %v1236 = vunpack.c.l.b16 %v887
  %v1237 = vunpack.c.h.b16 %v887
  %v1238 = vunpack.c.l.b16 %v888
  %v1239 = vunpack.c.h.b16 %v888
  %v1240 = vunpack.c.l.b16 %v889
  %v1241 = vunpack.c.h.b16 %v889
  %v1242 = vunpack.c.l.b16 %v890
  %v1243 = vunpack.c.h.b16 %v890
  %v1244 = vunpack.c.l.b16 %v891
  %v1245 = vunpack.c.h.b16 %v891
  %v1246 = vunpack.c.l.b16 %v892
  %v1247 = vunpack.c.h.b16 %v892
  %v1248 = vunpack.c.l.b16 %v893
  %v1249 = vunpack.c.h.b16 %v893
  %v1250 = vunpack.c.l.b16 %v894
  %v1251 = vunpack.c.h.b16 %v894
  %v1252 = vunpack.c.l.b16 %v895
  %v1253 = vunpack.c.h.b16 %v895
  %v1254 = vunpack.c.l.b16 %v896
  %v1255 = vunpack.c.h.b16 %v896
  %v1256 = vunpack.c.l.b16 %v897
  %v1257 = vunpack.c.h.b16 %v897
  %v1258 = vunpack.c.l.b16 %v898
  %v1259 = vunpack.c.h.b16 %v898
  %v1260 = vunpack.c.l.b16 %v899
  %v1261 = vunpack.c.h.b16 %v899
  %v1262 = vunpack.c.l.b16 %v900
  %v1263 = vunpack.c.h.b16 %v900
  %v1264 = vunpack.c.l.b16 %v901
  %v1265 = vunpack.c.h.b16 %v901
  %v1266 = vunpack.c.l.b16 %v902
  %v1267 = vunpack.c.h.b16 %v902
  %v1268 = vunpack.c.l.b16 %v903
  %v1269 = vunpack.c.h.b16 %v903
  %v1270 = vunpack.c.l.b16 %v904
  %v1271 = vunpack.c.h.b16 %v904
  %v1272 = vunpack.c.l.b16 %v905
  %v1273 = vunpack.c.h.b16 %v905
  %v1274 = vunpack.c.l.b16 %v906
  %v1275 = vunpack.c.h.b16 %v906
  %v1276 = vunpack.c.l.b16 %v907
  %v1277 = vunpack.c.h.b16 %v907
  %v1278 = vunpack.c.l.b16 %v908
  %v1279 = vunpack.c.h.b16 %v908
  %v1280 = vunpack.c.l.b16 %v909
  %v1281 = vunpack.c.h.b16 %v909
  %v1282 = vunpack.c.l.b16 %v910
  %v1283 = vunpack.c.h.b16 %v910
  %v1284 = vunpack.c.l.b16 %v911
  %v1285 = vunpack.c.h.b16 %v911
  %v1286 = vunpack.c.l.b16 %v912
  %v1287 = vunpack.c.h.b16 %v912
  %v1288 = vunpack.c.l.b16 %v913
  %v1289 = vunpack.c.h.b16 %v913
  %v1290 = vunpack.c.l.b16 %v914
  %v1291 = vunpack.c.h.b16 %v914
  %v1292 = vunpack.c.l.b16 %v915
  %v1293 = vunpack.c.h.b16 %v915
  %v1294 = vunpack.c.l.b16 %v916
  %v1295 = vunpack.c.h.b16 %v916
  %v1296 = vunpack.c.l.b16 %v917
  %v1297 = vunpack.c.h.b16 %v917
  %v1298 = vunpack.c.l.b16 %v918
  %v1299 = vunpack.c.h.b16 %v918
  %v1300 = vunpack.c.l.b16 %v919
  %v1301 = vunpack.c.h.b16 %v919
  %v1302 = vunpack.c.l.b16 %v920
  %v1303 = vunpack.c.h.b16 %v920
  %v1304 = vunpack.c.l.b16 %v921
  %v1305 = vunpack.c.h.b16 %v921
  %v1306 = vpack.c.b16 %v1052, %v1050
  %v1307 = vpack.c.b16 %v1053, %v1051
  %v1308 = vpack.c.b16 %v1056, %v1054
  %v1309 = vpack.c.b16 %v1057, %v1055
  %v1310 = vpack.c.b16 %v1060, %v1058
  %v1311 = vpack.c.b16 %v1061, %v1059
  %v1312 = vpack.c.b16 %v1064, %v1062
  %v1313 = vpack.c.b16 %v1065, %v1063
  %v1314 = vpack.c.b16 %v1068, %v1066
  %v1315 = vpack.c.b16 %v1069, %v1067
  %v1316 = vpack.c.b16 %v1072, %v1070
  %v1317 = vpack.c.b16 %v1073, %v1071
  %v1318 = vpack.c.b16 %v1076, %v1074
  %v1319 = vpack.c.b16 %v1077, %v1075
  %v1320 = vpack.c.b16 %v1080, %v1078
  %v1321 = vpack.c.b16 %v1081, %v1079
  %v1322 = vpack.c.b16 %v1084, %v1082
  %v1323 = vpack.c.b16 %v1085, %v1083
  %v1324 = vpack.c.b16 %v1088, %v1086
  %v1325 = vpack.c.b16 %v1089, %v1087
  %v1326 = vpack.c.b16 %v1092, %v1090
  %v1327 = vpack.c.b16 %v1093, %v1091
  %v1328 = vpack.c.b16 %v1096, %v1094
  %v1329 = vpack.c.b16 %v1097, %v1095
  %v1330 = vpack.c.b16 %v1100, %v1098
  %v1331 = vpack.c.b16 %v1101, %v1099
  %v1332 = vpack.c.b16 %v1104, %v1102
  %v1333 = vpack.c.b16 %v1105, %v1103
  %v1334 = vpack.c.b16 %v1108, %v1106
  %v1335 = vpack.c.b16 %v1109, %v1107
  %v1336 = vpack.c.b16 %v1112, %v1110
  %v1337 = vpack.c.b16 %v1113, %v1111
  %v1338 = vpack.c.b16 %v1116, %v1114
  %v1339 = vpack.c.b16 %v1117, %v1115
  %v1340 = vpack.c.b16 %v1120, %v1118
  %v1341 = vpack.c.b16 %v1121, %v1119
  %v1342 = vpack.c.b16 %v1124, %v1122
  %v1343 = vpack.c.b16 %v1125, %v1123
  %v1344 = vpack.c.b16 %v1128, %v1126
  %v1345 = vpack.c.b16 %v1129, %v1127
  %v1346 = vpack.c.b16 %v1132, %v1130
  %v1347 = vpack.c.b16 %v1133, %v1131
  %v1348 = vpack.c.b16 %v1136, %v1134
  %v1349 = vpack.c.b16 %v1137, %v1135
  %v1350 = vpack.c.b16 %v1140, %v1138
  %v1351 = vpack.c.b16 %v1141, %v1139
  %v1352 = vpack.c.b16 %v1144, %v1142
  %v1353 = vpack.c.b16 %v1145, %v1143
  %v1354 = vpack.c.b16 %v1148, %v1146
  %v1355 = vpack.c.b16 %v1149, %v1147
  %v1356 = vpack.c.b16 %v1152, %v1150
  %v1357 = vpack.c.b16 %v1153, %v1151
  %v1358 = vpack.c.b16 %v1156, %v1154
  %v1359 = vpack.c.b16 %v1157, %v1155
  %v1360 = vpack.c.b16 %v1160, %v1158
  %v1361 = vpack.c.b16 %v1161, %v1159
  %v1362 = vpack.c.b16 %v1164, %v1162
  %v1363 = vpack.c.b16 %v1165, %v1163
  %v1364 = vpack.c.b16 %v1168, %v1166
  %v1365 = vpack.c.b16 %v1169, %v1167
  %v1366 = vpack.c.b16 %v1172, %v1170
  %v1367 = vpack.c.b16 %v1173, %v1171
  %v1368 = vpack.c.b16 %v1176, %v1174
  %v1369 = vpack.c.b16 %v1177, %v1175
  %v1370 = vpack.c.b16 %v1180, %v1178
  %v1371 = vpack.c.b16 %v1181, %v1179
  %v1372 = vpack.c.b16 %v1184, %v1182
  %v1373 = vpack.c.b16 %v1185, %v1183
  %v1374 = vpack.c.b16 %v1188, %v1186
  %v1375 = vpack.c.b16 %v1189, %v1187
  %v1376 = vpack.c.b16 %v1192, %v1190
  %v1377 = vpack.c.b16 %v1193, %v1191
  %v1378 = vpack.c.b16 %v1196, %v1194
  %v1379 = vpack.c.b16 %v1197, %v1195
  %v1380 = vpack.c.b16 %v1200, %v1198
  %v1381 = vpack.c.b16 %v1201, %v1199
  %v1382 = vpack.c.b16 %v1204, %v1202
  %v1383 = vpack.c.b16 %v1205, %v1203
  %v1384 = vpack.c.b16 %v1208, %v1206
  %v1385 = vpack.c.b16 %v1209, %v1207
  %v1386 = vpack.c.b16 %v1212, %v1210
  %v1387 = vpack.c.b16 %v1213, %v1211
  %v1388 = vpack.c.b16 %v1216, %v1214
  %v1389 = vpack.c.b16 %v1217, %v1215
  %v1390 = vpack.c.b16 %v1220, %v1218
  %v1391 = vpack.c.b16 %v1221, %v1219
  %v1392 = vpack.c.b16 %v1224, %v1222
  %v1393 = vpack.c.b16 %v1225, %v1223
  %v1394 = vpack.c.b16 %v1228, %v1226
  %v1395 = vpack.c.b16 %v1229, %v1227
  %v1396 = vpack.c.b16 %v1232, %v1230
  %v1397 = vpack.c.b16 %v1233, %v1231
  %v1398 = vpack.c.b16 %v1236, %v1234
  %v1399 = vpack.c.b16 %v1237, %v1235
  %v1400 = vpack.c.b16 %v1240, %v1238
  %v1401 = vpack.c.b16 %v1241, %v1239
  %v1402 = vpack.c.b16 %v1244, %v1242
  %v1403 = vpack.c.b16 %v1245, %v1243
  %v1404 = vpack.c.b16 %v1248, %v1246
  %v1405 = vpack.c.b16 %v1249, %v1247
  %v1406 = vpack.c.b16 %v1252, %v1250
  %v1407 = vpack.c.b16 %v1253, %v1251
  %v1408 = vpack.c.b16 %v1256, %v1254
  %v1409 = vpack.c.b16 %v1257, %v1255
  %v1410 = vpack.c.b16 %v1260, %v1258
  %v1411 = vpack.c.b16 %v1261, %v1259
  %v1412 = vpack.c.b16 %v1264, %v1262
  %v1413 = vpack.c.b16 %v1265, %v1263
  %v1414 = vpack.c.b16 %v1268, %v1266
  %v1415 = vpack.c.b16 %v1269, %v1267
  %v1416 = vpack.c.b16 %v1272, %v1270
  %v1417 = vpack.c.b16 %v1273, %v1271
  %v1418 = vpack.c.b16 %v1276, %v1274
  %v1419 = vpack.c.b16 %v1277, %v1275
  %v1420 = vpack.c.b16 %v1280, %v1278
  %v1421 = vpack.c.b16 %v1281, %v1279
  %v1422 = vpack.c.b16 %v1284, %v1282
  %v1423 = vpack.c.b16 %v1285, %v1283
  %v1424 = vpack.c.b16 %v1288, %v1286
  %v1425 = vpack.c.b16 %v1289, %v1287
  %v1426 = vpack.c.b16 %v1292, %v1290
  %v1427 = vpack.c.b16 %v1293, %v1291
  %v1428 = vpack.c.b16 %v1296, %v1294
  %v1429 = vpack.c.b16 %v1297, %v1295
  %v1430 = vpack.c.b16 %v1300, %v1298
  %v1431 = vpack.c.b16 %v1301, %v1299
  %v1432 = vpack.c.b16 %v1304, %v1302
  %v1433 = vpack.c.b16 %v1305, %v1303
  %1562 = vmatpush.bf16.msra.mxu0 %v785
  %1563 = vmatpush.bf16.msra.mxu0 %v784
  %1564 = vmatpush.bf16.msra.mxu0 %v783
  %1565 = vmatpush.bf16.msra.mxu0 %v782
  %1566 = vmatpush.bf16.msra.mxu0 %v781
  %1567 = vmatpush.bf16.msra.mxu0 %v780
  %1568 = vmatpush.bf16.msra.mxu0 %v779
  %1569 = vmatpush.bf16.msra.mxu0 %v778
  %1570 = vmatmul.bf16.gmra.mxu0 %v1306
  %v1571 = vpop.f32.mrf.mxu0
  %v1572 = vadd.f32 0.0, %v1571
  %v1573 = vpop.f32.mrf.mxu0
  %v1574 = vadd.f32 0.0, %v1573
  %1575 = vmatmul.bf16.gmra.mxu0 %v1308
  %v1576 = vpop.f32.mrf.mxu0
  %v1577 = vadd.f32 0.0, %v1576
  %v1578 = vpop.f32.mrf.mxu0
  %v1579 = vadd.f32 0.0, %v1578
  %1580 = vmatmul.bf16.gmra.mxu0 %v1310
  %v1581 = vpop.f32.mrf.mxu0
  %v1582 = vadd.f32 0.0, %v1581
  %v1583 = vpop.f32.mrf.mxu0
  %v1584 = vadd.f32 0.0, %v1583
  %1585 = vmatmul.bf16.gmra.mxu0 %v1312
  %v1586 = vpop.f32.mrf.mxu0
  %v1587 = vadd.f32 0.0, %v1586
  %v1588 = vpop.f32.mrf.mxu0
  %v1589 = vadd.f32 0.0, %v1588
  %1590 = vmatmul.bf16.gmra.mxu0 %v1314
  %v1591 = vpop.f32.mrf.mxu0
  %v1592 = vadd.f32 0.0, %v1591
  %v1593 = vpop.f32.mrf.mxu0
  %v1594 = vadd.f32 0.0, %v1593
  %1595 = vmatmul.bf16.gmra.mxu0 %v1316
  %v1596 = vpop.f32.mrf.mxu0
  %v1597 = vadd.f32 0.0, %v1596
  %v1598 = vpop.f32.mrf.mxu0
  %v1599 = vadd.f32 0.0, %v1598
  %1600 = vmatmul.bf16.gmra.mxu0 %v1318
  %v1601 = vpop.f32.mrf.mxu0
  %v1602 = vadd.f32 0.0, %v1601
  %v1603 = vpop.f32.mrf.mxu0
  %v1604 = vadd.f32 0.0, %v1603
  %1605 = vmatmul.bf16.gmra.mxu0 %v1320
  %v1606 = vpop.f32.mrf.mxu0
  %v1607 = vadd.f32 0.0, %v1606
  %v1608 = vpop.f32.mrf.mxu0
  %v1609 = vadd.f32 0.0, %v1608
  %1610 = vmatmul.bf16.gmra.mxu0 %v1322
  %v1611 = vpop.f32.mrf.mxu0
  %v1612 = vadd.f32 0.0, %v1611
  %v1613 = vpop.f32.mrf.mxu0
  %v1614 = vadd.f32 0.0, %v1613
  %1615 = vmatmul.bf16.gmra.mxu0 %v1324
  %v1616 = vpop.f32.mrf.mxu0
  %v1617 = vadd.f32 0.0, %v1616
  %v1618 = vpop.f32.mrf.mxu0
  %v1619 = vadd.f32 0.0, %v1618
  %1620 = vmatmul.bf16.gmra.mxu0 %v1326
  %v1621 = vpop.f32.mrf.mxu0
  %v1622 = vadd.f32 0.0, %v1621
  %v1623 = vpop.f32.mrf.mxu0
  %v1624 = vadd.f32 0.0, %v1623
  %1625 = vmatmul.bf16.gmra.mxu0 %v1328
  %v1626 = vpop.f32.mrf.mxu0
  %v1627 = vadd.f32 0.0, %v1626
  %v1628 = vpop.f32.mrf.mxu0
  %v1629 = vadd.f32 0.0, %v1628
  %1630 = vmatmul.bf16.gmra.mxu0 %v1330
  %v1631 = vpop.f32.mrf.mxu0
  %v1632 = vadd.f32 0.0, %v1631
  %v1633 = vpop.f32.mrf.mxu0
  %v1634 = vadd.f32 0.0, %v1633
  %1635 = vmatmul.bf16.gmra.mxu0 %v1332
  %v1636 = vpop.f32.mrf.mxu0
  %v1637 = vadd.f32 0.0, %v1636
  %v1638 = vpop.f32.mrf.mxu0
  %v1639 = vadd.f32 0.0, %v1638
  %1640 = vmatmul.bf16.gmra.mxu0 %v1334
  %v1641 = vpop.f32.mrf.mxu0
  %v1642 = vadd.f32 0.0, %v1641
  %v1643 = vpop.f32.mrf.mxu0
  %v1644 = vadd.f32 0.0, %v1643
  %1645 = vmatmul.bf16.gmra.mxu0 %v1336
  %v1646 = vpop.f32.mrf.mxu0
  %v1647 = vadd.f32 0.0, %v1646
  %v1648 = vpop.f32.mrf.mxu0
  %v1649 = vadd.f32 0.0, %v1648
  %1650 = vmatmul.bf16.gmra.mxu0 %v1338
  %v1651 = vpop.f32.mrf.mxu0
  %v1652 = vadd.f32 0.0, %v1651
  %v1653 = vpop.f32.mrf.mxu0
  %v1654 = vadd.f32 0.0, %v1653
  %1655 = vmatmul.bf16.gmra.mxu0 %v1340
  %v1656 = vpop.f32.mrf.mxu0
  %v1657 = vadd.f32 0.0, %v1656
  %v1658 = vpop.f32.mrf.mxu0
  %v1659 = vadd.f32 0.0, %v1658
  %1660 = vmatmul.bf16.gmra.mxu0 %v1342
  %v1661 = vpop.f32.mrf.mxu0
  %v1662 = vadd.f32 0.0, %v1661
  %v1663 = vpop.f32.mrf.mxu0
  %v1664 = vadd.f32 0.0, %v1663
  %1665 = vmatmul.bf16.gmra.mxu0 %v1344
  %v1666 = vpop.f32.mrf.mxu0
  %v1667 = vadd.f32 0.0, %v1666
  %v1668 = vpop.f32.mrf.mxu0
  %v1669 = vadd.f32 0.0, %v1668
  %1670 = vmatmul.bf16.gmra.mxu0 %v1346
  %v1671 = vpop.f32.mrf.mxu0
  %v1672 = vadd.f32 0.0, %v1671
  %v1673 = vpop.f32.mrf.mxu0
  %v1674 = vadd.f32 0.0, %v1673
  %1675 = vmatmul.bf16.gmra.mxu0 %v1348
  %v1676 = vpop.f32.mrf.mxu0
  %v1677 = vadd.f32 0.0, %v1676
  %v1678 = vpop.f32.mrf.mxu0
  %v1679 = vadd.f32 0.0, %v1678
  %1680 = vmatmul.bf16.gmra.mxu0 %v1350
  %v1681 = vpop.f32.mrf.mxu0
  %v1682 = vadd.f32 0.0, %v1681
  %v1683 = vpop.f32.mrf.mxu0
  %v1684 = vadd.f32 0.0, %v1683
  %1685 = vmatmul.bf16.gmra.mxu0 %v1352
  %v1686 = vpop.f32.mrf.mxu0
  %v1687 = vadd.f32 0.0, %v1686
  %v1688 = vpop.f32.mrf.mxu0
  %v1689 = vadd.f32 0.0, %v1688
  %1690 = vmatmul.bf16.gmra.mxu0 %v1354
  %v1691 = vpop.f32.mrf.mxu0
  %v1692 = vadd.f32 0.0, %v1691
  %v1693 = vpop.f32.mrf.mxu0
  %v1694 = vadd.f32 0.0, %v1693
  %1695 = vmatmul.bf16.gmra.mxu0 %v1356
  %v1696 = vpop.f32.mrf.mxu0
  %v1697 = vadd.f32 0.0, %v1696
  %v1698 = vpop.f32.mrf.mxu0
  %v1699 = vadd.f32 0.0, %v1698
  %1700 = vmatmul.bf16.gmra.mxu0 %v1358
  %v1701 = vpop.f32.mrf.mxu0
  %v1702 = vadd.f32 0.0, %v1701
  %v1703 = vpop.f32.mrf.mxu0
  %v1704 = vadd.f32 0.0, %v1703
  %1705 = vmatmul.bf16.gmra.mxu0 %v1360
  %v1706 = vpop.f32.mrf.mxu0
  %v1707 = vadd.f32 0.0, %v1706
  %v1708 = vpop.f32.mrf.mxu0
  %v1709 = vadd.f32 0.0, %v1708
  %1710 = vmatmul.bf16.gmra.mxu0 %v1362
  %v1711 = vpop.f32.mrf.mxu0
  %v1712 = vadd.f32 0.0, %v1711
  %v1713 = vpop.f32.mrf.mxu0
  %v1714 = vadd.f32 0.0, %v1713
  %1715 = vmatmul.bf16.gmra.mxu0 %v1364
  %v1716 = vpop.f32.mrf.mxu0
  %v1717 = vadd.f32 0.0, %v1716
  %v1718 = vpop.f32.mrf.mxu0
  %v1719 = vadd.f32 0.0, %v1718
  %1720 = vmatmul.bf16.gmra.mxu0 %v1366
  %v1721 = vpop.f32.mrf.mxu0
  %v1722 = vadd.f32 0.0, %v1721
  %v1723 = vpop.f32.mrf.mxu0
  %v1724 = vadd.f32 0.0, %v1723
  %1725 = vmatmul.bf16.gmra.mxu0 %v1368
  %v1726 = vpop.f32.mrf.mxu0
  %v1727 = vadd.f32 0.0, %v1726
  %v1728 = vpop.f32.mrf.mxu0
  %v1729 = vadd.f32 0.0, %v1728
  %1730 = vmatmul.bf16.gmra.mxu0 %v1370
  %v1731 = vpop.f32.mrf.mxu0
  %v1732 = vadd.f32 0.0, %v1731
  %v1733 = vpop.f32.mrf.mxu0
  %v1734 = vadd.f32 0.0, %v1733
  %1735 = vmatmul.bf16.gmra.mxu0 %v1372
  %v1736 = vpop.f32.mrf.mxu0
  %v1737 = vadd.f32 0.0, %v1736
  %v1738 = vpop.f32.mrf.mxu0
  %v1739 = vadd.f32 0.0, %v1738
  %1740 = vmatmul.bf16.gmra.mxu0 %v1374
  %v1741 = vpop.f32.mrf.mxu0
  %v1742 = vadd.f32 0.0, %v1741
  %v1743 = vpop.f32.mrf.mxu0
  %v1744 = vadd.f32 0.0, %v1743
  %1745 = vmatmul.bf16.gmra.mxu0 %v1376
  %v1746 = vpop.f32.mrf.mxu0
  %v1747 = vadd.f32 0.0, %v1746
  %v1748 = vpop.f32.mrf.mxu0
  %v1749 = vadd.f32 0.0, %v1748
  %1750 = vmatmul.bf16.gmra.mxu0 %v1378
  %v1751 = vpop.f32.mrf.mxu0
  %v1752 = vadd.f32 0.0, %v1751
  %v1753 = vpop.f32.mrf.mxu0
  %v1754 = vadd.f32 0.0, %v1753
  %1755 = vmatmul.bf16.gmra.mxu0 %v1380
  %v1756 = vpop.f32.mrf.mxu0
  %v1757 = vadd.f32 0.0, %v1756
  %v1758 = vpop.f32.mrf.mxu0
  %v1759 = vadd.f32 0.0, %v1758
  %1760 = vmatmul.bf16.gmra.mxu0 %v1382
  %v1761 = vpop.f32.mrf.mxu0
  %v1762 = vadd.f32 0.0, %v1761
  %v1763 = vpop.f32.mrf.mxu0
  %v1764 = vadd.f32 0.0, %v1763
  %1765 = vmatmul.bf16.gmra.mxu0 %v1384
  %v1766 = vpop.f32.mrf.mxu0
  %v1767 = vadd.f32 0.0, %v1766
  %v1768 = vpop.f32.mrf.mxu0
  %v1769 = vadd.f32 0.0, %v1768
  %1770 = vmatmul.bf16.gmra.mxu0 %v1386
  %v1771 = vpop.f32.mrf.mxu0
  %v1772 = vadd.f32 0.0, %v1771
  %v1773 = vpop.f32.mrf.mxu0
  %v1774 = vadd.f32 0.0, %v1773
  %1775 = vmatmul.bf16.gmra.mxu0 %v1388
  %v1776 = vpop.f32.mrf.mxu0
  %v1777 = vadd.f32 0.0, %v1776
  %v1778 = vpop.f32.mrf.mxu0
  %v1779 = vadd.f32 0.0, %v1778
  %1780 = vmatmul.bf16.gmra.mxu0 %v1390
  %v1781 = vpop.f32.mrf.mxu0
  %v1782 = vadd.f32 0.0, %v1781
  %v1783 = vpop.f32.mrf.mxu0
  %v1784 = vadd.f32 0.0, %v1783
  %1785 = vmatmul.bf16.gmra.mxu0 %v1392
  %v1786 = vpop.f32.mrf.mxu0
  %v1787 = vadd.f32 0.0, %v1786
  %v1788 = vpop.f32.mrf.mxu0
  %v1789 = vadd.f32 0.0, %v1788
  %1790 = vmatmul.bf16.gmra.mxu0 %v1394
  %v1791 = vpop.f32.mrf.mxu0
  %v1792 = vadd.f32 0.0, %v1791
  %v1793 = vpop.f32.mrf.mxu0
  %v1794 = vadd.f32 0.0, %v1793
  %1795 = vmatmul.bf16.gmra.mxu0 %v1396
  %v1796 = vpop.f32.mrf.mxu0
  %v1797 = vadd.f32 0.0, %v1796
  %v1798 = vpop.f32.mrf.mxu0
  %v1799 = vadd.f32 0.0, %v1798
  %1800 = vmatmul.bf16.gmra.mxu0 %v1398
  %v1801 = vpop.f32.mrf.mxu0
  %v1802 = vadd.f32 0.0, %v1801
  %v1803 = vpop.f32.mrf.mxu0
  %v1804 = vadd.f32 0.0, %v1803
  %1805 = vmatmul.bf16.gmra.mxu0 %v1400
  %v1806 = vpop.f32.mrf.mxu0
  %v1807 = vadd.f32 0.0, %v1806
  %v1808 = vpop.f32.mrf.mxu0
  %v1809 = vadd.f32 0.0, %v1808
  %1810 = vmatmul.bf16.gmra.mxu0 %v1402
  %v1811 = vpop.f32.mrf.mxu0
  %v1812 = vadd.f32 0.0, %v1811
  %v1813 = vpop.f32.mrf.mxu0
  %v1814 = vadd.f32 0.0, %v1813
  %1815 = vmatmul.bf16.gmra.mxu0 %v1404
  %v1816 = vpop.f32.mrf.mxu0
  %v1817 = vadd.f32 0.0, %v1816
  %v1818 = vpop.f32.mrf.mxu0
  %v1819 = vadd.f32 0.0, %v1818
  %1820 = vmatmul.bf16.gmra.mxu0 %v1406
  %v1821 = vpop.f32.mrf.mxu0
  %v1822 = vadd.f32 0.0, %v1821
  %v1823 = vpop.f32.mrf.mxu0
  %v1824 = vadd.f32 0.0, %v1823
  %1825 = vmatmul.bf16.gmra.mxu0 %v1408
  %v1826 = vpop.f32.mrf.mxu0
  %v1827 = vadd.f32 0.0, %v1826
  %v1828 = vpop.f32.mrf.mxu0
  %v1829 = vadd.f32 0.0, %v1828
  %1830 = vmatmul.bf16.gmra.mxu0 %v1410
  %v1831 = vpop.f32.mrf.mxu0
  %v1832 = vadd.f32 0.0, %v1831
  %v1833 = vpop.f32.mrf.mxu0
  %v1834 = vadd.f32 0.0, %v1833
  %1835 = vmatmul.bf16.gmra.mxu0 %v1412
  %v1836 = vpop.f32.mrf.mxu0
  %v1837 = vadd.f32 0.0, %v1836
  %v1838 = vpop.f32.mrf.mxu0
  %v1839 = vadd.f32 0.0, %v1838
  %1840 = vmatmul.bf16.gmra.mxu0 %v1414
  %v1841 = vpop.f32.mrf.mxu0
  %v1842 = vadd.f32 0.0, %v1841
  %v1843 = vpop.f32.mrf.mxu0
  %v1844 = vadd.f32 0.0, %v1843
  %1845 = vmatmul.bf16.gmra.mxu0 %v1416
  %v1846 = vpop.f32.mrf.mxu0
  %v1847 = vadd.f32 0.0, %v1846
  %v1848 = vpop.f32.mrf.mxu0
  %v1849 = vadd.f32 0.0, %v1848
  %1850 = vmatmul.bf16.gmra.mxu0 %v1418
  %v1851 = vpop.f32.mrf.mxu0
  %v1852 = vadd.f32 0.0, %v1851
  %v1853 = vpop.f32.mrf.mxu0
  %v1854 = vadd.f32 0.0, %v1853
  %1855 = vmatmul.bf16.gmra.mxu0 %v1420
  %v1856 = vpop.f32.mrf.mxu0
  %v1857 = vadd.f32 0.0, %v1856
  %v1858 = vpop.f32.mrf.mxu0
  %v1859 = vadd.f32 0.0, %v1858
  %1860 = vmatmul.bf16.gmra.mxu0 %v1422
  %v1861 = vpop.f32.mrf.mxu0
  %v1862 = vadd.f32 0.0, %v1861
  %v1863 = vpop.f32.mrf.mxu0
  %v1864 = vadd.f32 0.0, %v1863
  %1865 = vmatmul.bf16.gmra.mxu0 %v1424
  %v1866 = vpop.f32.mrf.mxu0
  %v1867 = vadd.f32 0.0, %v1866
  %v1868 = vpop.f32.mrf.mxu0
  %v1869 = vadd.f32 0.0, %v1868
  %1870 = vmatmul.bf16.gmra.mxu0 %v1426
  %v1871 = vpop.f32.mrf.mxu0
  %v1872 = vadd.f32 0.0, %v1871
  %v1873 = vpop.f32.mrf.mxu0
  %v1874 = vadd.f32 0.0, %v1873
  %1875 = vmatmul.bf16.gmra.mxu0 %v1428
  %v1876 = vpop.f32.mrf.mxu0
  %v1877 = vadd.f32 0.0, %v1876
  %v1878 = vpop.f32.mrf.mxu0
  %v1879 = vadd.f32 0.0, %v1878
  %1880 = vmatmul.bf16.gmra.mxu0 %v1430
  %v1881 = vpop.f32.mrf.mxu0
  %v1882 = vadd.f32 0.0, %v1881
  %v1883 = vpop.f32.mrf.mxu0
  %v1884 = vadd.f32 0.0, %v1883
  %1885 = vmatmul.bf16.gmra.mxu0 %v1432
  %v1886 = vpop.f32.mrf.mxu0
  %v1887 = vadd.f32 0.0, %v1886
  %v1888 = vpop.f32.mrf.mxu0
  %v1889 = vadd.f32 0.0, %v1888
  %1890 = vdwg.mxu0
  %1891 = vmatpush.bf16.msra.mxu0 %v793
  %1892 = vmatpush.bf16.msra.mxu0 %v792
  %1893 = vmatpush.bf16.msra.mxu0 %v791
  %1894 = vmatpush.bf16.msra.mxu0 %v790
  %1895 = vmatpush.bf16.msra.mxu0 %v789
  %1896 = vmatpush.bf16.msra.mxu0 %v788
  %1897 = vmatpush.bf16.msra.mxu0 %v787
  %1898 = vmatpush.bf16.msra.mxu0 %v786
  %1899 = vmatmul.bf16.gmra.mxu0 %v1307
  %v1900 = vpop.f32.mrf.mxu0
  %v1901 = vadd.f32 %v1572, %v1900
  %v1902 = vpop.f32.mrf.mxu0
  %v1903 = vadd.f32 %v1574, %v1902
  %1904 = vmatmul.bf16.gmra.mxu0 %v1309
  %v1905 = vpop.f32.mrf.mxu0
  %v1906 = vadd.f32 %v1577, %v1905
  %v1907 = vpop.f32.mrf.mxu0
  %v1908 = vadd.f32 %v1579, %v1907
  %1909 = vmatmul.bf16.gmra.mxu0 %v1311
  %v1910 = vpop.f32.mrf.mxu0
  %v1911 = vadd.f32 %v1582, %v1910
  %v1912 = vpop.f32.mrf.mxu0
  %v1913 = vadd.f32 %v1584, %v1912
  %1914 = vmatmul.bf16.gmra.mxu0 %v1313
  %v1915 = vpop.f32.mrf.mxu0
  %v1916 = vadd.f32 %v1587, %v1915
  %v1917 = vpop.f32.mrf.mxu0
  %v1918 = vadd.f32 %v1589, %v1917
  %1919 = vmatmul.bf16.gmra.mxu0 %v1315
  %v1920 = vpop.f32.mrf.mxu0
  %v1921 = vadd.f32 %v1592, %v1920
  %v1922 = vpop.f32.mrf.mxu0
  %v1923 = vadd.f32 %v1594, %v1922
  %1924 = vmatmul.bf16.gmra.mxu0 %v1317
  %v1925 = vpop.f32.mrf.mxu0
  %v1926 = vadd.f32 %v1597, %v1925
  %v1927 = vpop.f32.mrf.mxu0
  %v1928 = vadd.f32 %v1599, %v1927
  %1929 = vmatmul.bf16.gmra.mxu0 %v1319
  %v1930 = vpop.f32.mrf.mxu0
  %v1931 = vadd.f32 %v1602, %v1930
  %v1932 = vpop.f32.mrf.mxu0
  %v1933 = vadd.f32 %v1604, %v1932
  %1934 = vmatmul.bf16.gmra.mxu0 %v1321
  %v1935 = vpop.f32.mrf.mxu0
  %v1936 = vadd.f32 %v1607, %v1935
  %v1937 = vpop.f32.mrf.mxu0
  %v1938 = vadd.f32 %v1609, %v1937
  %1939 = vmatmul.bf16.gmra.mxu0 %v1323
  %v1940 = vpop.f32.mrf.mxu0
  %v1941 = vadd.f32 %v1612, %v1940
  %v1942 = vpop.f32.mrf.mxu0
  %v1943 = vadd.f32 %v1614, %v1942
  %1944 = vmatmul.bf16.gmra.mxu0 %v1325
  %v1945 = vpop.f32.mrf.mxu0
  %v1946 = vadd.f32 %v1617, %v1945
  %v1947 = vpop.f32.mrf.mxu0
  %v1948 = vadd.f32 %v1619, %v1947
  %1949 = vmatmul.bf16.gmra.mxu0 %v1327
  %v1950 = vpop.f32.mrf.mxu0
  %v1951 = vadd.f32 %v1622, %v1950
  %v1952 = vpop.f32.mrf.mxu0
  %v1953 = vadd.f32 %v1624, %v1952
  %1954 = vmatmul.bf16.gmra.mxu0 %v1329
  %v1955 = vpop.f32.mrf.mxu0
  %v1956 = vadd.f32 %v1627, %v1955
  %v1957 = vpop.f32.mrf.mxu0
  %v1958 = vadd.f32 %v1629, %v1957
  %1959 = vmatmul.bf16.gmra.mxu0 %v1331
  %v1960 = vpop.f32.mrf.mxu0
  %v1961 = vadd.f32 %v1632, %v1960
  %v1962 = vpop.f32.mrf.mxu0
  %v1963 = vadd.f32 %v1634, %v1962
  %1964 = vmatmul.bf16.gmra.mxu0 %v1333
  %v1965 = vpop.f32.mrf.mxu0
  %v1966 = vadd.f32 %v1637, %v1965
  %v1967 = vpop.f32.mrf.mxu0
  %v1968 = vadd.f32 %v1639, %v1967
  %1969 = vmatmul.bf16.gmra.mxu0 %v1335
  %v1970 = vpop.f32.mrf.mxu0
  %v1971 = vadd.f32 %v1642, %v1970
  %v1972 = vpop.f32.mrf.mxu0
  %v1973 = vadd.f32 %v1644, %v1972
  %1974 = vmatmul.bf16.gmra.mxu0 %v1337
  %v1975 = vpop.f32.mrf.mxu0
  %v1976 = vadd.f32 %v1647, %v1975
  %v1977 = vpop.f32.mrf.mxu0
  %v1978 = vadd.f32 %v1649, %v1977
  %1979 = vmatmul.bf16.gmra.mxu0 %v1339
  %v1980 = vpop.f32.mrf.mxu0
  %v1981 = vadd.f32 %v1652, %v1980
  %v1982 = vpop.f32.mrf.mxu0
  %v1983 = vadd.f32 %v1654, %v1982
  %1984 = vmatmul.bf16.gmra.mxu0 %v1341
  %v1985 = vpop.f32.mrf.mxu0
  %v1986 = vadd.f32 %v1657, %v1985
  %v1987 = vpop.f32.mrf.mxu0
  %v1988 = vadd.f32 %v1659, %v1987
  %1989 = vmatmul.bf16.gmra.mxu0 %v1343
  %v1990 = vpop.f32.mrf.mxu0
  %v1991 = vadd.f32 %v1662, %v1990
  %v1992 = vpop.f32.mrf.mxu0
  %v1993 = vadd.f32 %v1664, %v1992
  %1994 = vmatmul.bf16.gmra.mxu0 %v1345
  %v1995 = vpop.f32.mrf.mxu0
  %v1996 = vadd.f32 %v1667, %v1995
  %v1997 = vpop.f32.mrf.mxu0
  %v1998 = vadd.f32 %v1669, %v1997
  %1999 = vmatmul.bf16.gmra.mxu0 %v1347
  %v2000 = vpop.f32.mrf.mxu0
  %v2001 = vadd.f32 %v1672, %v2000
  %v2002 = vpop.f32.mrf.mxu0
  %v2003 = vadd.f32 %v1674, %v2002
  %2004 = vmatmul.bf16.gmra.mxu0 %v1349
  %v2005 = vpop.f32.mrf.mxu0
  %v2006 = vadd.f32 %v1677, %v2005
  %v2007 = vpop.f32.mrf.mxu0
  %v2008 = vadd.f32 %v1679, %v2007
  %2009 = vmatmul.bf16.gmra.mxu0 %v1351
  %v2010 = vpop.f32.mrf.mxu0
  %v2011 = vadd.f32 %v1682, %v2010
  %v2012 = vpop.f32.mrf.mxu0
  %v2013 = vadd.f32 %v1684, %v2012
  %2014 = vmatmul.bf16.gmra.mxu0 %v1353
  %v2015 = vpop.f32.mrf.mxu0
  %v2016 = vadd.f32 %v1687, %v2015
  %v2017 = vpop.f32.mrf.mxu0
  %v2018 = vadd.f32 %v1689, %v2017
  %2019 = vmatmul.bf16.gmra.mxu0 %v1355
  %v2020 = vpop.f32.mrf.mxu0
  %v2021 = vadd.f32 %v1692, %v2020
  %v2022 = vpop.f32.mrf.mxu0
  %v2023 = vadd.f32 %v1694, %v2022
  %2024 = vmatmul.bf16.gmra.mxu0 %v1357
  %v2025 = vpop.f32.mrf.mxu0
  %v2026 = vadd.f32 %v1697, %v2025
  %v2027 = vpop.f32.mrf.mxu0
  %v2028 = vadd.f32 %v1699, %v2027
  %2029 = vmatmul.bf16.gmra.mxu0 %v1359
  %v2030 = vpop.f32.mrf.mxu0
  %v2031 = vadd.f32 %v1702, %v2030
  %v2032 = vpop.f32.mrf.mxu0
  %v2033 = vadd.f32 %v1704, %v2032
  %2034 = vmatmul.bf16.gmra.mxu0 %v1361
  %v2035 = vpop.f32.mrf.mxu0
  %v2036 = vadd.f32 %v1707, %v2035
  %v2037 = vpop.f32.mrf.mxu0
  %v2038 = vadd.f32 %v1709, %v2037
  %2039 = vmatmul.bf16.gmra.mxu0 %v1363
  %v2040 = vpop.f32.mrf.mxu0
  %v2041 = vadd.f32 %v1712, %v2040
  %v2042 = vpop.f32.mrf.mxu0
  %v2043 = vadd.f32 %v1714, %v2042
  %2044 = vmatmul.bf16.gmra.mxu0 %v1365
  %v2045 = vpop.f32.mrf.mxu0
  %v2046 = vadd.f32 %v1717, %v2045
  %v2047 = vpop.f32.mrf.mxu0
  %v2048 = vadd.f32 %v1719, %v2047
  %2049 = vmatmul.bf16.gmra.mxu0 %v1367
  %v2050 = vpop.f32.mrf.mxu0
  %v2051 = vadd.f32 %v1722, %v2050
  %v2052 = vpop.f32.mrf.mxu0
  %v2053 = vadd.f32 %v1724, %v2052
  %2054 = vmatmul.bf16.gmra.mxu0 %v1369
  %v2055 = vpop.f32.mrf.mxu0
  %v2056 = vadd.f32 %v1727, %v2055
  %v2057 = vpop.f32.mrf.mxu0
  %v2058 = vadd.f32 %v1729, %v2057
  %2059 = vmatmul.bf16.gmra.mxu0 %v1371
  %v2060 = vpop.f32.mrf.mxu0
  %v2061 = vadd.f32 %v1732, %v2060
  %v2062 = vpop.f32.mrf.mxu0
  %v2063 = vadd.f32 %v1734, %v2062
  %2064 = vmatmul.bf16.gmra.mxu0 %v1373
  %v2065 = vpop.f32.mrf.mxu0
  %v2066 = vadd.f32 %v1737, %v2065
  %v2067 = vpop.f32.mrf.mxu0
  %v2068 = vadd.f32 %v1739, %v2067
  %2069 = vmatmul.bf16.gmra.mxu0 %v1375
  %v2070 = vpop.f32.mrf.mxu0
  %v2071 = vadd.f32 %v1742, %v2070
  %v2072 = vpop.f32.mrf.mxu0
  %v2073 = vadd.f32 %v1744, %v2072
  %2074 = vmatmul.bf16.gmra.mxu0 %v1377
  %v2075 = vpop.f32.mrf.mxu0
  %v2076 = vadd.f32 %v1747, %v2075
  %v2077 = vpop.f32.mrf.mxu0
  %v2078 = vadd.f32 %v1749, %v2077
  %2079 = vmatmul.bf16.gmra.mxu0 %v1379
  %v2080 = vpop.f32.mrf.mxu0
  %v2081 = vadd.f32 %v1752, %v2080
  %v2082 = vpop.f32.mrf.mxu0
  %v2083 = vadd.f32 %v1754, %v2082
  %2084 = vmatmul.bf16.gmra.mxu0 %v1381
  %v2085 = vpop.f32.mrf.mxu0
  %v2086 = vadd.f32 %v1757, %v2085
  %v2087 = vpop.f32.mrf.mxu0
  %v2088 = vadd.f32 %v1759, %v2087
  %2089 = vmatmul.bf16.gmra.mxu0 %v1383
  %v2090 = vpop.f32.mrf.mxu0
  %v2091 = vadd.f32 %v1762, %v2090
  %v2092 = vpop.f32.mrf.mxu0
  %v2093 = vadd.f32 %v1764, %v2092
  %2094 = vmatmul.bf16.gmra.mxu0 %v1385
  %v2095 = vpop.f32.mrf.mxu0
  %v2096 = vadd.f32 %v1767, %v2095
  %v2097 = vpop.f32.mrf.mxu0
  %v2098 = vadd.f32 %v1769, %v2097
  %2099 = vmatmul.bf16.gmra.mxu0 %v1387
  %v2100 = vpop.f32.mrf.mxu0
  %v2101 = vadd.f32 %v1772, %v2100
  %v2102 = vpop.f32.mrf.mxu0
  %v2103 = vadd.f32 %v1774, %v2102
  %2104 = vmatmul.bf16.gmra.mxu0 %v1389
  %v2105 = vpop.f32.mrf.mxu0
  %v2106 = vadd.f32 %v1777, %v2105
  %v2107 = vpop.f32.mrf.mxu0
  %v2108 = vadd.f32 %v1779, %v2107
  %2109 = vmatmul.bf16.gmra.mxu0 %v1391
  %v2110 = vpop.f32.mrf.mxu0
  %v2111 = vadd.f32 %v1782, %v2110
  %v2112 = vpop.f32.mrf.mxu0
  %v2113 = vadd.f32 %v1784, %v2112
  %2114 = vmatmul.bf16.gmra.mxu0 %v1393
  %v2115 = vpop.f32.mrf.mxu0
  %v2116 = vadd.f32 %v1787, %v2115
  %v2117 = vpop.f32.mrf.mxu0
  %v2118 = vadd.f32 %v1789, %v2117
  %2119 = vmatmul.bf16.gmra.mxu0 %v1395
  %v2120 = vpop.f32.mrf.mxu0
  %v2121 = vadd.f32 %v1792, %v2120
  %v2122 = vpop.f32.mrf.mxu0
  %v2123 = vadd.f32 %v1794, %v2122
  %2124 = vmatmul.bf16.gmra.mxu0 %v1397
  %v2125 = vpop.f32.mrf.mxu0
  %v2126 = vadd.f32 %v1797, %v2125
  %v2127 = vpop.f32.mrf.mxu0
  %v2128 = vadd.f32 %v1799, %v2127
  %2129 = vmatmul.bf16.gmra.mxu0 %v1399
  %v2130 = vpop.f32.mrf.mxu0
  %v2131 = vadd.f32 %v1802, %v2130
  %v2132 = vpop.f32.mrf.mxu0
  %v2133 = vadd.f32 %v1804, %v2132
  %2134 = vmatmul.bf16.gmra.mxu0 %v1401
  %v2135 = vpop.f32.mrf.mxu0
  %v2136 = vadd.f32 %v1807, %v2135
  %v2137 = vpop.f32.mrf.mxu0
  %v2138 = vadd.f32 %v1809, %v2137
  %2139 = vmatmul.bf16.gmra.mxu0 %v1403
  %v2140 = vpop.f32.mrf.mxu0
  %v2141 = vadd.f32 %v1812, %v2140
  %v2142 = vpop.f32.mrf.mxu0
  %v2143 = vadd.f32 %v1814, %v2142
  %2144 = vmatmul.bf16.gmra.mxu0 %v1405
  %v2145 = vpop.f32.mrf.mxu0
  %v2146 = vadd.f32 %v1817, %v2145
  %v2147 = vpop.f32.mrf.mxu0
  %v2148 = vadd.f32 %v1819, %v2147
  %2149 = vmatmul.bf16.gmra.mxu0 %v1407
  %v2150 = vpop.f32.mrf.mxu0
  %v2151 = vadd.f32 %v1822, %v2150
  %v2152 = vpop.f32.mrf.mxu0
  %v2153 = vadd.f32 %v1824, %v2152
  %2154 = vmatmul.bf16.gmra.mxu0 %v1409
  %v2155 = vpop.f32.mrf.mxu0
  %v2156 = vadd.f32 %v1827, %v2155
  %v2157 = vpop.f32.mrf.mxu0
  %v2158 = vadd.f32 %v1829, %v2157
  %2159 = vmatmul.bf16.gmra.mxu0 %v1411
  %v2160 = vpop.f32.mrf.mxu0
  %v2161 = vadd.f32 %v1832, %v2160
  %v2162 = vpop.f32.mrf.mxu0
  %v2163 = vadd.f32 %v1834, %v2162
  %2164 = vmatmul.bf16.gmra.mxu0 %v1413
  %v2165 = vpop.f32.mrf.mxu0
  %v2166 = vadd.f32 %v1837, %v2165
  %v2167 = vpop.f32.mrf.mxu0
  %v2168 = vadd.f32 %v1839, %v2167
  %2169 = vmatmul.bf16.gmra.mxu0 %v1415
  %v2170 = vpop.f32.mrf.mxu0
  %v2171 = vadd.f32 %v1842, %v2170
  %v2172 = vpop.f32.mrf.mxu0
  %v2173 = vadd.f32 %v1844, %v2172
  %2174 = vmatmul.bf16.gmra.mxu0 %v1417
  %v2175 = vpop.f32.mrf.mxu0
  %v2176 = vadd.f32 %v1847, %v2175
  %v2177 = vpop.f32.mrf.mxu0
  %v2178 = vadd.f32 %v1849, %v2177
  %2179 = vmatmul.bf16.gmra.mxu0 %v1419
  %v2180 = vpop.f32.mrf.mxu0
  %v2181 = vadd.f32 %v1852, %v2180
  %v2182 = vpop.f32.mrf.mxu0
  %v2183 = vadd.f32 %v1854, %v2182
  %2184 = vmatmul.bf16.gmra.mxu0 %v1421
  %v2185 = vpop.f32.mrf.mxu0
  %v2186 = vadd.f32 %v1857, %v2185
  %v2187 = vpop.f32.mrf.mxu0
  %v2188 = vadd.f32 %v1859, %v2187
  %2189 = vmatmul.bf16.gmra.mxu0 %v1423
  %v2190 = vpop.f32.mrf.mxu0
  %v2191 = vadd.f32 %v1862, %v2190
  %v2192 = vpop.f32.mrf.mxu0
  %v2193 = vadd.f32 %v1864, %v2192
  %2194 = vmatmul.bf16.gmra.mxu0 %v1425
  %v2195 = vpop.f32.mrf.mxu0
  %v2196 = vadd.f32 %v1867, %v2195
  %v2197 = vpop.f32.mrf.mxu0
  %v2198 = vadd.f32 %v1869, %v2197
  %2199 = vmatmul.bf16.gmra.mxu0 %v1427
  %v2200 = vpop.f32.mrf.mxu0
  %v2201 = vadd.f32 %v1872, %v2200
  %v2202 = vpop.f32.mrf.mxu0
  %v2203 = vadd.f32 %v1874, %v2202
  %2204 = vmatmul.bf16.gmra.mxu0 %v1429
  %v2205 = vpop.f32.mrf.mxu0
  %v2206 = vadd.f32 %v1877, %v2205
  %v2207 = vpop.f32.mrf.mxu0
  %v2208 = vadd.f32 %v1879, %v2207
  %2209 = vmatmul.bf16.gmra.mxu0 %v1431
  %v2210 = vpop.f32.mrf.mxu0
  %v2211 = vadd.f32 %v1882, %v2210
  %v2212 = vpop.f32.mrf.mxu0
  %v2213 = vadd.f32 %v1884, %v2212
  %2214 = vmatmul.bf16.gmra.mxu0 %v1433
  %v2215 = vpop.f32.mrf.mxu0
  %v2216 = vadd.f32 %v1887, %v2215
  %v2217 = vpop.f32.mrf.mxu0
  %v2218 = vadd.f32 %v1889, %v2217
  %2219 = vdwg.mxu0
  %v2220 = vpack.c.bf16 %v1901, %v1901
  %v2221 = vpack.c.bf16 %v1903, %v1903
  %v2222 = vpack.c.bf16 %v1906, %v1906
  %v2223 = vpack.c.bf16 %v1908, %v1908
  %v2224 = vpack.c.bf16 %v1911, %v1911
  %v2225 = vpack.c.bf16 %v1913, %v1913
  %v2226 = vpack.c.bf16 %v1916, %v1916
  %v2227 = vpack.c.bf16 %v1918, %v1918
  %v2228 = vpack.c.bf16 %v1921, %v1921
  %v2229 = vpack.c.bf16 %v1923, %v1923
  %v2230 = vpack.c.bf16 %v1926, %v1926
  %v2231 = vpack.c.bf16 %v1928, %v1928
  %v2232 = vpack.c.bf16 %v1931, %v1931
  %v2233 = vpack.c.bf16 %v1933, %v1933
  %v2234 = vpack.c.bf16 %v1936, %v1936
  %v2235 = vpack.c.bf16 %v1938, %v1938
  %v2236 = vpack.c.bf16 %v1941, %v1941
  %v2237 = vpack.c.bf16 %v1943, %v1943
  %v2238 = vpack.c.bf16 %v1946, %v1946
  %v2239 = vpack.c.bf16 %v1948, %v1948
  %v2240 = vpack.c.bf16 %v1951, %v1951
  %v2241 = vpack.c.bf16 %v1953, %v1953
  %v2242 = vpack.c.bf16 %v1956, %v1956
  %v2243 = vpack.c.bf16 %v1958, %v1958
  %v2244 = vpack.c.bf16 %v1961, %v1961
  %v2245 = vpack.c.bf16 %v1963, %v1963
  %v2246 = vpack.c.bf16 %v1966, %v1966
  %v2247 = vpack.c.bf16 %v1968, %v1968
  %v2248 = vpack.c.bf16 %v1971, %v1971
  %v2249 = vpack.c.bf16 %v1973, %v1973
  %v2250 = vpack.c.bf16 %v1976, %v1976
  %v2251 = vpack.c.bf16 %v1978, %v1978
  %v2252 = vpack.c.bf16 %v1981, %v1981
  %v2253 = vpack.c.bf16 %v1983, %v1983
  %v2254 = vpack.c.bf16 %v1986, %v1986
  %v2255 = vpack.c.bf16 %v1988, %v1988
  %v2256 = vpack.c.bf16 %v1991, %v1991
  %v2257 = vpack.c.bf16 %v1993, %v1993
  %v2258 = vpack.c.bf16 %v1996, %v1996
  %v2259 = vpack.c.bf16 %v1998, %v1998
  %v2260 = vpack.c.bf16 %v2001, %v2001
  %v2261 = vpack.c.bf16 %v2003, %v2003
  %v2262 = vpack.c.bf16 %v2006, %v2006
  %v2263 = vpack.c.bf16 %v2008, %v2008
  %v2264 = vpack.c.bf16 %v2011, %v2011
  %v2265 = vpack.c.bf16 %v2013, %v2013
  %v2266 = vpack.c.bf16 %v2016, %v2016
  %v2267 = vpack.c.bf16 %v2018, %v2018
  %v2268 = vpack.c.bf16 %v2021, %v2021
  %v2269 = vpack.c.bf16 %v2023, %v2023
  %v2270 = vpack.c.bf16 %v2026, %v2026
  %v2271 = vpack.c.bf16 %v2028, %v2028
  %v2272 = vpack.c.bf16 %v2031, %v2031
  %v2273 = vpack.c.bf16 %v2033, %v2033
  %v2274 = vpack.c.bf16 %v2036, %v2036
  %v2275 = vpack.c.bf16 %v2038, %v2038
  %v2276 = vpack.c.bf16 %v2041, %v2041
  %v2277 = vpack.c.bf16 %v2043, %v2043
  %v2278 = vpack.c.bf16 %v2046, %v2046
  %v2279 = vpack.c.bf16 %v2048, %v2048
  %v2280 = vpack.c.bf16 %v2051, %v2051
  %v2281 = vpack.c.bf16 %v2053, %v2053
  %v2282 = vpack.c.bf16 %v2056, %v2056
  %v2283 = vpack.c.bf16 %v2058, %v2058
  %v2284 = vpack.c.bf16 %v2061, %v2061
  %v2285 = vpack.c.bf16 %v2063, %v2063
  %v2286 = vpack.c.bf16 %v2066, %v2066
  %v2287 = vpack.c.bf16 %v2068, %v2068
  %v2288 = vpack.c.bf16 %v2071, %v2071
  %v2289 = vpack.c.bf16 %v2073, %v2073
  %v2290 = vpack.c.bf16 %v2076, %v2076
  %v2291 = vpack.c.bf16 %v2078, %v2078
  %v2292 = vpack.c.bf16 %v2081, %v2081
  %v2293 = vpack.c.bf16 %v2083, %v2083
  %v2294 = vpack.c.bf16 %v2086, %v2086
  %v2295 = vpack.c.bf16 %v2088, %v2088
  %v2296 = vpack.c.bf16 %v2091, %v2091
  %v2297 = vpack.c.bf16 %v2093, %v2093
  %v2298 = vpack.c.bf16 %v2096, %v2096
  %v2299 = vpack.c.bf16 %v2098, %v2098
  %v2300 = vpack.c.bf16 %v2101, %v2101
  %v2301 = vpack.c.bf16 %v2103, %v2103
  %v2302 = vpack.c.bf16 %v2106, %v2106
  %v2303 = vpack.c.bf16 %v2108, %v2108
  %v2304 = vpack.c.bf16 %v2111, %v2111
  %v2305 = vpack.c.bf16 %v2113, %v2113
  %v2306 = vpack.c.bf16 %v2116, %v2116
  %v2307 = vpack.c.bf16 %v2118, %v2118
  %v2308 = vpack.c.bf16 %v2121, %v2121
  %v2309 = vpack.c.bf16 %v2123, %v2123
  %v2310 = vpack.c.bf16 %v2126, %v2126
  %v2311 = vpack.c.bf16 %v2128, %v2128
  %v2312 = vpack.c.bf16 %v2131, %v2131
  %v2313 = vpack.c.bf16 %v2133, %v2133
  %v2314 = vpack.c.bf16 %v2136, %v2136
  %v2315 = vpack.c.bf16 %v2138, %v2138
  %v2316 = vpack.c.bf16 %v2141, %v2141
  %v2317 = vpack.c.bf16 %v2143, %v2143
  %v2318 = vpack.c.bf16 %v2146, %v2146
  %v2319 = vpack.c.bf16 %v2148, %v2148
  %v2320 = vpack.c.bf16 %v2151, %v2151
  %v2321 = vpack.c.bf16 %v2153, %v2153
  %v2322 = vpack.c.bf16 %v2156, %v2156
  %v2323 = vpack.c.bf16 %v2158, %v2158
  %v2324 = vpack.c.bf16 %v2161, %v2161
  %v2325 = vpack.c.bf16 %v2163, %v2163
  %v2326 = vpack.c.bf16 %v2166, %v2166
  %v2327 = vpack.c.bf16 %v2168, %v2168
  %v2328 = vpack.c.bf16 %v2171, %v2171
  %v2329 = vpack.c.bf16 %v2173, %v2173
  %v2330 = vpack.c.bf16 %v2176, %v2176
  %v2331 = vpack.c.bf16 %v2178, %v2178
  %v2332 = vpack.c.bf16 %v2181, %v2181
  %v2333 = vpack.c.bf16 %v2183, %v2183
  %v2334 = vpack.c.bf16 %v2186, %v2186
  %v2335 = vpack.c.bf16 %v2188, %v2188
  %v2336 = vpack.c.bf16 %v2191, %v2191
  %v2337 = vpack.c.bf16 %v2193, %v2193
  %v2338 = vpack.c.bf16 %v2196, %v2196
  %v2339 = vpack.c.bf16 %v2198, %v2198
  %v2340 = vpack.c.bf16 %v2201, %v2201
  %v2341 = vpack.c.bf16 %v2203, %v2203
  %v2342 = vpack.c.bf16 %v2206, %v2206
  %v2343 = vpack.c.bf16 %v2208, %v2208
  %v2344 = vpack.c.bf16 %v2211, %v2211
  %v2345 = vpack.c.bf16 %v2213, %v2213
  %v2346 = vpack.c.bf16 %v2216, %v2216
  %v2347 = vpack.c.bf16 %v2218, %v2218
  %v2356 = vunpack.c.l.b16 %v2220
  %v2357 = vunpack.c.l.b16 %v2221
  %v2358 = vunpack.c.l.b16 %v2222
  %v2359 = vunpack.c.l.b16 %v2223
  %v2360 = vunpack.c.l.b16 %v2224
  %v2361 = vunpack.c.l.b16 %v2225
  %v2362 = vunpack.c.l.b16 %v2226
  %v2363 = vunpack.c.l.b16 %v2227
  %v2364 = vpack.c.b16 %v2357, %v2356
  %v2365 = vpack.c.b16 %v2359, %v2358
  %v2366 = vpack.c.b16 %v2361, %v2360
  %v2367 = vpack.c.b16 %v2363, %v2362
  %v2376 = vunpack.c.l.b16 %v2228
  %v2377 = vunpack.c.l.b16 %v2229
  %v2378 = vunpack.c.l.b16 %v2230
  %v2379 = vunpack.c.l.b16 %v2231
  %v2380 = vunpack.c.l.b16 %v2232
  %v2381 = vunpack.c.l.b16 %v2233
  %v2382 = vunpack.c.l.b16 %v2234
  %v2383 = vunpack.c.l.b16 %v2235
  %v2384 = vpack.c.b16 %v2377, %v2376
  %v2385 = vpack.c.b16 %v2379, %v2378
  %v2386 = vpack.c.b16 %v2381, %v2380
  %v2387 = vpack.c.b16 %v2383, %v2382
  %2388 = vrot.lane.b32.xlu0 %v2384, 64
  %v2389 = vpop.permute.xlu0 %2388
  %2390 = vrot.lane.b32.xlu0 %v2385, 64
  %v2391 = vpop.permute.xlu0 %2390
  %2392 = vrot.lane.b32.xlu0 %v2386, 64
  %v2393 = vpop.permute.xlu0 %2392
  %2394 = vrot.lane.b32.xlu0 %v2387, 64
  %v2395 = vpop.permute.xlu0 %2394
  %v2404 = vunpack.c.l.b16 %v2236
  %v2405 = vunpack.c.l.b16 %v2237
  %v2406 = vunpack.c.l.b16 %v2238
  %v2407 = vunpack.c.l.b16 %v2239
  %v2408 = vunpack.c.l.b16 %v2240
  %v2409 = vunpack.c.l.b16 %v2241
  %v2410 = vunpack.c.l.b16 %v2242
  %v2411 = vunpack.c.l.b16 %v2243
  %v2412 = vpack.c.b16 %v2405, %v2404
  %v2413 = vpack.c.b16 %v2407, %v2406
  %v2414 = vpack.c.b16 %v2409, %v2408
  %v2415 = vpack.c.b16 %v2411, %v2410
  %v2424 = vunpack.c.l.b16 %v2244
  %v2425 = vunpack.c.l.b16 %v2245
  %v2426 = vunpack.c.l.b16 %v2246
  %v2427 = vunpack.c.l.b16 %v2247
  %v2428 = vunpack.c.l.b16 %v2248
  %v2429 = vunpack.c.l.b16 %v2249
  %v2430 = vunpack.c.l.b16 %v2250
  %v2431 = vunpack.c.l.b16 %v2251
  %v2432 = vpack.c.b16 %v2425, %v2424
  %v2433 = vpack.c.b16 %v2427, %v2426
  %v2434 = vpack.c.b16 %v2429, %v2428
  %v2435 = vpack.c.b16 %v2431, %v2430
  %2436 = vrot.lane.b32.xlu0 %v2432, 64
  %v2437 = vpop.permute.xlu0 %2436
  %2438 = vrot.lane.b32.xlu0 %v2433, 64
  %v2439 = vpop.permute.xlu0 %2438
  %2440 = vrot.lane.b32.xlu0 %v2434, 64
  %v2441 = vpop.permute.xlu0 %2440
  %2442 = vrot.lane.b32.xlu0 %v2435, 64
  %v2443 = vpop.permute.xlu0 %2442
  %v2452 = vunpack.c.l.b16 %v2252
  %v2453 = vunpack.c.l.b16 %v2253
  %v2454 = vunpack.c.l.b16 %v2254
  %v2455 = vunpack.c.l.b16 %v2255
  %v2456 = vunpack.c.l.b16 %v2256
  %v2457 = vunpack.c.l.b16 %v2257
  %v2458 = vunpack.c.l.b16 %v2258
  %v2459 = vunpack.c.l.b16 %v2259
  %v2460 = vpack.c.b16 %v2453, %v2452
  %v2461 = vpack.c.b16 %v2455, %v2454
  %v2462 = vpack.c.b16 %v2457, %v2456
  %v2463 = vpack.c.b16 %v2459, %v2458
  %v2472 = vunpack.c.l.b16 %v2260
  %v2473 = vunpack.c.l.b16 %v2261
  %v2474 = vunpack.c.l.b16 %v2262
  %v2475 = vunpack.c.l.b16 %v2263
  %v2476 = vunpack.c.l.b16 %v2264
  %v2477 = vunpack.c.l.b16 %v2265
  %v2478 = vunpack.c.l.b16 %v2266
  %v2479 = vunpack.c.l.b16 %v2267
  %v2480 = vpack.c.b16 %v2473, %v2472
  %v2481 = vpack.c.b16 %v2475, %v2474
  %v2482 = vpack.c.b16 %v2477, %v2476
  %v2483 = vpack.c.b16 %v2479, %v2478
  %2484 = vrot.lane.b32.xlu0 %v2480, 64
  %v2485 = vpop.permute.xlu0 %2484
  %2486 = vrot.lane.b32.xlu0 %v2481, 64
  %v2487 = vpop.permute.xlu0 %2486
  %2488 = vrot.lane.b32.xlu0 %v2482, 64
  %v2489 = vpop.permute.xlu0 %2488
  %2490 = vrot.lane.b32.xlu0 %v2483, 64
  %v2491 = vpop.permute.xlu0 %2490
  %v2500 = vunpack.c.l.b16 %v2268
  %v2501 = vunpack.c.l.b16 %v2269
  %v2502 = vunpack.c.l.b16 %v2270
  %v2503 = vunpack.c.l.b16 %v2271
  %v2504 = vunpack.c.l.b16 %v2272
  %v2505 = vunpack.c.l.b16 %v2273
  %v2506 = vunpack.c.l.b16 %v2274
  %v2507 = vunpack.c.l.b16 %v2275
  %v2508 = vpack.c.b16 %v2501, %v2500
  %v2509 = vpack.c.b16 %v2503, %v2502
  %v2510 = vpack.c.b16 %v2505, %v2504
  %v2511 = vpack.c.b16 %v2507, %v2506
  %v2520 = vunpack.c.l.b16 %v2276
  %v2521 = vunpack.c.l.b16 %v2277
  %v2522 = vunpack.c.l.b16 %v2278
  %v2523 = vunpack.c.l.b16 %v2279
  %v2524 = vunpack.c.l.b16 %v2280
  %v2525 = vunpack.c.l.b16 %v2281
  %v2526 = vunpack.c.l.b16 %v2282
  %v2527 = vunpack.c.l.b16 %v2283
  %v2528 = vpack.c.b16 %v2521, %v2520
  %v2529 = vpack.c.b16 %v2523, %v2522
  %v2530 = vpack.c.b16 %v2525, %v2524
  %v2531 = vpack.c.b16 %v2527, %v2526
  %2532 = vrot.lane.b32.xlu0 %v2528, 64
  %v2533 = vpop.permute.xlu0 %2532
  %2534 = vrot.lane.b32.xlu0 %v2529, 64
  %v2535 = vpop.permute.xlu0 %2534
  %2536 = vrot.lane.b32.xlu0 %v2530, 64
  %v2537 = vpop.permute.xlu0 %2536
  %2538 = vrot.lane.b32.xlu0 %v2531, 64
  %v2539 = vpop.permute.xlu0 %2538
  %v2548 = vunpack.c.l.b16 %v2284
  %v2549 = vunpack.c.l.b16 %v2285
  %v2550 = vunpack.c.l.b16 %v2286
  %v2551 = vunpack.c.l.b16 %v2287
  %v2552 = vunpack.c.l.b16 %v2288
  %v2553 = vunpack.c.l.b16 %v2289
  %v2554 = vunpack.c.l.b16 %v2290
  %v2555 = vunpack.c.l.b16 %v2291
  %v2556 = vpack.c.b16 %v2549, %v2548
  %v2557 = vpack.c.b16 %v2551, %v2550
  %v2558 = vpack.c.b16 %v2553, %v2552
  %v2559 = vpack.c.b16 %v2555, %v2554
  %v2568 = vunpack.c.l.b16 %v2292
  %v2569 = vunpack.c.l.b16 %v2293
  %v2570 = vunpack.c.l.b16 %v2294
  %v2571 = vunpack.c.l.b16 %v2295
  %v2572 = vunpack.c.l.b16 %v2296
  %v2573 = vunpack.c.l.b16 %v2297
  %v2574 = vunpack.c.l.b16 %v2298
  %v2575 = vunpack.c.l.b16 %v2299
  %v2576 = vpack.c.b16 %v2569, %v2568
  %v2577 = vpack.c.b16 %v2571, %v2570
  %v2578 = vpack.c.b16 %v2573, %v2572
  %v2579 = vpack.c.b16 %v2575, %v2574
  %2580 = vrot.lane.b32.xlu0 %v2576, 64
  %v2581 = vpop.permute.xlu0 %2580
  %2582 = vrot.lane.b32.xlu0 %v2577, 64
  %v2583 = vpop.permute.xlu0 %2582
  %2584 = vrot.lane.b32.xlu0 %v2578, 64
  %v2585 = vpop.permute.xlu0 %2584
  %2586 = vrot.lane.b32.xlu0 %v2579, 64
  %v2587 = vpop.permute.xlu0 %2586
  %v2596 = vunpack.c.l.b16 %v2300
  %v2597 = vunpack.c.l.b16 %v2301
  %v2598 = vunpack.c.l.b16 %v2302
  %v2599 = vunpack.c.l.b16 %v2303
  %v2600 = vunpack.c.l.b16 %v2304
  %v2601 = vunpack.c.l.b16 %v2305
  %v2602 = vunpack.c.l.b16 %v2306
  %v2603 = vunpack.c.l.b16 %v2307
  %v2604 = vpack.c.b16 %v2597, %v2596
  %v2605 = vpack.c.b16 %v2599, %v2598
  %v2606 = vpack.c.b16 %v2601, %v2600
  %v2607 = vpack.c.b16 %v2603, %v2602
  %v2616 = vunpack.c.l.b16 %v2308
  %v2617 = vunpack.c.l.b16 %v2309
  %v2618 = vunpack.c.l.b16 %v2310
  %v2619 = vunpack.c.l.b16 %v2311
  %v2620 = vunpack.c.l.b16 %v2312
  %v2621 = vunpack.c.l.b16 %v2313
  %v2622 = vunpack.c.l.b16 %v2314
  %v2623 = vunpack.c.l.b16 %v2315
  %v2624 = vpack.c.b16 %v2617, %v2616
  %v2625 = vpack.c.b16 %v2619, %v2618
  %v2626 = vpack.c.b16 %v2621, %v2620
  %v2627 = vpack.c.b16 %v2623, %v2622
  %2628 = vrot.lane.b32.xlu0 %v2624, 64
  %v2629 = vpop.permute.xlu0 %2628
  %2630 = vrot.lane.b32.xlu0 %v2625, 64
  %v2631 = vpop.permute.xlu0 %2630
  %2632 = vrot.lane.b32.xlu0 %v2626, 64
  %v2633 = vpop.permute.xlu0 %2632
  %2634 = vrot.lane.b32.xlu0 %v2627, 64
  %v2635 = vpop.permute.xlu0 %2634
  %v2644 = vunpack.c.l.b16 %v2316
  %v2645 = vunpack.c.l.b16 %v2317
  %v2646 = vunpack.c.l.b16 %v2318
  %v2647 = vunpack.c.l.b16 %v2319
  %v2648 = vunpack.c.l.b16 %v2320
  %v2649 = vunpack.c.l.b16 %v2321
  %v2650 = vunpack.c.l.b16 %v2322
  %v2651 = vunpack.c.l.b16 %v2323
  %v2652 = vpack.c.b16 %v2645, %v2644
  %v2653 = vpack.c.b16 %v2647, %v2646
  %v2654 = vpack.c.b16 %v2649, %v2648
  %v2655 = vpack.c.b16 %v2651, %v2650
  %v2664 = vunpack.c.l.b16 %v2324
  %v2665 = vunpack.c.l.b16 %v2325
  %v2666 = vunpack.c.l.b16 %v2326
  %v2667 = vunpack.c.l.b16 %v2327
  %v2668 = vunpack.c.l.b16 %v2328
  %v2669 = vunpack.c.l.b16 %v2329
  %v2670 = vunpack.c.l.b16 %v2330
  %v2671 = vunpack.c.l.b16 %v2331
  %v2672 = vpack.c.b16 %v2665, %v2664
  %v2673 = vpack.c.b16 %v2667, %v2666
  %v2674 = vpack.c.b16 %v2669, %v2668
  %v2675 = vpack.c.b16 %v2671, %v2670
  %2676 = vrot.lane.b32.xlu0 %v2672, 64
  %v2677 = vpop.permute.xlu0 %2676
  %2678 = vrot.lane.b32.xlu0 %v2673, 64
  %v2679 = vpop.permute.xlu0 %2678
  %2680 = vrot.lane.b32.xlu0 %v2674, 64
  %v2681 = vpop.permute.xlu0 %2680
  %2682 = vrot.lane.b32.xlu0 %v2675, 64
  %v2683 = vpop.permute.xlu0 %2682
  %v2692 = vunpack.c.l.b16 %v2332
  %v2693 = vunpack.c.l.b16 %v2333
  %v2694 = vunpack.c.l.b16 %v2334
  %v2695 = vunpack.c.l.b16 %v2335
  %v2696 = vunpack.c.l.b16 %v2336
  %v2697 = vunpack.c.l.b16 %v2337
  %v2698 = vunpack.c.l.b16 %v2338
  %v2699 = vunpack.c.l.b16 %v2339
  %v2700 = vpack.c.b16 %v2693, %v2692
  %v2701 = vpack.c.b16 %v2695, %v2694
  %v2702 = vpack.c.b16 %v2697, %v2696
  %v2703 = vpack.c.b16 %v2699, %v2698
  %v2712 = vunpack.c.l.b16 %v2340
  %v2713 = vunpack.c.l.b16 %v2341
  %v2714 = vunpack.c.l.b16 %v2342
  %v2715 = vunpack.c.l.b16 %v2343
  %v2716 = vunpack.c.l.b16 %v2344
  %v2717 = vunpack.c.l.b16 %v2345
  %v2718 = vunpack.c.l.b16 %v2346
  %v2719 = vunpack.c.l.b16 %v2347
  %v2720 = vpack.c.b16 %v2713, %v2712
  %v2721 = vpack.c.b16 %v2715, %v2714
  %v2722 = vpack.c.b16 %v2717, %v2716
  %v2723 = vpack.c.b16 %v2719, %v2718
  %2724 = vrot.lane.b32.xlu0 %v2720, 64
  %v2725 = vpop.permute.xlu0 %2724
  %2726 = vrot.lane.b32.xlu0 %v2721, 64
  %v2727 = vpop.permute.xlu0 %2726
  %2728 = vrot.lane.b32.xlu0 %v2722, 64
  %v2729 = vpop.permute.xlu0 %2728
  %2730 = vrot.lane.b32.xlu0 %v2723, 64
  %v2731 = vpop.permute.xlu0 %2730
  %v2734 = vsel %vm681, %v2364, %v2389
  %v2738 = vsel %vm681, %v2365, %v2391
  %v2742 = vsel %vm681, %v2366, %v2393
  %v2746 = vsel %vm681, %v2367, %v2395
  %v2750 = vsel %vm681, %v2412, %v2437
  %v2754 = vsel %vm681, %v2413, %v2439
  %v2758 = vsel %vm681, %v2414, %v2441
  %v2762 = vsel %vm681, %v2415, %v2443
  %v2766 = vsel %vm681, %v2460, %v2485
  %v2770 = vsel %vm681, %v2461, %v2487
  %v2774 = vsel %vm681, %v2462, %v2489
  %v2778 = vsel %vm681, %v2463, %v2491
  %v2782 = vsel %vm681, %v2508, %v2533
  %v2786 = vsel %vm681, %v2509, %v2535
  %v2790 = vsel %vm681, %v2510, %v2537
  %v2794 = vsel %vm681, %v2511, %v2539
  %v2798 = vsel %vm681, %v2556, %v2581
  %v2802 = vsel %vm681, %v2557, %v2583
  %v2806 = vsel %vm681, %v2558, %v2585
  %v2810 = vsel %vm681, %v2559, %v2587
  %v2814 = vsel %vm681, %v2604, %v2629
  %v2818 = vsel %vm681, %v2605, %v2631
  %v2822 = vsel %vm681, %v2606, %v2633
  %v2826 = vsel %vm681, %v2607, %v2635
  %v2830 = vsel %vm681, %v2652, %v2677
  %v2834 = vsel %vm681, %v2653, %v2679
  %v2838 = vsel %vm681, %v2654, %v2681
  %v2842 = vsel %vm681, %v2655, %v2683
  %v2846 = vsel %vm681, %v2700, %v2725
  %v2850 = vsel %vm681, %v2701, %v2727
  %v2854 = vsel %vm681, %v2702, %v2729
  %v2858 = vsel %vm681, %v2703, %v2731
  %2860 = vrot.lane.b32.xlu0 %v2364, 64
  %v2861 = vpop.permute.xlu0 %2860
  %2862 = vrot.lane.b32.xlu0 %v2365, 64
  %v2863 = vpop.permute.xlu0 %2862
  %2864 = vrot.lane.b32.xlu0 %v2366, 64
  %v2865 = vpop.permute.xlu0 %2864
  %2866 = vrot.lane.b32.xlu0 %v2367, 64
  %v2867 = vpop.permute.xlu0 %2866
  %2868 = vrot.lane.b32.xlu0 %v2412, 64
  %v2869 = vpop.permute.xlu0 %2868
  %2870 = vrot.lane.b32.xlu0 %v2413, 64
  %v2871 = vpop.permute.xlu0 %2870
  %2872 = vrot.lane.b32.xlu0 %v2414, 64
  %v2873 = vpop.permute.xlu0 %2872
  %2874 = vrot.lane.b32.xlu0 %v2415, 64
  %v2875 = vpop.permute.xlu0 %2874
  %2876 = vrot.lane.b32.xlu0 %v2460, 64
  %v2877 = vpop.permute.xlu0 %2876
  %2878 = vrot.lane.b32.xlu0 %v2461, 64
  %v2879 = vpop.permute.xlu0 %2878
  %2880 = vrot.lane.b32.xlu0 %v2462, 64
  %v2881 = vpop.permute.xlu0 %2880
  %2882 = vrot.lane.b32.xlu0 %v2463, 64
  %v2883 = vpop.permute.xlu0 %2882
  %2884 = vrot.lane.b32.xlu0 %v2508, 64
  %v2885 = vpop.permute.xlu0 %2884
  %2886 = vrot.lane.b32.xlu0 %v2509, 64
  %v2887 = vpop.permute.xlu0 %2886
  %2888 = vrot.lane.b32.xlu0 %v2510, 64
  %v2889 = vpop.permute.xlu0 %2888
  %2890 = vrot.lane.b32.xlu0 %v2511, 64
  %v2891 = vpop.permute.xlu0 %2890
  %2892 = vrot.lane.b32.xlu0 %v2556, 64
  %v2893 = vpop.permute.xlu0 %2892
  %2894 = vrot.lane.b32.xlu0 %v2557, 64
  %v2895 = vpop.permute.xlu0 %2894
  %2896 = vrot.lane.b32.xlu0 %v2558, 64
  %v2897 = vpop.permute.xlu0 %2896
  %2898 = vrot.lane.b32.xlu0 %v2559, 64
  %v2899 = vpop.permute.xlu0 %2898
  %2900 = vrot.lane.b32.xlu0 %v2604, 64
  %v2901 = vpop.permute.xlu0 %2900
  %2902 = vrot.lane.b32.xlu0 %v2605, 64
  %v2903 = vpop.permute.xlu0 %2902
  %2904 = vrot.lane.b32.xlu0 %v2606, 64
  %v2905 = vpop.permute.xlu0 %2904
  %2906 = vrot.lane.b32.xlu0 %v2607, 64
  %v2907 = vpop.permute.xlu0 %2906
  %2908 = vrot.lane.b32.xlu0 %v2652, 64
  %v2909 = vpop.permute.xlu0 %2908
  %2910 = vrot.lane.b32.xlu0 %v2653, 64
  %v2911 = vpop.permute.xlu0 %2910
  %2912 = vrot.lane.b32.xlu0 %v2654, 64
  %v2913 = vpop.permute.xlu0 %2912
  %2914 = vrot.lane.b32.xlu0 %v2655, 64
  %v2915 = vpop.permute.xlu0 %2914
  %2916 = vrot.lane.b32.xlu0 %v2700, 64
  %v2917 = vpop.permute.xlu0 %2916
  %2918 = vrot.lane.b32.xlu0 %v2701, 64
  %v2919 = vpop.permute.xlu0 %2918
  %2920 = vrot.lane.b32.xlu0 %v2702, 64
  %v2921 = vpop.permute.xlu0 %2920
  %2922 = vrot.lane.b32.xlu0 %v2703, 64
  %v2923 = vpop.permute.xlu0 %2922
  %v2926 = vsel %vm681, %v2861, %v2384
  %v2930 = vsel %vm681, %v2863, %v2385
  %v2934 = vsel %vm681, %v2865, %v2386
  %v2938 = vsel %vm681, %v2867, %v2387
  %v2942 = vsel %vm681, %v2869, %v2432
  %v2946 = vsel %vm681, %v2871, %v2433
  %v2950 = vsel %vm681, %v2873, %v2434
  %v2954 = vsel %vm681, %v2875, %v2435
  %v2958 = vsel %vm681, %v2877, %v2480
  %v2962 = vsel %vm681, %v2879, %v2481
  %v2966 = vsel %vm681, %v2881, %v2482
  %v2970 = vsel %vm681, %v2883, %v2483
  %v2974 = vsel %vm681, %v2885, %v2528
  %v2978 = vsel %vm681, %v2887, %v2529
  %v2982 = vsel %vm681, %v2889, %v2530
  %v2986 = vsel %vm681, %v2891, %v2531
  %v2990 = vsel %vm681, %v2893, %v2576
  %v2994 = vsel %vm681, %v2895, %v2577
  %v2998 = vsel %vm681, %v2897, %v2578
  %v3002 = vsel %vm681, %v2899, %v2579
  %v3006 = vsel %vm681, %v2901, %v2624
  %v3010 = vsel %vm681, %v2903, %v2625
  %v3014 = vsel %vm681, %v2905, %v2626
  %v3018 = vsel %vm681, %v2907, %v2627
  %v3022 = vsel %vm681, %v2909, %v2672
  %v3026 = vsel %vm681, %v2911, %v2673
  %v3030 = vsel %vm681, %v2913, %v2674
  %v3034 = vsel %vm681, %v2915, %v2675
  %v3038 = vsel %vm681, %v2917, %v2720
  %v3042 = vsel %vm681, %v2919, %v2721
  %v3046 = vsel %vm681, %v2921, %v2722
  %v3050 = vsel %vm681, %v2923, %v2723
  %v3052 = vld [vmem:[%s3] sm:$0xf]
  %v3053 = vld [vmem:[%s3 + $0x4] sm:$0xf]
  %v3054 = vld [vmem:[%s3 + $0x8] sm:$0xf]
  %v3055 = vld [vmem:[%s3 + $0xc] sm:$0xf]
  %v3056 = vld [vmem:[%s3 + $0x10] sm:$0xf]
  %v3057 = vld [vmem:[%s3 + $0x14] sm:$0xf]
  %v3058 = vld [vmem:[%s3 + $0x18] sm:$0xf]
  %v3059 = vld [vmem:[%s3 + $0x1c] sm:$0xf]
  %v3060 = vld [vmem:[%s3 + $0x20] sm:$0xf]
  %v3061 = vld [vmem:[%s3 + $0x24] sm:$0xf]
  %v3062 = vld [vmem:[%s3 + $0x28] sm:$0xf]
  %v3063 = vld [vmem:[%s3 + $0x2c] sm:$0xf]
  %v3064 = vld [vmem:[%s3 + $0x30] sm:$0xf]
  %v3065 = vld [vmem:[%s3 + $0x34] sm:$0xf]
  %v3066 = vld [vmem:[%s3 + $0x38] sm:$0xf]
  %v3067 = vld [vmem:[%s3 + $0x3c] sm:$0xf]
  %v3068 = vld [vmem:[%s3 + $0x40] sm:$0xf]
  %v3069 = vld [vmem:[%s3 + $0x44] sm:$0xf]
  %v3070 = vld [vmem:[%s3 + $0x48] sm:$0xf]
  %v3071 = vld [vmem:[%s3 + $0x4c] sm:$0xf]
  %v3072 = vld [vmem:[%s3 + $0x50] sm:$0xf]
  %v3073 = vld [vmem:[%s3 + $0x54] sm:$0xf]
  %v3074 = vld [vmem:[%s3 + $0x58] sm:$0xf]
  %v3075 = vld [vmem:[%s3 + $0x5c] sm:$0xf]
  %v3076 = vld [vmem:[%s3 + $0x60] sm:$0xf]
  %v3077 = vld [vmem:[%s3 + $0x64] sm:$0xf]
  %v3078 = vld [vmem:[%s3 + $0x68] sm:$0xf]
  %v3079 = vld [vmem:[%s3 + $0x6c] sm:$0xf]
  %v3080 = vld [vmem:[%s3 + $0x70] sm:$0xf]
  %v3081 = vld [vmem:[%s3 + $0x74] sm:$0xf]
  %v3082 = vld [vmem:[%s3 + $0x78] sm:$0xf]
  %v3083 = vld [vmem:[%s3 + $0x7c] sm:$0xf]
  %v3084 = vld [vmem:[%s3 + $0x80] sm:$0xf]
  %v3085 = vld [vmem:[%s3 + $0x84] sm:$0xf]
  %v3086 = vld [vmem:[%s3 + $0x88] sm:$0xf]
  %v3087 = vld [vmem:[%s3 + $0x8c] sm:$0xf]
  %v3088 = vld [vmem:[%s3 + $0x90] sm:$0xf]
  %v3089 = vld [vmem:[%s3 + $0x94] sm:$0xf]
  %v3090 = vld [vmem:[%s3 + $0x98] sm:$0xf]
  %v3091 = vld [vmem:[%s3 + $0x9c] sm:$0xf]
  %v3092 = vld [vmem:[%s3 + $0xa0] sm:$0xf]
  %v3093 = vld [vmem:[%s3 + $0xa4] sm:$0xf]
  %v3094 = vld [vmem:[%s3 + $0xa8] sm:$0xf]
  %v3095 = vld [vmem:[%s3 + $0xac] sm:$0xf]
  %v3096 = vld [vmem:[%s3 + $0xb0] sm:$0xf]
  %v3097 = vld [vmem:[%s3 + $0xb4] sm:$0xf]
  %v3098 = vld [vmem:[%s3 + $0xb8] sm:$0xf]
  %v3099 = vld [vmem:[%s3 + $0xbc] sm:$0xf]
  %v3100 = vld [vmem:[%s3 + $0xc0] sm:$0xf]
  %v3101 = vld [vmem:[%s3 + $0xc4] sm:$0xf]
  %v3102 = vld [vmem:[%s3 + $0xc8] sm:$0xf]
  %v3103 = vld [vmem:[%s3 + $0xcc] sm:$0xf]
  %v3104 = vld [vmem:[%s3 + $0xd0] sm:$0xf]
  %v3105 = vld [vmem:[%s3 + $0xd4] sm:$0xf]
  %v3106 = vld [vmem:[%s3 + $0xd8] sm:$0xf]
  %v3107 = vld [vmem:[%s3 + $0xdc] sm:$0xf]
  %v3108 = vld [vmem:[%s3 + $0xe0] sm:$0xf]
  %v3109 = vld [vmem:[%s3 + $0xe4] sm:$0xf]
  %v3110 = vld [vmem:[%s3 + $0xe8] sm:$0xf]
  %v3111 = vld [vmem:[%s3 + $0xec] sm:$0xf]
  %v3112 = vld [vmem:[%s3 + $0xf0] sm:$0xf]
  %v3113 = vld [vmem:[%s3 + $0xf4] sm:$0xf]
  %v3114 = vld [vmem:[%s3 + $0xf8] sm:$0xf]
  %v3115 = vld [vmem:[%s3 + $0xfc] sm:$0xf]
  %v3116 = vld [vmem:[%s3 + $0x100] sm:$0xf]
  %v3117 = vld [vmem:[%s3 + $0x104] sm:$0xf]
  %v3118 = vld [vmem:[%s3 + $0x108] sm:$0xf]
  %v3119 = vld [vmem:[%s3 + $0x10c] sm:$0xf]
  %v3120 = vld [vmem:[%s3 + $0x110] sm:$0xf]
  %v3121 = vld [vmem:[%s3 + $0x114] sm:$0xf]
  %v3122 = vld [vmem:[%s3 + $0x118] sm:$0xf]
  %v3123 = vld [vmem:[%s3 + $0x11c] sm:$0xf]
  %v3124 = vld [vmem:[%s3 + $0x120] sm:$0xf]
  %v3125 = vld [vmem:[%s3 + $0x124] sm:$0xf]
  %v3126 = vld [vmem:[%s3 + $0x128] sm:$0xf]
  %v3127 = vld [vmem:[%s3 + $0x12c] sm:$0xf]
  %v3128 = vld [vmem:[%s3 + $0x130] sm:$0xf]
  %v3129 = vld [vmem:[%s3 + $0x134] sm:$0xf]
  %v3130 = vld [vmem:[%s3 + $0x138] sm:$0xf]
  %v3131 = vld [vmem:[%s3 + $0x13c] sm:$0xf]
  %v3132 = vld [vmem:[%s3 + $0x140] sm:$0xf]
  %v3133 = vld [vmem:[%s3 + $0x144] sm:$0xf]
  %v3134 = vld [vmem:[%s3 + $0x148] sm:$0xf]
  %v3135 = vld [vmem:[%s3 + $0x14c] sm:$0xf]
  %v3136 = vld [vmem:[%s3 + $0x150] sm:$0xf]
  %v3137 = vld [vmem:[%s3 + $0x154] sm:$0xf]
  %v3138 = vld [vmem:[%s3 + $0x158] sm:$0xf]
  %v3139 = vld [vmem:[%s3 + $0x15c] sm:$0xf]
  %v3140 = vld [vmem:[%s3 + $0x160] sm:$0xf]
  %v3141 = vld [vmem:[%s3 + $0x164] sm:$0xf]
  %v3142 = vld [vmem:[%s3 + $0x168] sm:$0xf]
  %v3143 = vld [vmem:[%s3 + $0x16c] sm:$0xf]
  %v3144 = vld [vmem:[%s3 + $0x170] sm:$0xf]
  %v3145 = vld [vmem:[%s3 + $0x174] sm:$0xf]
  %v3146 = vld [vmem:[%s3 + $0x178] sm:$0xf]
  %v3147 = vld [vmem:[%s3 + $0x17c] sm:$0xf]
  %v3148 = vld [vmem:[%s3 + $0x180] sm:$0xf]
  %v3149 = vld [vmem:[%s3 + $0x184] sm:$0xf]
  %v3150 = vld [vmem:[%s3 + $0x188] sm:$0xf]
  %v3151 = vld [vmem:[%s3 + $0x18c] sm:$0xf]
  %v3152 = vld [vmem:[%s3 + $0x190] sm:$0xf]
  %v3153 = vld [vmem:[%s3 + $0x194] sm:$0xf]
  %v3154 = vld [vmem:[%s3 + $0x198] sm:$0xf]
  %v3155 = vld [vmem:[%s3 + $0x19c] sm:$0xf]
  %v3156 = vld [vmem:[%s3 + $0x1a0] sm:$0xf]
  %v3157 = vld [vmem:[%s3 + $0x1a4] sm:$0xf]
  %v3158 = vld [vmem:[%s3 + $0x1a8] sm:$0xf]
  %v3159 = vld [vmem:[%s3 + $0x1ac] sm:$0xf]
  %v3160 = vld [vmem:[%s3 + $0x1b0] sm:$0xf]
  %v3161 = vld [vmem:[%s3 + $0x1b4] sm:$0xf]
  %v3162 = vld [vmem:[%s3 + $0x1b8] sm:$0xf]
  %v3163 = vld [vmem:[%s3 + $0x1bc] sm:$0xf]
  %v3164 = vld [vmem:[%s3 + $0x1c0] sm:$0xf]
  %v3165 = vld [vmem:[%s3 + $0x1c4] sm:$0xf]
  %v3166 = vld [vmem:[%s3 + $0x1c8] sm:$0xf]
  %v3167 = vld [vmem:[%s3 + $0x1cc] sm:$0xf]
  %v3168 = vld [vmem:[%s3 + $0x1d0] sm:$0xf]
  %v3169 = vld [vmem:[%s3 + $0x1d4] sm:$0xf]
  %v3170 = vld [vmem:[%s3 + $0x1d8] sm:$0xf]
  %v3171 = vld [vmem:[%s3 + $0x1dc] sm:$0xf]
  %v3172 = vld [vmem:[%s3 + $0x1e0] sm:$0xf]
  %v3173 = vld [vmem:[%s3 + $0x1e4] sm:$0xf]
  %v3174 = vld [vmem:[%s3 + $0x1e8] sm:$0xf]
  %v3175 = vld [vmem:[%s3 + $0x1ec] sm:$0xf]
  %v3176 = vld [vmem:[%s3 + $0x1f0] sm:$0xf]
  %v3177 = vld [vmem:[%s3 + $0x1f4] sm:$0xf]
  %v3178 = vld [vmem:[%s3 + $0x1f8] sm:$0xf]
  %v3179 = vld [vmem:[%s3 + $0x1fc] sm:$0xf]
  %v3308 = vunpack.c.l.b16 %v3052
  %v3309 = vunpack.c.l.b16 %v3053
  %v3310 = vunpack.c.l.b16 %v3054
  %v3311 = vunpack.c.l.b16 %v3055
  %v3312 = vunpack.c.l.b16 %v3056
  %v3313 = vunpack.c.l.b16 %v3057
  %v3314 = vunpack.c.l.b16 %v3058
  %v3315 = vunpack.c.l.b16 %v3059
  %v3316 = vunpack.c.l.b16 %v3060
  %v3317 = vunpack.c.l.b16 %v3061
  %v3318 = vunpack.c.l.b16 %v3062
  %v3319 = vunpack.c.l.b16 %v3063
  %v3320 = vunpack.c.l.b16 %v3064
  %v3321 = vunpack.c.l.b16 %v3065
  %v3322 = vunpack.c.l.b16 %v3066
  %v3323 = vunpack.c.l.b16 %v3067
  %v3324 = vunpack.c.l.b16 %v3068
  %v3325 = vunpack.c.l.b16 %v3069
  %v3326 = vunpack.c.l.b16 %v3070
  %v3327 = vunpack.c.l.b16 %v3071
  %v3328 = vunpack.c.l.b16 %v3072
  %v3329 = vunpack.c.l.b16 %v3073
  %v3330 = vunpack.c.l.b16 %v3074
  %v3331 = vunpack.c.l.b16 %v3075
  %v3332 = vunpack.c.l.b16 %v3076
  %v3333 = vunpack.c.l.b16 %v3077
  %v3334 = vunpack.c.l.b16 %v3078
  %v3335 = vunpack.c.l.b16 %v3079
  %v3336 = vunpack.c.l.b16 %v3080
  %v3337 = vunpack.c.l.b16 %v3081
  %v3338 = vunpack.c.l.b16 %v3082
  %v3339 = vunpack.c.l.b16 %v3083
  %v3340 = vunpack.c.l.b16 %v3084
  %v3341 = vunpack.c.l.b16 %v3085
  %v3342 = vunpack.c.l.b16 %v3086
  %v3343 = vunpack.c.l.b16 %v3087
  %v3344 = vunpack.c.l.b16 %v3088
  %v3345 = vunpack.c.l.b16 %v3089
  %v3346 = vunpack.c.l.b16 %v3090
  %v3347 = vunpack.c.l.b16 %v3091
  %v3348 = vunpack.c.l.b16 %v3092
  %v3349 = vunpack.c.l.b16 %v3093
  %v3350 = vunpack.c.l.b16 %v3094
  %v3351 = vunpack.c.l.b16 %v3095
  %v3352 = vunpack.c.l.b16 %v3096
  %v3353 = vunpack.c.l.b16 %v3097
  %v3354 = vunpack.c.l.b16 %v3098
  %v3355 = vunpack.c.l.b16 %v3099
  %v3356 = vunpack.c.l.b16 %v3100
  %v3357 = vunpack.c.l.b16 %v3101
  %v3358 = vunpack.c.l.b16 %v3102
  %v3359 = vunpack.c.l.b16 %v3103
  %v3360 = vunpack.c.l.b16 %v3104
  %v3361 = vunpack.c.l.b16 %v3105
  %v3362 = vunpack.c.l.b16 %v3106
  %v3363 = vunpack.c.l.b16 %v3107
  %v3364 = vunpack.c.l.b16 %v3108
  %v3365 = vunpack.c.l.b16 %v3109
  %v3366 = vunpack.c.l.b16 %v3110
  %v3367 = vunpack.c.l.b16 %v3111
  %v3368 = vunpack.c.l.b16 %v3112
  %v3369 = vunpack.c.l.b16 %v3113
  %v3370 = vunpack.c.l.b16 %v3114
  %v3371 = vunpack.c.l.b16 %v3115
  %v3372 = vunpack.c.l.b16 %v3116
  %v3373 = vunpack.c.l.b16 %v3117
  %v3374 = vunpack.c.l.b16 %v3118
  %v3375 = vunpack.c.l.b16 %v3119
  %v3376 = vunpack.c.l.b16 %v3120
  %v3377 = vunpack.c.l.b16 %v3121
  %v3378 = vunpack.c.l.b16 %v3122
  %v3379 = vunpack.c.l.b16 %v3123
  %v3380 = vunpack.c.l.b16 %v3124
  %v3381 = vunpack.c.l.b16 %v3125
  %v3382 = vunpack.c.l.b16 %v3126
  %v3383 = vunpack.c.l.b16 %v3127
  %v3384 = vunpack.c.l.b16 %v3128
  %v3385 = vunpack.c.l.b16 %v3129
  %v3386 = vunpack.c.l.b16 %v3130
  %v3387 = vunpack.c.l.b16 %v3131
  %v3388 = vunpack.c.l.b16 %v3132
  %v3389 = vunpack.c.l.b16 %v3133
  %v3390 = vunpack.c.l.b16 %v3134
  %v3391 = vunpack.c.l.b16 %v3135
  %v3392 = vunpack.c.l.b16 %v3136
  %v3393 = vunpack.c.l.b16 %v3137
  %v3394 = vunpack.c.l.b16 %v3138
  %v3395 = vunpack.c.l.b16 %v3139
  %v3396 = vunpack.c.l.b16 %v3140
  %v3397 = vunpack.c.l.b16 %v3141
  %v3398 = vunpack.c.l.b16 %v3142
  %v3399 = vunpack.c.l.b16 %v3143
  %v3400 = vunpack.c.l.b16 %v3144
  %v3401 = vunpack.c.l.b16 %v3145
  %v3402 = vunpack.c.l.b16 %v3146
  %v3403 = vunpack.c.l.b16 %v3147
  %v3404 = vunpack.c.l.b16 %v3148
  %v3405 = vunpack.c.l.b16 %v3149
  %v3406 = vunpack.c.l.b16 %v3150
  %v3407 = vunpack.c.l.b16 %v3151
  %v3408 = vunpack.c.l.b16 %v3152
  %v3409 = vunpack.c.l.b16 %v3153
  %v3410 = vunpack.c.l.b16 %v3154
  %v3411 = vunpack.c.l.b16 %v3155
  %v3412 = vunpack.c.l.b16 %v3156
  %v3413 = vunpack.c.l.b16 %v3157
  %v3414 = vunpack.c.l.b16 %v3158
  %v3415 = vunpack.c.l.b16 %v3159
  %v3416 = vunpack.c.l.b16 %v3160
  %v3417 = vunpack.c.l.b16 %v3161
  %v3418 = vunpack.c.l.b16 %v3162
  %v3419 = vunpack.c.l.b16 %v3163
  %v3420 = vunpack.c.l.b16 %v3164
  %v3421 = vunpack.c.l.b16 %v3165
  %v3422 = vunpack.c.l.b16 %v3166
  %v3423 = vunpack.c.l.b16 %v3167
  %v3424 = vunpack.c.l.b16 %v3168
  %v3425 = vunpack.c.l.b16 %v3169
  %v3426 = vunpack.c.l.b16 %v3170
  %v3427 = vunpack.c.l.b16 %v3171
  %v3428 = vunpack.c.l.b16 %v3172
  %v3429 = vunpack.c.l.b16 %v3173
  %v3430 = vunpack.c.l.b16 %v3174
  %v3431 = vunpack.c.l.b16 %v3175
  %v3432 = vunpack.c.l.b16 %v3176
  %v3433 = vunpack.c.l.b16 %v3177
  %v3434 = vunpack.c.l.b16 %v3178
  %v3435 = vunpack.c.l.b16 %v3179
  %v3436 = vpack.c.b16 %v3309, %v3308
  %v3437 = vpack.c.b16 %v3311, %v3310
  %v3438 = vpack.c.b16 %v3313, %v3312
  %v3439 = vpack.c.b16 %v3315, %v3314
  %v3440 = vpack.c.b16 %v3317, %v3316
  %v3441 = vpack.c.b16 %v3319, %v3318
  %v3442 = vpack.c.b16 %v3321, %v3320
  %v3443 = vpack.c.b16 %v3323, %v3322
  %v3444 = vpack.c.b16 %v3325, %v3324
  %v3445 = vpack.c.b16 %v3327, %v3326
  %v3446 = vpack.c.b16 %v3329, %v3328
  %v3447 = vpack.c.b16 %v3331, %v3330
  %v3448 = vpack.c.b16 %v3333, %v3332
  %v3449 = vpack.c.b16 %v3335, %v3334
  %v3450 = vpack.c.b16 %v3337, %v3336
  %v3451 = vpack.c.b16 %v3339, %v3338
  %v3452 = vpack.c.b16 %v3341, %v3340
  %v3453 = vpack.c.b16 %v3343, %v3342
  %v3454 = vpack.c.b16 %v3345, %v3344
  %v3455 = vpack.c.b16 %v3347, %v3346
  %v3456 = vpack.c.b16 %v3349, %v3348
  %v3457 = vpack.c.b16 %v3351, %v3350
  %v3458 = vpack.c.b16 %v3353, %v3352
  %v3459 = vpack.c.b16 %v3355, %v3354
  %v3460 = vpack.c.b16 %v3357, %v3356
  %v3461 = vpack.c.b16 %v3359, %v3358
  %v3462 = vpack.c.b16 %v3361, %v3360
  %v3463 = vpack.c.b16 %v3363, %v3362
  %v3464 = vpack.c.b16 %v3365, %v3364
  %v3465 = vpack.c.b16 %v3367, %v3366
  %v3466 = vpack.c.b16 %v3369, %v3368
  %v3467 = vpack.c.b16 %v3371, %v3370
  %v3468 = vpack.c.b16 %v3373, %v3372
  %v3469 = vpack.c.b16 %v3375, %v3374
  %v3470 = vpack.c.b16 %v3377, %v3376
  %v3471 = vpack.c.b16 %v3379, %v3378
  %v3472 = vpack.c.b16 %v3381, %v3380
  %v3473 = vpack.c.b16 %v3383, %v3382
  %v3474 = vpack.c.b16 %v3385, %v3384
  %v3475 = vpack.c.b16 %v3387, %v3386
  %v3476 = vpack.c.b16 %v3389, %v3388
  %v3477 = vpack.c.b16 %v3391, %v3390
  %v3478 = vpack.c.b16 %v3393, %v3392
  %v3479 = vpack.c.b16 %v3395, %v3394
  %v3480 = vpack.c.b16 %v3397, %v3396
  %v3481 = vpack.c.b16 %v3399, %v3398
  %v3482 = vpack.c.b16 %v3401, %v3400
  %v3483 = vpack.c.b16 %v3403, %v3402
  %v3484 = vpack.c.b16 %v3405, %v3404
  %v3485 = vpack.c.b16 %v3407, %v3406
  %v3486 = vpack.c.b16 %v3409, %v3408
  %v3487 = vpack.c.b16 %v3411, %v3410
  %v3488 = vpack.c.b16 %v3413, %v3412
  %v3489 = vpack.c.b16 %v3415, %v3414
  %v3490 = vpack.c.b16 %v3417, %v3416
  %v3491 = vpack.c.b16 %v3419, %v3418
  %v3492 = vpack.c.b16 %v3421, %v3420
  %v3493 = vpack.c.b16 %v3423, %v3422
  %v3494 = vpack.c.b16 %v3425, %v3424
  %v3495 = vpack.c.b16 %v3427, %v3426
  %v3496 = vpack.c.b16 %v3429, %v3428
  %v3497 = vpack.c.b16 %v3431, %v3430
  %v3498 = vpack.c.b16 %v3433, %v3432
  %v3499 = vpack.c.b16 %v3435, %v3434
  %3564 = vmatpush.bf16.msra.mxu0 %v3443
  %3565 = vmatpush.bf16.msra.mxu0 %v3442
  %3566 = vmatpush.bf16.msra.mxu0 %v3441
  %3567 = vmatpush.bf16.msra.mxu0 %v3440
  %3568 = vmatpush.bf16.msra.mxu0 %v3439
  %3569 = vmatpush.bf16.msra.mxu0 %v3438
  %3570 = vmatpush.bf16.msra.mxu0 %v3437
  %3571 = vmatpush.bf16.msra.mxu0 %v3436
  %3572 = vmatmul.bf16.gmra.mxu0 %v2734
  %v3573 = vpop.f32.mrf.mxu0
  %v3574 = vadd.f32 0.0, %v3573
  %v3575 = vpop.f32.mrf.mxu0
  %v3576 = vadd.f32 0.0, %v3575
  %3577 = vmatmul.bf16.gmra.mxu0 %v2738
  %v3578 = vpop.f32.mrf.mxu0
  %v3579 = vadd.f32 0.0, %v3578
  %v3580 = vpop.f32.mrf.mxu0
  %v3581 = vadd.f32 0.0, %v3580
  %3582 = vmatmul.bf16.gmra.mxu0 %v2742
  %v3583 = vpop.f32.mrf.mxu0
  %v3584 = vadd.f32 0.0, %v3583
  %v3585 = vpop.f32.mrf.mxu0
  %v3586 = vadd.f32 0.0, %v3585
  %3587 = vmatmul.bf16.gmra.mxu0 %v2746
  %v3588 = vpop.f32.mrf.mxu0
  %v3589 = vadd.f32 0.0, %v3588
  %v3590 = vpop.f32.mrf.mxu0
  %v3591 = vadd.f32 0.0, %v3590
  %3592 = vmatmul.bf16.gmra.mxu0 %v2926
  %v3593 = vpop.f32.mrf.mxu0
  %v3594 = vadd.f32 0.0, %v3593
  %v3595 = vpop.f32.mrf.mxu0
  %v3596 = vadd.f32 0.0, %v3595
  %3597 = vmatmul.bf16.gmra.mxu0 %v2930
  %v3598 = vpop.f32.mrf.mxu0
  %v3599 = vadd.f32 0.0, %v3598
  %v3600 = vpop.f32.mrf.mxu0
  %v3601 = vadd.f32 0.0, %v3600
  %3602 = vmatmul.bf16.gmra.mxu0 %v2934
  %v3603 = vpop.f32.mrf.mxu0
  %v3604 = vadd.f32 0.0, %v3603
  %v3605 = vpop.f32.mrf.mxu0
  %v3606 = vadd.f32 0.0, %v3605
  %3607 = vmatmul.bf16.gmra.mxu0 %v2938
  %v3608 = vpop.f32.mrf.mxu0
  %v3609 = vadd.f32 0.0, %v3608
  %v3610 = vpop.f32.mrf.mxu0
  %v3611 = vadd.f32 0.0, %v3610
  %3612 = vdwg.mxu0
  %3613 = vmatpush.bf16.msra.mxu0 %v3451
  %3614 = vmatpush.bf16.msra.mxu0 %v3450
  %3615 = vmatpush.bf16.msra.mxu0 %v3449
  %3616 = vmatpush.bf16.msra.mxu0 %v3448
  %3617 = vmatpush.bf16.msra.mxu0 %v3447
  %3618 = vmatpush.bf16.msra.mxu0 %v3446
  %3619 = vmatpush.bf16.msra.mxu0 %v3445
  %3620 = vmatpush.bf16.msra.mxu0 %v3444
  %3621 = vmatmul.bf16.gmra.mxu0 %v2750
  %v3622 = vpop.f32.mrf.mxu0
  %v3623 = vadd.f32 %v3574, %v3622
  %v3624 = vpop.f32.mrf.mxu0
  %v3625 = vadd.f32 %v3576, %v3624
  %3626 = vmatmul.bf16.gmra.mxu0 %v2754
  %v3627 = vpop.f32.mrf.mxu0
  %v3628 = vadd.f32 %v3579, %v3627
  %v3629 = vpop.f32.mrf.mxu0
  %v3630 = vadd.f32 %v3581, %v3629
  %3631 = vmatmul.bf16.gmra.mxu0 %v2758
  %v3632 = vpop.f32.mrf.mxu0
  %v3633 = vadd.f32 %v3584, %v3632
  %v3634 = vpop.f32.mrf.mxu0
  %v3635 = vadd.f32 %v3586, %v3634
  %3636 = vmatmul.bf16.gmra.mxu0 %v2762
  %v3637 = vpop.f32.mrf.mxu0
  %v3638 = vadd.f32 %v3589, %v3637
  %v3639 = vpop.f32.mrf.mxu0
  %v3640 = vadd.f32 %v3591, %v3639
  %3641 = vmatmul.bf16.gmra.mxu0 %v2942
  %v3642 = vpop.f32.mrf.mxu0
  %v3643 = vadd.f32 %v3594, %v3642
  %v3644 = vpop.f32.mrf.mxu0
  %v3645 = vadd.f32 %v3596, %v3644
  %3646 = vmatmul.bf16.gmra.mxu0 %v2946
  %v3647 = vpop.f32.mrf.mxu0
  %v3648 = vadd.f32 %v3599, %v3647
  %v3649 = vpop.f32.mrf.mxu0
  %v3650 = vadd.f32 %v3601, %v3649
  %3651 = vmatmul.bf16.gmra.mxu0 %v2950
  %v3652 = vpop.f32.mrf.mxu0
  %v3653 = vadd.f32 %v3604, %v3652
  %v3654 = vpop.f32.mrf.mxu0
  %v3655 = vadd.f32 %v3606, %v3654
  %3656 = vmatmul.bf16.gmra.mxu0 %v2954
  %v3657 = vpop.f32.mrf.mxu0
  %v3658 = vadd.f32 %v3609, %v3657
  %v3659 = vpop.f32.mrf.mxu0
  %v3660 = vadd.f32 %v3611, %v3659
  %3661 = vdwg.mxu0
  %3662 = vmatpush.bf16.msra.mxu0 %v3459
  %3663 = vmatpush.bf16.msra.mxu0 %v3458
  %3664 = vmatpush.bf16.msra.mxu0 %v3457
  %3665 = vmatpush.bf16.msra.mxu0 %v3456
  %3666 = vmatpush.bf16.msra.mxu0 %v3455
  %3667 = vmatpush.bf16.msra.mxu0 %v3454
  %3668 = vmatpush.bf16.msra.mxu0 %v3453
  %3669 = vmatpush.bf16.msra.mxu0 %v3452
  %3670 = vmatmul.bf16.gmra.mxu0 %v2766
  %v3671 = vpop.f32.mrf.mxu0
  %v3672 = vadd.f32 %v3623, %v3671
  %v3673 = vpop.f32.mrf.mxu0
  %v3674 = vadd.f32 %v3625, %v3673
  %3675 = vmatmul.bf16.gmra.mxu0 %v2770
  %v3676 = vpop.f32.mrf.mxu0
  %v3677 = vadd.f32 %v3628, %v3676
  %v3678 = vpop.f32.mrf.mxu0
  %v3679 = vadd.f32 %v3630, %v3678
  %3680 = vmatmul.bf16.gmra.mxu0 %v2774
  %v3681 = vpop.f32.mrf.mxu0
  %v3682 = vadd.f32 %v3633, %v3681
  %v3683 = vpop.f32.mrf.mxu0
  %v3684 = vadd.f32 %v3635, %v3683
  %3685 = vmatmul.bf16.gmra.mxu0 %v2778
  %v3686 = vpop.f32.mrf.mxu0
  %v3687 = vadd.f32 %v3638, %v3686
  %v3688 = vpop.f32.mrf.mxu0
  %v3689 = vadd.f32 %v3640, %v3688
  %3690 = vmatmul.bf16.gmra.mxu0 %v2958
  %v3691 = vpop.f32.mrf.mxu0
  %v3692 = vadd.f32 %v3643, %v3691
  %v3693 = vpop.f32.mrf.mxu0
  %v3694 = vadd.f32 %v3645, %v3693
  %3695 = vmatmul.bf16.gmra.mxu0 %v2962
  %v3696 = vpop.f32.mrf.mxu0
  %v3697 = vadd.f32 %v3648, %v3696
  %v3698 = vpop.f32.mrf.mxu0
  %v3699 = vadd.f32 %v3650, %v3698
  %3700 = vmatmul.bf16.gmra.mxu0 %v2966
  %v3701 = vpop.f32.mrf.mxu0
  %v3702 = vadd.f32 %v3653, %v3701
  %v3703 = vpop.f32.mrf.mxu0
  %v3704 = vadd.f32 %v3655, %v3703
  %3705 = vmatmul.bf16.gmra.mxu0 %v2970
  %v3706 = vpop.f32.mrf.mxu0
  %v3707 = vadd.f32 %v3658, %v3706
  %v3708 = vpop.f32.mrf.mxu0
  %v3709 = vadd.f32 %v3660, %v3708
  %3710 = vdwg.mxu0
  %3711 = vmatpush.bf16.msra.mxu0 %v3467
  %3712 = vmatpush.bf16.msra.mxu0 %v3466
  %3713 = vmatpush.bf16.msra.mxu0 %v3465
  %3714 = vmatpush.bf16.msra.mxu0 %v3464
  %3715 = vmatpush.bf16.msra.mxu0 %v3463
  %3716 = vmatpush.bf16.msra.mxu0 %v3462
  %3717 = vmatpush.bf16.msra.mxu0 %v3461
  %3718 = vmatpush.bf16.msra.mxu0 %v3460
  %3719 = vmatmul.bf16.gmra.mxu0 %v2782
  %v3720 = vpop.f32.mrf.mxu0
  %v3721 = vadd.f32 %v3672, %v3720
  %v3722 = vpop.f32.mrf.mxu0
  %v3723 = vadd.f32 %v3674, %v3722
  %3724 = vmatmul.bf16.gmra.mxu0 %v2786
  %v3725 = vpop.f32.mrf.mxu0
  %v3726 = vadd.f32 %v3677, %v3725
  %v3727 = vpop.f32.mrf.mxu0
  %v3728 = vadd.f32 %v3679, %v3727
  %3729 = vmatmul.bf16.gmra.mxu0 %v2790
  %v3730 = vpop.f32.mrf.mxu0
  %v3731 = vadd.f32 %v3682, %v3730
  %v3732 = vpop.f32.mrf.mxu0
  %v3733 = vadd.f32 %v3684, %v3732
  %3734 = vmatmul.bf16.gmra.mxu0 %v2794
  %v3735 = vpop.f32.mrf.mxu0
  %v3736 = vadd.f32 %v3687, %v3735
  %v3737 = vpop.f32.mrf.mxu0
  %v3738 = vadd.f32 %v3689, %v3737
  %3739 = vmatmul.bf16.gmra.mxu0 %v2974
  %v3740 = vpop.f32.mrf.mxu0
  %v3741 = vadd.f32 %v3692, %v3740
  %v3742 = vpop.f32.mrf.mxu0
  %v3743 = vadd.f32 %v3694, %v3742
  %3744 = vmatmul.bf16.gmra.mxu0 %v2978
  %v3745 = vpop.f32.mrf.mxu0
  %v3746 = vadd.f32 %v3697, %v3745
  %v3747 = vpop.f32.mrf.mxu0
  %v3748 = vadd.f32 %v3699, %v3747
  %3749 = vmatmul.bf16.gmra.mxu0 %v2982
  %v3750 = vpop.f32.mrf.mxu0
  %v3751 = vadd.f32 %v3702, %v3750
  %v3752 = vpop.f32.mrf.mxu0
  %v3753 = vadd.f32 %v3704, %v3752
  %3754 = vmatmul.bf16.gmra.mxu0 %v2986
  %v3755 = vpop.f32.mrf.mxu0
  %v3756 = vadd.f32 %v3707, %v3755
  %v3757 = vpop.f32.mrf.mxu0
  %v3758 = vadd.f32 %v3709, %v3757
  %3759 = vdwg.mxu0
  %3760 = vmatpush.bf16.msra.mxu0 %v3475
  %3761 = vmatpush.bf16.msra.mxu0 %v3474
  %3762 = vmatpush.bf16.msra.mxu0 %v3473
  %3763 = vmatpush.bf16.msra.mxu0 %v3472
  %3764 = vmatpush.bf16.msra.mxu0 %v3471
  %3765 = vmatpush.bf16.msra.mxu0 %v3470
  %3766 = vmatpush.bf16.msra.mxu0 %v3469
  %3767 = vmatpush.bf16.msra.mxu0 %v3468
  %3768 = vmatmul.bf16.gmra.mxu0 %v2798
  %v3769 = vpop.f32.mrf.mxu0
  %v3770 = vadd.f32 %v3721, %v3769
  %v3771 = vpop.f32.mrf.mxu0
  %v3772 = vadd.f32 %v3723, %v3771
  %3773 = vmatmul.bf16.gmra.mxu0 %v2802
  %v3774 = vpop.f32.mrf.mxu0
  %v3775 = vadd.f32 %v3726, %v3774
  %v3776 = vpop.f32.mrf.mxu0
  %v3777 = vadd.f32 %v3728, %v3776
  %3778 = vmatmul.bf16.gmra.mxu0 %v2806
  %v3779 = vpop.f32.mrf.mxu0
  %v3780 = vadd.f32 %v3731, %v3779
  %v3781 = vpop.f32.mrf.mxu0
  %v3782 = vadd.f32 %v3733, %v3781
  %3783 = vmatmul.bf16.gmra.mxu0 %v2810
  %v3784 = vpop.f32.mrf.mxu0
  %v3785 = vadd.f32 %v3736, %v3784
  %v3786 = vpop.f32.mrf.mxu0
  %v3787 = vadd.f32 %v3738, %v3786
  %3788 = vmatmul.bf16.gmra.mxu0 %v2990
  %v3789 = vpop.f32.mrf.mxu0
  %v3790 = vadd.f32 %v3741, %v3789
  %v3791 = vpop.f32.mrf.mxu0
  %v3792 = vadd.f32 %v3743, %v3791
  %3793 = vmatmul.bf16.gmra.mxu0 %v2994
  %v3794 = vpop.f32.mrf.mxu0
  %v3795 = vadd.f32 %v3746, %v3794
  %v3796 = vpop.f32.mrf.mxu0
  %v3797 = vadd.f32 %v3748, %v3796
  %3798 = vmatmul.bf16.gmra.mxu0 %v2998
  %v3799 = vpop.f32.mrf.mxu0
  %v3800 = vadd.f32 %v3751, %v3799
  %v3801 = vpop.f32.mrf.mxu0
  %v3802 = vadd.f32 %v3753, %v3801
  %3803 = vmatmul.bf16.gmra.mxu0 %v3002
  %v3804 = vpop.f32.mrf.mxu0
  %v3805 = vadd.f32 %v3756, %v3804
  %v3806 = vpop.f32.mrf.mxu0
  %v3807 = vadd.f32 %v3758, %v3806
  %3808 = vdwg.mxu0
  %3809 = vmatpush.bf16.msra.mxu0 %v3483
  %3810 = vmatpush.bf16.msra.mxu0 %v3482
  %3811 = vmatpush.bf16.msra.mxu0 %v3481
  %3812 = vmatpush.bf16.msra.mxu0 %v3480
  %3813 = vmatpush.bf16.msra.mxu0 %v3479
  %3814 = vmatpush.bf16.msra.mxu0 %v3478
  %3815 = vmatpush.bf16.msra.mxu0 %v3477
  %3816 = vmatpush.bf16.msra.mxu0 %v3476
  %3817 = vmatmul.bf16.gmra.mxu0 %v2814
  %v3818 = vpop.f32.mrf.mxu0
  %v3819 = vadd.f32 %v3770, %v3818
  %v3820 = vpop.f32.mrf.mxu0
  %v3821 = vadd.f32 %v3772, %v3820
  %3822 = vmatmul.bf16.gmra.mxu0 %v2818
  %v3823 = vpop.f32.mrf.mxu0
  %v3824 = vadd.f32 %v3775, %v3823
  %v3825 = vpop.f32.mrf.mxu0
  %v3826 = vadd.f32 %v3777, %v3825
  %3827 = vmatmul.bf16.gmra.mxu0 %v2822
  %v3828 = vpop.f32.mrf.mxu0
  %v3829 = vadd.f32 %v3780, %v3828
  %v3830 = vpop.f32.mrf.mxu0
  %v3831 = vadd.f32 %v3782, %v3830
  %3832 = vmatmul.bf16.gmra.mxu0 %v2826
  %v3833 = vpop.f32.mrf.mxu0
  %v3834 = vadd.f32 %v3785, %v3833
  %v3835 = vpop.f32.mrf.mxu0
  %v3836 = vadd.f32 %v3787, %v3835
  %3837 = vmatmul.bf16.gmra.mxu0 %v3006
  %v3838 = vpop.f32.mrf.mxu0
  %v3839 = vadd.f32 %v3790, %v3838
  %v3840 = vpop.f32.mrf.mxu0
  %v3841 = vadd.f32 %v3792, %v3840
  %3842 = vmatmul.bf16.gmra.mxu0 %v3010
  %v3843 = vpop.f32.mrf.mxu0
  %v3844 = vadd.f32 %v3795, %v3843
  %v3845 = vpop.f32.mrf.mxu0
  %v3846 = vadd.f32 %v3797, %v3845
  %3847 = vmatmul.bf16.gmra.mxu0 %v3014
  %v3848 = vpop.f32.mrf.mxu0
  %v3849 = vadd.f32 %v3800, %v3848
  %v3850 = vpop.f32.mrf.mxu0
  %v3851 = vadd.f32 %v3802, %v3850
  %3852 = vmatmul.bf16.gmra.mxu0 %v3018
  %v3853 = vpop.f32.mrf.mxu0
  %v3854 = vadd.f32 %v3805, %v3853
  %v3855 = vpop.f32.mrf.mxu0
  %v3856 = vadd.f32 %v3807, %v3855
  %3857 = vdwg.mxu0
  %3858 = vmatpush.bf16.msra.mxu0 %v3491
  %3859 = vmatpush.bf16.msra.mxu0 %v3490
  %3860 = vmatpush.bf16.msra.mxu0 %v3489
  %3861 = vmatpush.bf16.msra.mxu0 %v3488
  %3862 = vmatpush.bf16.msra.mxu0 %v3487
  %3863 = vmatpush.bf16.msra.mxu0 %v3486
  %3864 = vmatpush.bf16.msra.mxu0 %v3485
  %3865 = vmatpush.bf16.msra.mxu0 %v3484
  %3866 = vmatmul.bf16.gmra.mxu0 %v2830
  %v3867 = vpop.f32.mrf.mxu0
  %v3868 = vadd.f32 %v3819, %v3867
  %v3869 = vpop.f32.mrf.mxu0
  %v3870 = vadd.f32 %v3821, %v3869
  %3871 = vmatmul.bf16.gmra.mxu0 %v2834
  %v3872 = vpop.f32.mrf.mxu0
  %v3873 = vadd.f32 %v3824, %v3872
  %v3874 = vpop.f32.mrf.mxu0
  %v3875 = vadd.f32 %v3826, %v3874
  %3876 = vmatmul.bf16.gmra.mxu0 %v2838
  %v3877 = vpop.f32.mrf.mxu0
  %v3878 = vadd.f32 %v3829, %v3877
  %v3879 = vpop.f32.mrf.mxu0
  %v3880 = vadd.f32 %v3831, %v3879
  %3881 = vmatmul.bf16.gmra.mxu0 %v2842
  %v3882 = vpop.f32.mrf.mxu0
  %v3883 = vadd.f32 %v3834, %v3882
  %v3884 = vpop.f32.mrf.mxu0
  %v3885 = vadd.f32 %v3836, %v3884
  %3886 = vmatmul.bf16.gmra.mxu0 %v3022
  %v3887 = vpop.f32.mrf.mxu0
  %v3888 = vadd.f32 %v3839, %v3887
  %v3889 = vpop.f32.mrf.mxu0
  %v3890 = vadd.f32 %v3841, %v3889
  %3891 = vmatmul.bf16.gmra.mxu0 %v3026
  %v3892 = vpop.f32.mrf.mxu0
  %v3893 = vadd.f32 %v3844, %v3892
  %v3894 = vpop.f32.mrf.mxu0
  %v3895 = vadd.f32 %v3846, %v3894
  %3896 = vmatmul.bf16.gmra.mxu0 %v3030
  %v3897 = vpop.f32.mrf.mxu0
  %v3898 = vadd.f32 %v3849, %v3897
  %v3899 = vpop.f32.mrf.mxu0
  %v3900 = vadd.f32 %v3851, %v3899
  %3901 = vmatmul.bf16.gmra.mxu0 %v3034
  %v3902 = vpop.f32.mrf.mxu0
  %v3903 = vadd.f32 %v3854, %v3902
  %v3904 = vpop.f32.mrf.mxu0
  %v3905 = vadd.f32 %v3856, %v3904
  %3906 = vdwg.mxu0
  %3907 = vmatpush.bf16.msra.mxu0 %v3499
  %3908 = vmatpush.bf16.msra.mxu0 %v3498
  %3909 = vmatpush.bf16.msra.mxu0 %v3497
  %3910 = vmatpush.bf16.msra.mxu0 %v3496
  %3911 = vmatpush.bf16.msra.mxu0 %v3495
  %3912 = vmatpush.bf16.msra.mxu0 %v3494
  %3913 = vmatpush.bf16.msra.mxu0 %v3493
  %3914 = vmatpush.bf16.msra.mxu0 %v3492
  %3915 = vmatmul.bf16.gmra.mxu0 %v2846
  %v3916 = vpop.f32.mrf.mxu0
  %v3917 = vadd.f32 %v3868, %v3916
  %v3918 = vpop.f32.mrf.mxu0
  %v3919 = vadd.f32 %v3870, %v3918
  %3920 = vmatmul.bf16.gmra.mxu0 %v2850
  %v3921 = vpop.f32.mrf.mxu0
  %v3922 = vadd.f32 %v3873, %v3921
  %v3923 = vpop.f32.mrf.mxu0
  %v3924 = vadd.f32 %v3875, %v3923
  %3925 = vmatmul.bf16.gmra.mxu0 %v2854
  %v3926 = vpop.f32.mrf.mxu0
  %v3927 = vadd.f32 %v3878, %v3926
  %v3928 = vpop.f32.mrf.mxu0
  %v3929 = vadd.f32 %v3880, %v3928
  %3930 = vmatmul.bf16.gmra.mxu0 %v2858
  %v3931 = vpop.f32.mrf.mxu0
  %v3932 = vadd.f32 %v3883, %v3931
  %v3933 = vpop.f32.mrf.mxu0
  %v3934 = vadd.f32 %v3885, %v3933
  %3935 = vmatmul.bf16.gmra.mxu0 %v3038
  %v3936 = vpop.f32.mrf.mxu0
  %v3937 = vadd.f32 %v3888, %v3936
  %v3938 = vpop.f32.mrf.mxu0
  %v3939 = vadd.f32 %v3890, %v3938
  %3940 = vmatmul.bf16.gmra.mxu0 %v3042
  %v3941 = vpop.f32.mrf.mxu0
  %v3942 = vadd.f32 %v3893, %v3941
  %v3943 = vpop.f32.mrf.mxu0
  %v3944 = vadd.f32 %v3895, %v3943
  %3945 = vmatmul.bf16.gmra.mxu0 %v3046
  %v3946 = vpop.f32.mrf.mxu0
  %v3947 = vadd.f32 %v3898, %v3946
  %v3948 = vpop.f32.mrf.mxu0
  %v3949 = vadd.f32 %v3900, %v3948
  %3950 = vmatmul.bf16.gmra.mxu0 %v3050
  %v3951 = vpop.f32.mrf.mxu0
  %v3952 = vadd.f32 %v3903, %v3951
  %v3953 = vpop.f32.mrf.mxu0
  %v3954 = vadd.f32 %v3905, %v3953
  %3955 = vdwg.mxu0
  %v3956 = vadd.f32 %v3917, %v3919
  %v3957 = vadd.f32 %v3956, %v3922
  %v3958 = vadd.f32 %v3957, %v3924
  %v3959 = vadd.f32 %v3958, %v3927
  %v3960 = vadd.f32 %v3959, %v3929
  %v3961 = vadd.f32 %v3960, %v3932
  %v3962 = vadd.f32 %v3961, %v3934
  %v3963 = vadd.f32 %v3962, %v3937
  %v3964 = vadd.f32 %v3963, %v3939
  %v3965 = vadd.f32 %v3964, %v3942
  %v3966 = vadd.f32 %v3965, %v3944
  %v3967 = vadd.f32 %v3966, %v3947
  %v3968 = vadd.f32 %v3967, %v3949
  %v3969 = vadd.f32 %v3968, %v3952
  %v3970 = vadd.f32 %v3969, %v3954
  %v3971 = vrot.slane %v3970, 4
  %v3972 = vadd.f32 %v3970, %v3971
  %v3973 = vrot.slane %v3972, 2
  %v3974 = vadd.f32 %v3972, %v3973
  %v3975 = vrot.slane %v3974, 1
  %v3976 = vadd.f32 %v3974, %v3975
  %v3977 = vrcp.pop 128.0
  %v3978 = vmul.f32 128.0, %v3977
  %v3979 = vsub.f32 1.0, %v3978
  %v3980 = vmul.f32 %v3977, %v3979
  %v3981 = vadd.f32 %v3977, %v3980
  %vm3982 = vweird.f32 %v3977
  %v3983 = vsel %vm3982, %v3977, %v3981
  %v3984 = vmul.f32 %v3976, %v3983
  %v3985 = vmul.f32 %v3917, %v3917
  %v3986 = vmul.f32 %v3919, %v3919
  %v3987 = vmul.f32 %v3922, %v3922
  %v3988 = vmul.f32 %v3924, %v3924
  %v3989 = vmul.f32 %v3927, %v3927
  %v3990 = vmul.f32 %v3929, %v3929
  %v3991 = vmul.f32 %v3932, %v3932
  %v3992 = vmul.f32 %v3934, %v3934
  %v3993 = vmul.f32 %v3937, %v3937
  %v3994 = vmul.f32 %v3939, %v3939
  %v3995 = vmul.f32 %v3942, %v3942
  %v3996 = vmul.f32 %v3944, %v3944
  %v3997 = vmul.f32 %v3947, %v3947
  %v3998 = vmul.f32 %v3949, %v3949
  %v3999 = vmul.f32 %v3952, %v3952
  %v4000 = vmul.f32 %v3954, %v3954
  %v4001 = vadd.f32 %v3985, %v3986
  %v4002 = vadd.f32 %v4001, %v3987
  %v4003 = vadd.f32 %v4002, %v3988
  %v4004 = vadd.f32 %v4003, %v3989
  %v4005 = vadd.f32 %v4004, %v3990
  %v4006 = vadd.f32 %v4005, %v3991
  %v4007 = vadd.f32 %v4006, %v3992
  %v4008 = vadd.f32 %v4007, %v3993
  %v4009 = vadd.f32 %v4008, %v3994
  %v4010 = vadd.f32 %v4009, %v3995
  %v4011 = vadd.f32 %v4010, %v3996
  %v4012 = vadd.f32 %v4011, %v3997
  %v4013 = vadd.f32 %v4012, %v3998
  %v4014 = vadd.f32 %v4013, %v3999
  %v4015 = vadd.f32 %v4014, %v4000
  %v4016 = vrot.slane %v4015, 4
  %v4017 = vadd.f32 %v4015, %v4016
  %v4018 = vrot.slane %v4017, 2
  %v4019 = vadd.f32 %v4017, %v4018
  %v4020 = vrot.slane %v4019, 1
  %v4021 = vadd.f32 %v4019, %v4020
  %v4022 = vmul.f32 %v4021, %v3983
  %v4023 = vmul.f32 %v3984, %v3984
  %v4024 = vsub.f32 %v4022, %v4023
  %v4025 = vmax.f32 %v4024, 0.0
  %v4026 = vadd.f32 %v4025, 1e-05
  %v4027 = vrsqrt.pop %v4026
  %v4028 = vmul.f32 %v4027, %v4026
  %v4029 = vmul.f32 %v4028, %v4027
  %v4030 = vmul.f32 0.5, %v4029
  %v4031 = vsub.f32 1.5, %v4030
  %v4032 = vmul.f32 %v4027, %v4031
  %vm4033 = vweird.f32 %v4026
  %vm4034 = vweird.f32 %v4027
  %vm4035 = vmor %vm4033, %vm4034
  %v4036 = vsel %vm4035, %v4027, %v4032
  %v4037 = vld [vmem:[%s4] sm:$0x1]
  %v4038 = vmul.f32 %v4036, %v4037
  %v4039 = vld [vmem:[%s5] sm:$0x1]
  %v4040 = vmul.f32 %v3984, %v4038
  %v4041 = vsub.f32 %v4039, %v4040
  %v4042 = vperm.slane %v4038, 0
  %v4043 = vmul.f32 %v3917, %v4042
  %v4044 = vmul.f32 %v3919, %v4042
  %v4045 = vmul.f32 %v3922, %v4042
  %v4046 = vmul.f32 %v3924, %v4042
  %v4047 = vmul.f32 %v3927, %v4042
  %v4048 = vmul.f32 %v3929, %v4042
  %v4049 = vmul.f32 %v3932, %v4042
  %v4050 = vmul.f32 %v3934, %v4042
  %v4051 = vmul.f32 %v3937, %v4042
  %v4052 = vmul.f32 %v3939, %v4042
  %v4053 = vmul.f32 %v3942, %v4042
  %v4054 = vmul.f32 %v3944, %v4042
  %v4055 = vmul.f32 %v3947, %v4042
  %v4056 = vmul.f32 %v3949, %v4042
  %v4057 = vmul.f32 %v3952, %v4042
  %v4058 = vmul.f32 %v3954, %v4042
  %v4060 = vperm.slane %v4041, 0
  %v4062 = vadd.f32 %v4043, %v4060
  %v4063 = vadd.f32 %v4044, %v4060
  %v4064 = vadd.f32 %v4045, %v4060
  %v4065 = vadd.f32 %v4046, %v4060
  %v4066 = vadd.f32 %v4047, %v4060
  %v4067 = vadd.f32 %v4048, %v4060
  %v4068 = vadd.f32 %v4049, %v4060
  %v4069 = vadd.f32 %v4050, %v4060
  %v4070 = vadd.f32 %v4051, %v4060
  %v4071 = vadd.f32 %v4052, %v4060
  %v4072 = vadd.f32 %v4053, %v4060
  %v4073 = vadd.f32 %v4054, %v4060
  %v4074 = vadd.f32 %v4055, %v4060
  %v4075 = vadd.f32 %v4056, %v4060
  %v4076 = vadd.f32 %v4057, %v4060
  %v4077 = vadd.f32 %v4058, %v4060
  %v4078 = vmul.f32 %v4062, 0.2
  %v4079 = vmul.f32 %v4063, 0.2
  %v4080 = vmul.f32 %v4064, 0.2
  %v4081 = vmul.f32 %v4065, 0.2
  %v4082 = vmul.f32 %v4066, 0.2
  %v4083 = vmul.f32 %v4067, 0.2
  %v4084 = vmul.f32 %v4068, 0.2
  %v4085 = vmul.f32 %v4069, 0.2
  %v4086 = vmul.f32 %v4070, 0.2
  %v4087 = vmul.f32 %v4071, 0.2
  %v4088 = vmul.f32 %v4072, 0.2
  %v4089 = vmul.f32 %v4073, 0.2
  %v4090 = vmul.f32 %v4074, 0.2
  %v4091 = vmul.f32 %v4075, 0.2
  %v4092 = vmul.f32 %v4076, 0.2
  %v4093 = vmul.f32 %v4077, 0.2
  %v4094 = vmax.f32 %v4062, %v4078
  %v4095 = vmax.f32 %v4063, %v4079
  %v4096 = vmax.f32 %v4064, %v4080
  %v4097 = vmax.f32 %v4065, %v4081
  %v4098 = vmax.f32 %v4066, %v4082
  %v4099 = vmax.f32 %v4067, %v4083
  %v4100 = vmax.f32 %v4068, %v4084
  %v4101 = vmax.f32 %v4069, %v4085
  %v4102 = vmax.f32 %v4070, %v4086
  %v4103 = vmax.f32 %v4071, %v4087
  %v4104 = vmax.f32 %v4072, %v4088
  %v4105 = vmax.f32 %v4073, %v4089
  %v4106 = vmax.f32 %v4074, %v4090
  %v4107 = vmax.f32 %v4075, %v4091
  %v4108 = vmax.f32 %v4076, %v4092
  %v4109 = vmax.f32 %v4077, %v4093
  %v4110 = vpack.c.bf16 %v4094, %v4094
  %v4111 = vpack.c.bf16 %v4095, %v4095
  %v4112 = vpack.c.bf16 %v4096, %v4096
  %v4113 = vpack.c.bf16 %v4097, %v4097
  %v4114 = vpack.c.bf16 %v4098, %v4098
  %v4115 = vpack.c.bf16 %v4099, %v4099
  %v4116 = vpack.c.bf16 %v4100, %v4100
  %v4117 = vpack.c.bf16 %v4101, %v4101
  %v4118 = vpack.c.bf16 %v4102, %v4102
  %v4119 = vpack.c.bf16 %v4103, %v4103
  %v4120 = vpack.c.bf16 %v4104, %v4104
  %v4121 = vpack.c.bf16 %v4105, %v4105
  %v4122 = vpack.c.bf16 %v4106, %v4106
  %v4123 = vpack.c.bf16 %v4107, %v4107
  %v4124 = vpack.c.bf16 %v4108, %v4108
  %v4125 = vpack.c.bf16 %v4109, %v4109
  %v4134 = vunpack.c.l.b16 %v4110
  %v4135 = vunpack.c.l.b16 %v4111
  %v4136 = vunpack.c.l.b16 %v4112
  %v4137 = vunpack.c.l.b16 %v4113
  %v4138 = vunpack.c.l.b16 %v4114
  %v4139 = vunpack.c.l.b16 %v4115
  %v4140 = vunpack.c.l.b16 %v4116
  %v4141 = vunpack.c.l.b16 %v4117
  %v4142 = vpack.c.b16 %v4135, %v4134
  %v4143 = vpack.c.b16 %v4137, %v4136
  %v4144 = vpack.c.b16 %v4139, %v4138
  %v4145 = vpack.c.b16 %v4141, %v4140
  %v4158 = vunpack.c.l.b16 %v4118
  %v4159 = vunpack.c.l.b16 %v4119
  %v4160 = vunpack.c.l.b16 %v4120
  %v4161 = vunpack.c.l.b16 %v4121
  %v4162 = vunpack.c.l.b16 %v4122
  %v4163 = vunpack.c.l.b16 %v4123
  %v4164 = vunpack.c.l.b16 %v4124
  %v4165 = vunpack.c.l.b16 %v4125
  %v4166 = vpack.c.b16 %v4159, %v4158
  %v4167 = vpack.c.b16 %v4161, %v4160
  %v4168 = vpack.c.b16 %v4163, %v4162
  %v4169 = vpack.c.b16 %v4165, %v4164
  %v4174 = vld [vmem:[%s6] sm:$0xf]
  %v4175 = vld [vmem:[%s6 + $0x4] sm:$0xf]
  %v4176 = vld [vmem:[%s6 + $0x8] sm:$0xf]
  %v4177 = vld [vmem:[%s6 + $0xc] sm:$0xf]
  %v4178 = vld [vmem:[%s6 + $0x10] sm:$0xf]
  %v4179 = vld [vmem:[%s6 + $0x14] sm:$0xf]
  %v4180 = vld [vmem:[%s6 + $0x18] sm:$0xf]
  %v4181 = vld [vmem:[%s6 + $0x1c] sm:$0xf]
  %v4182 = vld [vmem:[%s6 + $0x20] sm:$0xf]
  %v4183 = vld [vmem:[%s6 + $0x24] sm:$0xf]
  %v4184 = vld [vmem:[%s6 + $0x28] sm:$0xf]
  %v4185 = vld [vmem:[%s6 + $0x2c] sm:$0xf]
  %v4186 = vld [vmem:[%s6 + $0x30] sm:$0xf]
  %v4187 = vld [vmem:[%s6 + $0x34] sm:$0xf]
  %v4188 = vld [vmem:[%s6 + $0x38] sm:$0xf]
  %v4189 = vld [vmem:[%s6 + $0x3c] sm:$0xf]
  %v4190 = vld [vmem:[%s6 + $0x40] sm:$0xf]
  %v4191 = vld [vmem:[%s6 + $0x44] sm:$0xf]
  %v4192 = vld [vmem:[%s6 + $0x48] sm:$0xf]
  %v4193 = vld [vmem:[%s6 + $0x4c] sm:$0xf]
  %v4194 = vld [vmem:[%s6 + $0x50] sm:$0xf]
  %v4195 = vld [vmem:[%s6 + $0x54] sm:$0xf]
  %v4196 = vld [vmem:[%s6 + $0x58] sm:$0xf]
  %v4197 = vld [vmem:[%s6 + $0x5c] sm:$0xf]
  %v4198 = vld [vmem:[%s6 + $0x60] sm:$0xf]
  %v4199 = vld [vmem:[%s6 + $0x64] sm:$0xf]
  %v4200 = vld [vmem:[%s6 + $0x68] sm:$0xf]
  %v4201 = vld [vmem:[%s6 + $0x6c] sm:$0xf]
  %v4202 = vld [vmem:[%s6 + $0x70] sm:$0xf]
  %v4203 = vld [vmem:[%s6 + $0x74] sm:$0xf]
  %v4204 = vld [vmem:[%s6 + $0x78] sm:$0xf]
  %v4205 = vld [vmem:[%s6 + $0x7c] sm:$0xf]
  %v4238 = vunpack.c.l.b16 %v4174
  %v4239 = vunpack.c.l.b16 %v4175
  %v4240 = vunpack.c.l.b16 %v4176
  %v4241 = vunpack.c.l.b16 %v4177
  %v4242 = vunpack.c.l.b16 %v4178
  %v4243 = vunpack.c.l.b16 %v4179
  %v4244 = vunpack.c.l.b16 %v4180
  %v4245 = vunpack.c.l.b16 %v4181
  %v4246 = vunpack.c.l.b16 %v4182
  %v4247 = vunpack.c.l.b16 %v4183
  %v4248 = vunpack.c.l.b16 %v4184
  %v4249 = vunpack.c.l.b16 %v4185
  %v4250 = vunpack.c.l.b16 %v4186
  %v4251 = vunpack.c.l.b16 %v4187
  %v4252 = vunpack.c.l.b16 %v4188
  %v4253 = vunpack.c.l.b16 %v4189
  %v4254 = vunpack.c.l.b16 %v4190
  %v4255 = vunpack.c.l.b16 %v4191
  %v4256 = vunpack.c.l.b16 %v4192
  %v4257 = vunpack.c.l.b16 %v4193
  %v4258 = vunpack.c.l.b16 %v4194
  %v4259 = vunpack.c.l.b16 %v4195
  %v4260 = vunpack.c.l.b16 %v4196
  %v4261 = vunpack.c.l.b16 %v4197
  %v4262 = vunpack.c.l.b16 %v4198
  %v4263 = vunpack.c.l.b16 %v4199
  %v4264 = vunpack.c.l.b16 %v4200
  %v4265 = vunpack.c.l.b16 %v4201
  %v4266 = vunpack.c.l.b16 %v4202
  %v4267 = vunpack.c.l.b16 %v4203
  %v4268 = vunpack.c.l.b16 %v4204
  %v4269 = vunpack.c.l.b16 %v4205
  %v4270 = vpack.c.b16 %v4239, %v4238
  %v4271 = vpack.c.b16 %v4241, %v4240
  %v4272 = vpack.c.b16 %v4243, %v4242
  %v4273 = vpack.c.b16 %v4245, %v4244
  %v4274 = vpack.c.b16 %v4247, %v4246
  %v4275 = vpack.c.b16 %v4249, %v4248
  %v4276 = vpack.c.b16 %v4251, %v4250
  %v4277 = vpack.c.b16 %v4253, %v4252
  %v4278 = vpack.c.b16 %v4255, %v4254
  %v4279 = vpack.c.b16 %v4257, %v4256
  %v4280 = vpack.c.b16 %v4259, %v4258
  %v4281 = vpack.c.b16 %v4261, %v4260
  %v4282 = vpack.c.b16 %v4263, %v4262
  %v4283 = vpack.c.b16 %v4265, %v4264
  %v4284 = vpack.c.b16 %v4267, %v4266
  %v4285 = vpack.c.b16 %v4269, %v4268
  %v4287 = vsel %vm681, %v4270, 0
  %v4290 = vsel %vm681, %v4271, 0
  %v4293 = vsel %vm681, %v4272, 0
  %v4296 = vsel %vm681, %v4273, 0
  %v4299 = vsel %vm681, %v4274, 0
  %v4302 = vsel %vm681, %v4275, 0
  %v4305 = vsel %vm681, %v4276, 0
  %v4308 = vsel %vm681, %v4277, 0
  %v4311 = vsel %vm681, %v4278, 0
  %v4314 = vsel %vm681, %v4279, 0
  %v4317 = vsel %vm681, %v4280, 0
  %v4320 = vsel %vm681, %v4281, 0
  %v4323 = vsel %vm681, %v4282, 0
  %v4326 = vsel %vm681, %v4283, 0
  %v4329 = vsel %vm681, %v4284, 0
  %v4332 = vsel %vm681, %v4285, 0
  %4334 = vmatpush.bf16.msra.mxu0 0
  %4335 = vmatpush.bf16.msra.mxu0 0
  %4336 = vmatpush.bf16.msra.mxu0 0
  %4337 = vmatpush.bf16.msra.mxu0 0
  %4338 = vmatpush.bf16.msra.mxu0 %v4145
  %4339 = vmatpush.bf16.msra.mxu0 %v4144
  %4340 = vmatpush.bf16.msra.mxu0 %v4143
  %4341 = vmatpush.bf16.msra.mxu0 %v4142
  %4342 = vmatmul.bf16.gmra.mxu0 %v4287
  %v4343 = vpop.f32.mrf.mxu0
  %v4344 = vadd.f32 0.0, %v4343
  %v4345 = vpop.f32.mrf.mxu0
  %v4346 = vadd.f32 0.0, %v4345
  %4347 = vmatmul.bf16.gmra.mxu0 %v4290
  %v4348 = vpop.f32.mrf.mxu0
  %v4349 = vadd.f32 0.0, %v4348
  %v4350 = vpop.f32.mrf.mxu0
  %v4351 = vadd.f32 0.0, %v4350
  %4352 = vmatmul.bf16.gmra.mxu0 %v4293
  %v4353 = vpop.f32.mrf.mxu0
  %v4354 = vadd.f32 0.0, %v4353
  %v4355 = vpop.f32.mrf.mxu0
  %v4356 = vadd.f32 0.0, %v4355
  %4357 = vmatmul.bf16.gmra.mxu0 %v4296
  %v4358 = vpop.f32.mrf.mxu0
  %v4359 = vadd.f32 0.0, %v4358
  %v4360 = vpop.f32.mrf.mxu0
  %v4361 = vadd.f32 0.0, %v4360
  %4362 = vmatmul.bf16.gmra.mxu0 %v4299
  %v4363 = vpop.f32.mrf.mxu0
  %v4364 = vadd.f32 0.0, %v4363
  %v4365 = vpop.f32.mrf.mxu0
  %v4366 = vadd.f32 0.0, %v4365
  %4367 = vmatmul.bf16.gmra.mxu0 %v4302
  %v4368 = vpop.f32.mrf.mxu0
  %v4369 = vadd.f32 0.0, %v4368
  %v4370 = vpop.f32.mrf.mxu0
  %v4371 = vadd.f32 0.0, %v4370
  %4372 = vmatmul.bf16.gmra.mxu0 %v4305
  %v4373 = vpop.f32.mrf.mxu0
  %v4374 = vadd.f32 0.0, %v4373
  %v4375 = vpop.f32.mrf.mxu0
  %v4376 = vadd.f32 0.0, %v4375
  %4377 = vmatmul.bf16.gmra.mxu0 %v4308
  %v4378 = vpop.f32.mrf.mxu0
  %v4379 = vadd.f32 0.0, %v4378
  %v4380 = vpop.f32.mrf.mxu0
  %v4381 = vadd.f32 0.0, %v4380
  %4382 = vmatmul.bf16.gmra.mxu0 %v4311
  %v4383 = vpop.f32.mrf.mxu0
  %v4384 = vadd.f32 0.0, %v4383
  %v4385 = vpop.f32.mrf.mxu0
  %v4386 = vadd.f32 0.0, %v4385
  %4387 = vmatmul.bf16.gmra.mxu0 %v4314
  %v4388 = vpop.f32.mrf.mxu0
  %v4389 = vadd.f32 0.0, %v4388
  %v4390 = vpop.f32.mrf.mxu0
  %v4391 = vadd.f32 0.0, %v4390
  %4392 = vmatmul.bf16.gmra.mxu0 %v4317
  %v4393 = vpop.f32.mrf.mxu0
  %v4394 = vadd.f32 0.0, %v4393
  %v4395 = vpop.f32.mrf.mxu0
  %v4396 = vadd.f32 0.0, %v4395
  %4397 = vmatmul.bf16.gmra.mxu0 %v4320
  %v4398 = vpop.f32.mrf.mxu0
  %v4399 = vadd.f32 0.0, %v4398
  %v4400 = vpop.f32.mrf.mxu0
  %v4401 = vadd.f32 0.0, %v4400
  %4402 = vmatmul.bf16.gmra.mxu0 %v4323
  %v4403 = vpop.f32.mrf.mxu0
  %v4404 = vadd.f32 0.0, %v4403
  %v4405 = vpop.f32.mrf.mxu0
  %v4406 = vadd.f32 0.0, %v4405
  %4407 = vmatmul.bf16.gmra.mxu0 %v4326
  %v4408 = vpop.f32.mrf.mxu0
  %v4409 = vadd.f32 0.0, %v4408
  %v4410 = vpop.f32.mrf.mxu0
  %v4411 = vadd.f32 0.0, %v4410
  %4412 = vmatmul.bf16.gmra.mxu0 %v4329
  %v4413 = vpop.f32.mrf.mxu0
  %v4414 = vadd.f32 0.0, %v4413
  %v4415 = vpop.f32.mrf.mxu0
  %v4416 = vadd.f32 0.0, %v4415
  %4417 = vmatmul.bf16.gmra.mxu0 %v4332
  %v4418 = vpop.f32.mrf.mxu0
  %v4419 = vadd.f32 0.0, %v4418
  %v4420 = vpop.f32.mrf.mxu0
  %v4421 = vadd.f32 0.0, %v4420
  %4422 = vdwg.mxu0
  %4423 = vmatpush.bf16.msra.mxu0 0
  %4424 = vmatpush.bf16.msra.mxu0 0
  %4425 = vmatpush.bf16.msra.mxu0 0
  %4426 = vmatpush.bf16.msra.mxu0 0
  %4427 = vmatpush.bf16.msra.mxu0 %v4169
  %4428 = vmatpush.bf16.msra.mxu0 %v4168
  %4429 = vmatpush.bf16.msra.mxu0 %v4167
  %4430 = vmatpush.bf16.msra.mxu0 %v4166
  %4431 = vmatmul.bf16.gmra.mxu0 %v4287
  %v4432 = vpop.f32.mrf.mxu0
  %v4433 = vadd.f32 0.0, %v4432
  %v4434 = vpop.f32.mrf.mxu0
  %v4435 = vadd.f32 0.0, %v4434
  %4436 = vmatmul.bf16.gmra.mxu0 %v4290
  %v4437 = vpop.f32.mrf.mxu0
  %v4438 = vadd.f32 0.0, %v4437
  %v4439 = vpop.f32.mrf.mxu0
  %v4440 = vadd.f32 0.0, %v4439
  %4441 = vmatmul.bf16.gmra.mxu0 %v4293
  %v4442 = vpop.f32.mrf.mxu0
  %v4443 = vadd.f32 0.0, %v4442
  %v4444 = vpop.f32.mrf.mxu0
  %v4445 = vadd.f32 0.0, %v4444
  %4446 = vmatmul.bf16.gmra.mxu0 %v4296
  %v4447 = vpop.f32.mrf.mxu0
  %v4448 = vadd.f32 0.0, %v4447
  %v4449 = vpop.f32.mrf.mxu0
  %v4450 = vadd.f32 0.0, %v4449
  %4451 = vmatmul.bf16.gmra.mxu0 %v4299
  %v4452 = vpop.f32.mrf.mxu0
  %v4453 = vadd.f32 0.0, %v4452
  %v4454 = vpop.f32.mrf.mxu0
  %v4455 = vadd.f32 0.0, %v4454
  %4456 = vmatmul.bf16.gmra.mxu0 %v4302
  %v4457 = vpop.f32.mrf.mxu0
  %v4458 = vadd.f32 0.0, %v4457
  %v4459 = vpop.f32.mrf.mxu0
  %v4460 = vadd.f32 0.0, %v4459
  %4461 = vmatmul.bf16.gmra.mxu0 %v4305
  %v4462 = vpop.f32.mrf.mxu0
  %v4463 = vadd.f32 0.0, %v4462
  %v4464 = vpop.f32.mrf.mxu0
  %v4465 = vadd.f32 0.0, %v4464
  %4466 = vmatmul.bf16.gmra.mxu0 %v4308
  %v4467 = vpop.f32.mrf.mxu0
  %v4468 = vadd.f32 0.0, %v4467
  %v4469 = vpop.f32.mrf.mxu0
  %v4470 = vadd.f32 0.0, %v4469
  %4471 = vmatmul.bf16.gmra.mxu0 %v4311
  %v4472 = vpop.f32.mrf.mxu0
  %v4473 = vadd.f32 0.0, %v4472
  %v4474 = vpop.f32.mrf.mxu0
  %v4475 = vadd.f32 0.0, %v4474
  %4476 = vmatmul.bf16.gmra.mxu0 %v4314
  %v4477 = vpop.f32.mrf.mxu0
  %v4478 = vadd.f32 0.0, %v4477
  %v4479 = vpop.f32.mrf.mxu0
  %v4480 = vadd.f32 0.0, %v4479
  %4481 = vmatmul.bf16.gmra.mxu0 %v4317
  %v4482 = vpop.f32.mrf.mxu0
  %v4483 = vadd.f32 0.0, %v4482
  %v4484 = vpop.f32.mrf.mxu0
  %v4485 = vadd.f32 0.0, %v4484
  %4486 = vmatmul.bf16.gmra.mxu0 %v4320
  %v4487 = vpop.f32.mrf.mxu0
  %v4488 = vadd.f32 0.0, %v4487
  %v4489 = vpop.f32.mrf.mxu0
  %v4490 = vadd.f32 0.0, %v4489
  %4491 = vmatmul.bf16.gmra.mxu0 %v4323
  %v4492 = vpop.f32.mrf.mxu0
  %v4493 = vadd.f32 0.0, %v4492
  %v4494 = vpop.f32.mrf.mxu0
  %v4495 = vadd.f32 0.0, %v4494
  %4496 = vmatmul.bf16.gmra.mxu0 %v4326
  %v4497 = vpop.f32.mrf.mxu0
  %v4498 = vadd.f32 0.0, %v4497
  %v4499 = vpop.f32.mrf.mxu0
  %v4500 = vadd.f32 0.0, %v4499
  %4501 = vmatmul.bf16.gmra.mxu0 %v4329
  %v4502 = vpop.f32.mrf.mxu0
  %v4503 = vadd.f32 0.0, %v4502
  %v4504 = vpop.f32.mrf.mxu0
  %v4505 = vadd.f32 0.0, %v4504
  %4506 = vmatmul.bf16.gmra.mxu0 %v4332
  %v4507 = vpop.f32.mrf.mxu0
  %v4508 = vadd.f32 0.0, %v4507
  %v4509 = vpop.f32.mrf.mxu0
  %v4510 = vadd.f32 0.0, %v4509
  %4511 = vdwg.mxu0
  %v4512 = vpack.c.bf16 %v4433, %v4344
  %v4513 = vpack.c.bf16 %v4435, %v4346
  %v4514 = vpack.c.bf16 %v4438, %v4349
  %v4515 = vpack.c.bf16 %v4440, %v4351
  %v4516 = vpack.c.bf16 %v4443, %v4354
  %v4517 = vpack.c.bf16 %v4445, %v4356
  %v4518 = vpack.c.bf16 %v4448, %v4359
  %v4519 = vpack.c.bf16 %v4450, %v4361
  %v4520 = vpack.c.bf16 %v4453, %v4364
  %v4521 = vpack.c.bf16 %v4455, %v4366
  %v4522 = vpack.c.bf16 %v4458, %v4369
  %v4523 = vpack.c.bf16 %v4460, %v4371
  %v4524 = vpack.c.bf16 %v4463, %v4374
  %v4525 = vpack.c.bf16 %v4465, %v4376
  %v4526 = vpack.c.bf16 %v4468, %v4379
  %v4527 = vpack.c.bf16 %v4470, %v4381
  %v4528 = vpack.c.bf16 %v4473, %v4384
  %v4529 = vpack.c.bf16 %v4475, %v4386
  %v4530 = vpack.c.bf16 %v4478, %v4389
  %v4531 = vpack.c.bf16 %v4480, %v4391
  %v4532 = vpack.c.bf16 %v4483, %v4394
  %v4533 = vpack.c.bf16 %v4485, %v4396
  %v4534 = vpack.c.bf16 %v4488, %v4399
  %v4535 = vpack.c.bf16 %v4490, %v4401
  %v4536 = vpack.c.bf16 %v4493, %v4404
  %v4537 = vpack.c.bf16 %v4495, %v4406
  %v4538 = vpack.c.bf16 %v4498, %v4409
  %v4539 = vpack.c.bf16 %v4500, %v4411
  %v4540 = vpack.c.bf16 %v4503, %v4414
  %v4541 = vpack.c.bf16 %v4505, %v4416
  %v4542 = vpack.c.bf16 %v4508, %v4419
  %v4543 = vpack.c.bf16 %v4510, %v4421
  %v4546 = vunpack.c.l.b16 %v4512
  %v4547 = vunpack.c.l.b16 %v4513
  %v4548 = vpack.c.b16 %v4547, %v4546
  %v4552 = vunpack.c.l.b16 %v4514
  %v4553 = vunpack.c.l.b16 %v4515
  %v4554 = vpack.c.b16 %v4553, %v4552
  %v4558 = vunpack.c.l.b16 %v4516
  %v4559 = vunpack.c.l.b16 %v4517
  %v4560 = vpack.c.b16 %v4559, %v4558
  %v4564 = vunpack.c.l.b16 %v4518
  %v4565 = vunpack.c.l.b16 %v4519
  %v4566 = vpack.c.b16 %v4565, %v4564
  %v4570 = vunpack.c.l.b16 %v4520
  %v4571 = vunpack.c.l.b16 %v4521
  %v4572 = vpack.c.b16 %v4571, %v4570
  %v4576 = vunpack.c.l.b16 %v4522
  %v4577 = vunpack.c.l.b16 %v4523
  %v4578 = vpack.c.b16 %v4577, %v4576
  %v4582 = vunpack.c.l.b16 %v4524
  %v4583 = vunpack.c.l.b16 %v4525
  %v4584 = vpack.c.b16 %v4583, %v4582
  %v4588 = vunpack.c.l.b16 %v4526
  %v4589 = vunpack.c.l.b16 %v4527
  %v4590 = vpack.c.b16 %v4589, %v4588
  %v4594 = vunpack.c.l.b16 %v4528
  %v4595 = vunpack.c.l.b16 %v4529
  %v4596 = vpack.c.b16 %v4595, %v4594
  %v4600 = vunpack.c.l.b16 %v4530
  %v4601 = vunpack.c.l.b16 %v4531
  %v4602 = vpack.c.b16 %v4601, %v4600
  %v4606 = vunpack.c.l.b16 %v4532
  %v4607 = vunpack.c.l.b16 %v4533
  %v4608 = vpack.c.b16 %v4607, %v4606
  %v4612 = vunpack.c.l.b16 %v4534
  %v4613 = vunpack.c.l.b16 %v4535
  %v4614 = vpack.c.b16 %v4613, %v4612
  %v4618 = vunpack.c.l.b16 %v4536
  %v4619 = vunpack.c.l.b16 %v4537
  %v4620 = vpack.c.b16 %v4619, %v4618
  %v4624 = vunpack.c.l.b16 %v4538
  %v4625 = vunpack.c.l.b16 %v4539
  %v4626 = vpack.c.b16 %v4625, %v4624
  %v4630 = vunpack.c.l.b16 %v4540
  %v4631 = vunpack.c.l.b16 %v4541
  %v4632 = vpack.c.b16 %v4631, %v4630
  %v4636 = vunpack.c.l.b16 %v4542
  %v4637 = vunpack.c.l.b16 %v4543
  %v4638 = vpack.c.b16 %v4637, %v4636
  %v4640 = vunpack.c.h.b16 %v4512
  %v4641 = vunpack.c.h.b16 %v4513
  %v4642 = vpack.c.b16 %v4641, %v4640
  %v4644 = vunpack.c.h.b16 %v4514
  %v4645 = vunpack.c.h.b16 %v4515
  %v4646 = vpack.c.b16 %v4645, %v4644
  %v4648 = vunpack.c.h.b16 %v4516
  %v4649 = vunpack.c.h.b16 %v4517
  %v4650 = vpack.c.b16 %v4649, %v4648
  %v4652 = vunpack.c.h.b16 %v4518
  %v4653 = vunpack.c.h.b16 %v4519
  %v4654 = vpack.c.b16 %v4653, %v4652
  %v4656 = vunpack.c.h.b16 %v4520
  %v4657 = vunpack.c.h.b16 %v4521
  %v4658 = vpack.c.b16 %v4657, %v4656
  %v4660 = vunpack.c.h.b16 %v4522
  %v4661 = vunpack.c.h.b16 %v4523
  %v4662 = vpack.c.b16 %v4661, %v4660
  %v4664 = vunpack.c.h.b16 %v4524
  %v4665 = vunpack.c.h.b16 %v4525
  %v4666 = vpack.c.b16 %v4665, %v4664
  %v4668 = vunpack.c.h.b16 %v4526
  %v4669 = vunpack.c.h.b16 %v4527
  %v4670 = vpack.c.b16 %v4669, %v4668
  %v4672 = vunpack.c.h.b16 %v4528
  %v4673 = vunpack.c.h.b16 %v4529
  %v4674 = vpack.c.b16 %v4673, %v4672
  %v4676 = vunpack.c.h.b16 %v4530
  %v4677 = vunpack.c.h.b16 %v4531
  %v4678 = vpack.c.b16 %v4677, %v4676
  %v4680 = vunpack.c.h.b16 %v4532
  %v4681 = vunpack.c.h.b16 %v4533
  %v4682 = vpack.c.b16 %v4681, %v4680
  %v4684 = vunpack.c.h.b16 %v4534
  %v4685 = vunpack.c.h.b16 %v4535
  %v4686 = vpack.c.b16 %v4685, %v4684
  %v4688 = vunpack.c.h.b16 %v4536
  %v4689 = vunpack.c.h.b16 %v4537
  %v4690 = vpack.c.b16 %v4689, %v4688
  %v4692 = vunpack.c.h.b16 %v4538
  %v4693 = vunpack.c.h.b16 %v4539
  %v4694 = vpack.c.b16 %v4693, %v4692
  %v4696 = vunpack.c.h.b16 %v4540
  %v4697 = vunpack.c.h.b16 %v4541
  %v4698 = vpack.c.b16 %v4697, %v4696
  %v4700 = vunpack.c.h.b16 %v4542
  %v4701 = vunpack.c.h.b16 %v4543
  %v4702 = vpack.c.b16 %v4701, %v4700
  %v4704 = vld [vmem:[%s7] sm:$0xff]
  %v4705 = vld [vmem:[%s7 + $0x8] sm:$0xff]
  %v4706 = vld [vmem:[%s7 + $0x10] sm:$0xff]
  %v4707 = vld [vmem:[%s7 + $0x18] sm:$0xff]
  %v4708 = vld [vmem:[%s7 + $0x20] sm:$0xff]
  %v4709 = vld [vmem:[%s7 + $0x28] sm:$0xff]
  %v4710 = vld [vmem:[%s7 + $0x30] sm:$0xff]
  %v4711 = vld [vmem:[%s7 + $0x38] sm:$0xff]
  %v4712 = vld [vmem:[%s7 + $0x40] sm:$0xff]
  %v4713 = vld [vmem:[%s7 + $0x48] sm:$0xff]
  %v4714 = vld [vmem:[%s7 + $0x50] sm:$0xff]
  %v4715 = vld [vmem:[%s7 + $0x58] sm:$0xff]
  %v4716 = vld [vmem:[%s7 + $0x60] sm:$0xff]
  %v4717 = vld [vmem:[%s7 + $0x68] sm:$0xff]
  %v4718 = vld [vmem:[%s7 + $0x70] sm:$0xff]
  %v4719 = vld [vmem:[%s7 + $0x78] sm:$0xff]
  %v4720 = vld [vmem:[%s7 + $0x80] sm:$0xff]
  %v4721 = vld [vmem:[%s7 + $0x88] sm:$0xff]
  %v4722 = vld [vmem:[%s7 + $0x90] sm:$0xff]
  %v4723 = vld [vmem:[%s7 + $0x98] sm:$0xff]
  %v4724 = vld [vmem:[%s7 + $0xa0] sm:$0xff]
  %v4725 = vld [vmem:[%s7 + $0xa8] sm:$0xff]
  %v4726 = vld [vmem:[%s7 + $0xb0] sm:$0xff]
  %v4727 = vld [vmem:[%s7 + $0xb8] sm:$0xff]
  %v4728 = vld [vmem:[%s7 + $0xc0] sm:$0xff]
  %v4729 = vld [vmem:[%s7 + $0xc8] sm:$0xff]
  %v4730 = vld [vmem:[%s7 + $0xd0] sm:$0xff]
  %v4731 = vld [vmem:[%s7 + $0xd8] sm:$0xff]
  %v4732 = vld [vmem:[%s7 + $0xe0] sm:$0xff]
  %v4733 = vld [vmem:[%s7 + $0xe8] sm:$0xff]
  %v4734 = vld [vmem:[%s7 + $0xf0] sm:$0xff]
  %v4735 = vld [vmem:[%s7 + $0xf8] sm:$0xff]
  %v4736 = vld [vmem:[%s7 + $0x100] sm:$0xff]
  %v4737 = vld [vmem:[%s7 + $0x108] sm:$0xff]
  %v4738 = vld [vmem:[%s7 + $0x110] sm:$0xff]
  %v4739 = vld [vmem:[%s7 + $0x118] sm:$0xff]
  %v4740 = vld [vmem:[%s7 + $0x120] sm:$0xff]
  %v4741 = vld [vmem:[%s7 + $0x128] sm:$0xff]
  %v4742 = vld [vmem:[%s7 + $0x130] sm:$0xff]
  %v4743 = vld [vmem:[%s7 + $0x138] sm:$0xff]
  %v4744 = vld [vmem:[%s7 + $0x140] sm:$0xff]
  %v4745 = vld [vmem:[%s7 + $0x148] sm:$0xff]
  %v4746 = vld [vmem:[%s7 + $0x150] sm:$0xff]
  %v4747 = vld [vmem:[%s7 + $0x158] sm:$0xff]
  %v4748 = vld [vmem:[%s7 + $0x160] sm:$0xff]
  %v4749 = vld [vmem:[%s7 + $0x168] sm:$0xff]
  %v4750 = vld [vmem:[%s7 + $0x170] sm:$0xff]
  %v4751 = vld [vmem:[%s7 + $0x178] sm:$0xff]
  %v4752 = vld [vmem:[%s7 + $0x180] sm:$0xff]
  %v4753 = vld [vmem:[%s7 + $0x188] sm:$0xff]
  %v4754 = vld [vmem:[%s7 + $0x190] sm:$0xff]
  %v4755 = vld [vmem:[%s7 + $0x198] sm:$0xff]
  %v4756 = vld [vmem:[%s7 + $0x1a0] sm:$0xff]
  %v4757 = vld [vmem:[%s7 + $0x1a8] sm:$0xff]
  %v4758 = vld [vmem:[%s7 + $0x1b0] sm:$0xff]
  %v4759 = vld [vmem:[%s7 + $0x1b8] sm:$0xff]
  %v4760 = vld [vmem:[%s7 + $0x1c0] sm:$0xff]
  %v4761 = vld [vmem:[%s7 + $0x1c8] sm:$0xff]
  %v4762 = vld [vmem:[%s7 + $0x1d0] sm:$0xff]
  %v4763 = vld [vmem:[%s7 + $0x1d8] sm:$0xff]
  %v4764 = vld [vmem:[%s7 + $0x1e0] sm:$0xff]
  %v4765 = vld [vmem:[%s7 + $0x1e8] sm:$0xff]
  %v4766 = vld [vmem:[%s7 + $0x1f0] sm:$0xff]
  %v4767 = vld [vmem:[%s7 + $0x1f8] sm:$0xff]
  %v4768 = vld [vmem:[%s7 + $0x200] sm:$0xff]
  %v4769 = vld [vmem:[%s7 + $0x208] sm:$0xff]
  %v4770 = vld [vmem:[%s7 + $0x210] sm:$0xff]
  %v4771 = vld [vmem:[%s7 + $0x218] sm:$0xff]
  %v4772 = vld [vmem:[%s7 + $0x220] sm:$0xff]
  %v4773 = vld [vmem:[%s7 + $0x228] sm:$0xff]
  %v4774 = vld [vmem:[%s7 + $0x230] sm:$0xff]
  %v4775 = vld [vmem:[%s7 + $0x238] sm:$0xff]
  %v4776 = vld [vmem:[%s7 + $0x240] sm:$0xff]
  %v4777 = vld [vmem:[%s7 + $0x248] sm:$0xff]
  %v4778 = vld [vmem:[%s7 + $0x250] sm:$0xff]
  %v4779 = vld [vmem:[%s7 + $0x258] sm:$0xff]
  %v4780 = vld [vmem:[%s7 + $0x260] sm:$0xff]
  %v4781 = vld [vmem:[%s7 + $0x268] sm:$0xff]
  %v4782 = vld [vmem:[%s7 + $0x270] sm:$0xff]
  %v4783 = vld [vmem:[%s7 + $0x278] sm:$0xff]
  %v4784 = vld [vmem:[%s7 + $0x280] sm:$0xff]
  %v4785 = vld [vmem:[%s7 + $0x288] sm:$0xff]
  %v4786 = vld [vmem:[%s7 + $0x290] sm:$0xff]
  %v4787 = vld [vmem:[%s7 + $0x298] sm:$0xff]
  %v4788 = vld [vmem:[%s7 + $0x2a0] sm:$0xff]
  %v4789 = vld [vmem:[%s7 + $0x2a8] sm:$0xff]
  %v4790 = vld [vmem:[%s7 + $0x2b0] sm:$0xff]
  %v4791 = vld [vmem:[%s7 + $0x2b8] sm:$0xff]
  %v4792 = vld [vmem:[%s7 + $0x2c0] sm:$0xff]
  %v4793 = vld [vmem:[%s7 + $0x2c8] sm:$0xff]
  %v4794 = vld [vmem:[%s7 + $0x2d0] sm:$0xff]
  %v4795 = vld [vmem:[%s7 + $0x2d8] sm:$0xff]
  %v4796 = vld [vmem:[%s7 + $0x2e0] sm:$0xff]
  %v4797 = vld [vmem:[%s7 + $0x2e8] sm:$0xff]
  %v4798 = vld [vmem:[%s7 + $0x2f0] sm:$0xff]
  %v4799 = vld [vmem:[%s7 + $0x2f8] sm:$0xff]
  %v4800 = vld [vmem:[%s7 + $0x300] sm:$0xff]
  %v4801 = vld [vmem:[%s7 + $0x308] sm:$0xff]
  %v4802 = vld [vmem:[%s7 + $0x310] sm:$0xff]
  %v4803 = vld [vmem:[%s7 + $0x318] sm:$0xff]
  %v4804 = vld [vmem:[%s7 + $0x320] sm:$0xff]
  %v4805 = vld [vmem:[%s7 + $0x328] sm:$0xff]
  %v4806 = vld [vmem:[%s7 + $0x330] sm:$0xff]
  %v4807 = vld [vmem:[%s7 + $0x338] sm:$0xff]
  %v4808 = vld [vmem:[%s7 + $0x340] sm:$0xff]
  %v4809 = vld [vmem:[%s7 + $0x348] sm:$0xff]
  %v4810 = vld [vmem:[%s7 + $0x350] sm:$0xff]
  %v4811 = vld [vmem:[%s7 + $0x358] sm:$0xff]
  %v4812 = vld [vmem:[%s7 + $0x360] sm:$0xff]
  %v4813 = vld [vmem:[%s7 + $0x368] sm:$0xff]
  %v4814 = vld [vmem:[%s7 + $0x370] sm:$0xff]
  %v4815 = vld [vmem:[%s7 + $0x378] sm:$0xff]
  %v4816 = vld [vmem:[%s7 + $0x380] sm:$0xff]
  %v4817 = vld [vmem:[%s7 + $0x388] sm:$0xff]
  %v4818 = vld [vmem:[%s7 + $0x390] sm:$0xff]
  %v4819 = vld [vmem:[%s7 + $0x398] sm:$0xff]
  %v4820 = vld [vmem:[%s7 + $0x3a0] sm:$0xff]
  %v4821 = vld [vmem:[%s7 + $0x3a8] sm:$0xff]
  %v4822 = vld [vmem:[%s7 + $0x3b0] sm:$0xff]
  %v4823 = vld [vmem:[%s7 + $0x3b8] sm:$0xff]
  %v4824 = vld [vmem:[%s7 + $0x3c0] sm:$0xff]
  %v4825 = vld [vmem:[%s7 + $0x3c8] sm:$0xff]
  %v4826 = vld [vmem:[%s7 + $0x3d0] sm:$0xff]
  %v4827 = vld [vmem:[%s7 + $0x3d8] sm:$0xff]
  %v4828 = vld [vmem:[%s7 + $0x3e0] sm:$0xff]
  %v4829 = vld [vmem:[%s7 + $0x3e8] sm:$0xff]
  %v4830 = vld [vmem:[%s7 + $0x3f0] sm:$0xff]
  %v4831 = vld [vmem:[%s7 + $0x3f8] sm:$0xff]
  %v4832 = vld [vmem:[%s7 + $0x400] sm:$0xff]
  %v4833 = vld [vmem:[%s7 + $0x408] sm:$0xff]
  %v4834 = vld [vmem:[%s7 + $0x410] sm:$0xff]
  %v4835 = vld [vmem:[%s7 + $0x418] sm:$0xff]
  %v4836 = vld [vmem:[%s7 + $0x420] sm:$0xff]
  %v4837 = vld [vmem:[%s7 + $0x428] sm:$0xff]
  %v4838 = vld [vmem:[%s7 + $0x430] sm:$0xff]
  %v4839 = vld [vmem:[%s7 + $0x438] sm:$0xff]
  %v4840 = vld [vmem:[%s7 + $0x440] sm:$0xff]
  %v4841 = vld [vmem:[%s7 + $0x448] sm:$0xff]
  %v4842 = vld [vmem:[%s7 + $0x450] sm:$0xff]
  %v4843 = vld [vmem:[%s7 + $0x458] sm:$0xff]
  %v4844 = vld [vmem:[%s7 + $0x460] sm:$0xff]
  %v4845 = vld [vmem:[%s7 + $0x468] sm:$0xff]
  %v4846 = vld [vmem:[%s7 + $0x470] sm:$0xff]
  %v4847 = vld [vmem:[%s7 + $0x478] sm:$0xff]
  %v4848 = vld [vmem:[%s7 + $0x480] sm:$0xff]
  %v4849 = vld [vmem:[%s7 + $0x488] sm:$0xff]
  %v4850 = vld [vmem:[%s7 + $0x490] sm:$0xff]
  %v4851 = vld [vmem:[%s7 + $0x498] sm:$0xff]
  %v4852 = vld [vmem:[%s7 + $0x4a0] sm:$0xff]
  %v4853 = vld [vmem:[%s7 + $0x4a8] sm:$0xff]
  %v4854 = vld [vmem:[%s7 + $0x4b0] sm:$0xff]
  %v4855 = vld [vmem:[%s7 + $0x4b8] sm:$0xff]
  %v4856 = vld [vmem:[%s7 + $0x4c0] sm:$0xff]
  %v4857 = vld [vmem:[%s7 + $0x4c8] sm:$0xff]
  %v4858 = vld [vmem:[%s7 + $0x4d0] sm:$0xff]
  %v4859 = vld [vmem:[%s7 + $0x4d8] sm:$0xff]
  %v4860 = vld [vmem:[%s7 + $0x4e0] sm:$0xff]
  %v4861 = vld [vmem:[%s7 + $0x4e8] sm:$0xff]
  %v4862 = vld [vmem:[%s7 + $0x4f0] sm:$0xff]
  %v4863 = vld [vmem:[%s7 + $0x4f8] sm:$0xff]
  %v4864 = vld [vmem:[%s7 + $0x500] sm:$0xff]
  %v4865 = vld [vmem:[%s7 + $0x508] sm:$0xff]
  %v4866 = vld [vmem:[%s7 + $0x510] sm:$0xff]
  %v4867 = vld [vmem:[%s7 + $0x518] sm:$0xff]
  %v4868 = vld [vmem:[%s7 + $0x520] sm:$0xff]
  %v4869 = vld [vmem:[%s7 + $0x528] sm:$0xff]
  %v4870 = vld [vmem:[%s7 + $0x530] sm:$0xff]
  %v4871 = vld [vmem:[%s7 + $0x538] sm:$0xff]
  %v4872 = vld [vmem:[%s7 + $0x540] sm:$0xff]
  %v4873 = vld [vmem:[%s7 + $0x548] sm:$0xff]
  %v4874 = vld [vmem:[%s7 + $0x550] sm:$0xff]
  %v4875 = vld [vmem:[%s7 + $0x558] sm:$0xff]
  %v4876 = vld [vmem:[%s7 + $0x560] sm:$0xff]
  %v4877 = vld [vmem:[%s7 + $0x568] sm:$0xff]
  %v4878 = vld [vmem:[%s7 + $0x570] sm:$0xff]
  %v4879 = vld [vmem:[%s7 + $0x578] sm:$0xff]
  %v4880 = vld [vmem:[%s7 + $0x580] sm:$0xff]
  %v4881 = vld [vmem:[%s7 + $0x588] sm:$0xff]
  %v4882 = vld [vmem:[%s7 + $0x590] sm:$0xff]
  %v4883 = vld [vmem:[%s7 + $0x598] sm:$0xff]
  %v4884 = vld [vmem:[%s7 + $0x5a0] sm:$0xff]
  %v4885 = vld [vmem:[%s7 + $0x5a8] sm:$0xff]
  %v4886 = vld [vmem:[%s7 + $0x5b0] sm:$0xff]
  %v4887 = vld [vmem:[%s7 + $0x5b8] sm:$0xff]
  %v4888 = vld [vmem:[%s7 + $0x5c0] sm:$0xff]
  %v4889 = vld [vmem:[%s7 + $0x5c8] sm:$0xff]
  %v4890 = vld [vmem:[%s7 + $0x5d0] sm:$0xff]
  %v4891 = vld [vmem:[%s7 + $0x5d8] sm:$0xff]
  %v4892 = vld [vmem:[%s7 + $0x5e0] sm:$0xff]
  %v4893 = vld [vmem:[%s7 + $0x5e8] sm:$0xff]
  %v4894 = vld [vmem:[%s7 + $0x5f0] sm:$0xff]
  %v4895 = vld [vmem:[%s7 + $0x5f8] sm:$0xff]
  %v4896 = vld [vmem:[%s7 + $0x600] sm:$0xff]
  %v4897 = vld [vmem:[%s7 + $0x608] sm:$0xff]
  %v4898 = vld [vmem:[%s7 + $0x610] sm:$0xff]
  %v4899 = vld [vmem:[%s7 + $0x618] sm:$0xff]
  %v4900 = vld [vmem:[%s7 + $0x620] sm:$0xff]
  %v4901 = vld [vmem:[%s7 + $0x628] sm:$0xff]
  %v4902 = vld [vmem:[%s7 + $0x630] sm:$0xff]
  %v4903 = vld [vmem:[%s7 + $0x638] sm:$0xff]
  %v4904 = vld [vmem:[%s7 + $0x640] sm:$0xff]
  %v4905 = vld [vmem:[%s7 + $0x648] sm:$0xff]
  %v4906 = vld [vmem:[%s7 + $0x650] sm:$0xff]
  %v4907 = vld [vmem:[%s7 + $0x658] sm:$0xff]
  %v4908 = vld [vmem:[%s7 + $0x660] sm:$0xff]
  %v4909 = vld [vmem:[%s7 + $0x668] sm:$0xff]
  %v4910 = vld [vmem:[%s7 + $0x670] sm:$0xff]
  %v4911 = vld [vmem:[%s7 + $0x678] sm:$0xff]
  %v4912 = vld [vmem:[%s7 + $0x680] sm:$0xff]
  %v4913 = vld [vmem:[%s7 + $0x688] sm:$0xff]
  %v4914 = vld [vmem:[%s7 + $0x690] sm:$0xff]
  %v4915 = vld [vmem:[%s7 + $0x698] sm:$0xff]
  %v4916 = vld [vmem:[%s7 + $0x6a0] sm:$0xff]
  %v4917 = vld [vmem:[%s7 + $0x6a8] sm:$0xff]
  %v4918 = vld [vmem:[%s7 + $0x6b0] sm:$0xff]
  %v4919 = vld [vmem:[%s7 + $0x6b8] sm:$0xff]
  %v4920 = vld [vmem:[%s7 + $0x6c0] sm:$0xff]
  %v4921 = vld [vmem:[%s7 + $0x6c8] sm:$0xff]
  %v4922 = vld [vmem:[%s7 + $0x6d0] sm:$0xff]
  %v4923 = vld [vmem:[%s7 + $0x6d8] sm:$0xff]
  %v4924 = vld [vmem:[%s7 + $0x6e0] sm:$0xff]
  %v4925 = vld [vmem:[%s7 + $0x6e8] sm:$0xff]
  %v4926 = vld [vmem:[%s7 + $0x6f0] sm:$0xff]
  %v4927 = vld [vmem:[%s7 + $0x6f8] sm:$0xff]
  %v4928 = vld [vmem:[%s7 + $0x700] sm:$0xff]
  %v4929 = vld [vmem:[%s7 + $0x708] sm:$0xff]
  %v4930 = vld [vmem:[%s7 + $0x710] sm:$0xff]
  %v4931 = vld [vmem:[%s7 + $0x718] sm:$0xff]
  %v4932 = vld [vmem:[%s7 + $0x720] sm:$0xff]
  %v4933 = vld [vmem:[%s7 + $0x728] sm:$0xff]
  %v4934 = vld [vmem:[%s7 + $0x730] sm:$0xff]
  %v4935 = vld [vmem:[%s7 + $0x738] sm:$0xff]
  %v4936 = vld [vmem:[%s7 + $0x740] sm:$0xff]
  %v4937 = vld [vmem:[%s7 + $0x748] sm:$0xff]
  %v4938 = vld [vmem:[%s7 + $0x750] sm:$0xff]
  %v4939 = vld [vmem:[%s7 + $0x758] sm:$0xff]
  %v4940 = vld [vmem:[%s7 + $0x760] sm:$0xff]
  %v4941 = vld [vmem:[%s7 + $0x768] sm:$0xff]
  %v4942 = vld [vmem:[%s7 + $0x770] sm:$0xff]
  %v4943 = vld [vmem:[%s7 + $0x778] sm:$0xff]
  %v4944 = vld [vmem:[%s7 + $0x780] sm:$0xff]
  %v4945 = vld [vmem:[%s7 + $0x788] sm:$0xff]
  %v4946 = vld [vmem:[%s7 + $0x790] sm:$0xff]
  %v4947 = vld [vmem:[%s7 + $0x798] sm:$0xff]
  %v4948 = vld [vmem:[%s7 + $0x7a0] sm:$0xff]
  %v4949 = vld [vmem:[%s7 + $0x7a8] sm:$0xff]
  %v4950 = vld [vmem:[%s7 + $0x7b0] sm:$0xff]
  %v4951 = vld [vmem:[%s7 + $0x7b8] sm:$0xff]
  %v4952 = vld [vmem:[%s7 + $0x7c0] sm:$0xff]
  %v4953 = vld [vmem:[%s7 + $0x7c8] sm:$0xff]
  %v4954 = vld [vmem:[%s7 + $0x7d0] sm:$0xff]
  %v4955 = vld [vmem:[%s7 + $0x7d8] sm:$0xff]
  %v4956 = vld [vmem:[%s7 + $0x7e0] sm:$0xff]
  %v4957 = vld [vmem:[%s7 + $0x7e8] sm:$0xff]
  %v4958 = vld [vmem:[%s7 + $0x7f0] sm:$0xff]
  %v4959 = vld [vmem:[%s7 + $0x7f8] sm:$0xff]
  %v5216 = vunpack.c.l.b16 %v4704
  %v5217 = vunpack.c.h.b16 %v4704
  %v5218 = vunpack.c.l.b16 %v4705
  %v5219 = vunpack.c.h.b16 %v4705
  %v5220 = vunpack.c.l.b16 %v4706
  %v5221 = vunpack.c.h.b16 %v4706
  %v5222 = vunpack.c.l.b16 %v4707
  %v5223 = vunpack.c.h.b16 %v4707
  %v5224 = vunpack.c.l.b16 %v4708
  %v5225 = vunpack.c.h.b16 %v4708
  %v5226 = vunpack.c.l.b16 %v4709
  %v5227 = vunpack.c.h.b16 %v4709
  %v5228 = vunpack.c.l.b16 %v4710
  %v5229 = vunpack.c.h.b16 %v4710
  %v5230 = vunpack.c.l.b16 %v4711
  %v5231 = vunpack.c.h.b16 %v4711
  %v5232 = vunpack.c.l.b16 %v4712
  %v5233 = vunpack.c.h.b16 %v4712
  %v5234 = vunpack.c.l.b16 %v4713
  %v5235 = vunpack.c.h.b16 %v4713
  %v5236 = vunpack.c.l.b16 %v4714
  %v5237 = vunpack.c.h.b16 %v4714
  %v5238 = vunpack.c.l.b16 %v4715
  %v5239 = vunpack.c.h.b16 %v4715
  %v5240 = vunpack.c.l.b16 %v4716
  %v5241 = vunpack.c.h.b16 %v4716
  %v5242 = vunpack.c.l.b16 %v4717
  %v5243 = vunpack.c.h.b16 %v4717
  %v5244 = vunpack.c.l.b16 %v4718
  %v5245 = vunpack.c.h.b16 %v4718
  %v5246 = vunpack.c.l.b16 %v4719
  %v5247 = vunpack.c.h.b16 %v4719
  %v5248 = vunpack.c.l.b16 %v4720
  %v5249 = vunpack.c.h.b16 %v4720
  %v5250 = vunpack.c.l.b16 %v4721
  %v5251 = vunpack.c.h.b16 %v4721
  %v5252 = vunpack.c.l.b16 %v4722
  %v5253 = vunpack.c.h.b16 %v4722
  %v5254 = vunpack.c.l.b16 %v4723
  %v5255 = vunpack.c.h.b16 %v4723
  %v5256 = vunpack.c.l.b16 %v4724
  %v5257 = vunpack.c.h.b16 %v4724
  %v5258 = vunpack.c.l.b16 %v4725
  %v5259 = vunpack.c.h.b16 %v4725
  %v5260 = vunpack.c.l.b16 %v4726
  %v5261 = vunpack.c.h.b16 %v4726
  %v5262 = vunpack.c.l.b16 %v4727
  %v5263 = vunpack.c.h.b16 %v4727
  %v5264 = vunpack.c.l.b16 %v4728
  %v5265 = vunpack.c.h.b16 %v4728
  %v5266 = vunpack.c.l.b16 %v4729
  %v5267 = vunpack.c.h.b16 %v4729
  %v5268 = vunpack.c.l.b16 %v4730
  %v5269 = vunpack.c.h.b16 %v4730
  %v5270 = vunpack.c.l.b16 %v4731
  %v5271 = vunpack.c.h.b16 %v4731
  %v5272 = vunpack.c.l.b16 %v4732
  %v5273 = vunpack.c.h.b16 %v4732
  %v5274 = vunpack.c.l.b16 %v4733
  %v5275 = vunpack.c.h.b16 %v4733
  %v5276 = vunpack.c.l.b16 %v4734
  %v5277 = vunpack.c.h.b16 %v4734
  %v5278 = vunpack.c.l.b16 %v4735
  %v5279 = vunpack.c.h.b16 %v4735
  %v5280 = vunpack.c.l.b16 %v4736
  %v5281 = vunpack.c.h.b16 %v4736
  %v5282 = vunpack.c.l.b16 %v4737
  %v5283 = vunpack.c.h.b16 %v4737
  %v5284 = vunpack.c.l.b16 %v4738
  %v5285 = vunpack.c.h.b16 %v4738
  %v5286 = vunpack.c.l.b16 %v4739
  %v5287 = vunpack.c.h.b16 %v4739
  %v5288 = vunpack.c.l.b16 %v4740
  %v5289 = vunpack.c.h.b16 %v4740
  %v5290 = vunpack.c.l.b16 %v4741
  %v5291 = vunpack.c.h.b16 %v4741
  %v5292 = vunpack.c.l.b16 %v4742
  %v5293 = vunpack.c.h.b16 %v4742
  %v5294 = vunpack.c.l.b16 %v4743
  %v5295 = vunpack.c.h.b16 %v4743
  %v5296 = vunpack.c.l.b16 %v4744
  %v5297 = vunpack.c.h.b16 %v4744
  %v5298 = vunpack.c.l.b16 %v4745
  %v5299 = vunpack.c.h.b16 %v4745
  %v5300 = vunpack.c.l.b16 %v4746
  %v5301 = vunpack.c.h.b16 %v4746
  %v5302 = vunpack.c.l.b16 %v4747
  %v5303 = vunpack.c.h.b16 %v4747
  %v5304 = vunpack.c.l.b16 %v4748
  %v5305 = vunpack.c.h.b16 %v4748
  %v5306 = vunpack.c.l.b16 %v4749
  %v5307 = vunpack.c.h.b16 %v4749
  %v5308 = vunpack.c.l.b16 %v4750
  %v5309 = vunpack.c.h.b16 %v4750
  %v5310 = vunpack.c.l.b16 %v4751
  %v5311 = vunpack.c.h.b16 %v4751
  %v5312 = vunpack.c.l.b16 %v4752
  %v5313 = vunpack.c.h.b16 %v4752
  %v5314 = vunpack.c.l.b16 %v4753
  %v5315 = vunpack.c.h.b16 %v4753
  %v5316 = vunpack.c.l.b16 %v4754
  %v5317 = vunpack.c.h.b16 %v4754
  %v5318 = vunpack.c.l.b16 %v4755
  %v5319 = vunpack.c.h.b16 %v4755
  %v5320 = vunpack.c.l.b16 %v4756
  %v5321 = vunpack.c.h.b16 %v4756
  %v5322 = vunpack.c.l.b16 %v4757
  %v5323 = vunpack.c.h.b16 %v4757
  %v5324 = vunpack.c.l.b16 %v4758
  %v5325 = vunpack.c.h.b16 %v4758
  %v5326 = vunpack.c.l.b16 %v4759
  %v5327 = vunpack.c.h.b16 %v4759
  %v5328 = vunpack.c.l.b16 %v4760
  %v5329 = vunpack.c.h.b16 %v4760
  %v5330 = vunpack.c.l.b16 %v4761
  %v5331 = vunpack.c.h.b16 %v4761
  %v5332 = vunpack.c.l.b16 %v4762
  %v5333 = vunpack.c.h.b16 %v4762
  %v5334 = vunpack.c.l.b16 %v4763
  %v5335 = vunpack.c.h.b16 %v4763
  %v5336 = vunpack.c.l.b16 %v4764
  %v5337 = vunpack.c.h.b16 %v4764
  %v5338 = vunpack.c.l.b16 %v4765
  %v5339 = vunpack.c.h.b16 %v4765
  %v5340 = vunpack.c.l.b16 %v4766
  %v5341 = vunpack.c.h.b16 %v4766
  %v5342 = vunpack.c.l.b16 %v4767
  %v5343 = vunpack.c.h.b16 %v4767
  %v5344 = vunpack.c.l.b16 %v4768
  %v5345 = vunpack.c.h.b16 %v4768
  %v5346 = vunpack.c.l.b16 %v4769
  %v5347 = vunpack.c.h.b16 %v4769
  %v5348 = vunpack.c.l.b16 %v4770
  %v5349 = vunpack.c.h.b16 %v4770
  %v5350 = vunpack.c.l.b16 %v4771
  %v5351 = vunpack.c.h.b16 %v4771
  %v5352 = vunpack.c.l.b16 %v4772
  %v5353 = vunpack.c.h.b16 %v4772
  %v5354 = vunpack.c.l.b16 %v4773
  %v5355 = vunpack.c.h.b16 %v4773
  %v5356 = vunpack.c.l.b16 %v4774
  %v5357 = vunpack.c.h.b16 %v4774
  %v5358 = vunpack.c.l.b16 %v4775
  %v5359 = vunpack.c.h.b16 %v4775
  %v5360 = vunpack.c.l.b16 %v4776
  %v5361 = vunpack.c.h.b16 %v4776
  %v5362 = vunpack.c.l.b16 %v4777
  %v5363 = vunpack.c.h.b16 %v4777
  %v5364 = vunpack.c.l.b16 %v4778
  %v5365 = vunpack.c.h.b16 %v4778
  %v5366 = vunpack.c.l.b16 %v4779
  %v5367 = vunpack.c.h.b16 %v4779
  %v5368 = vunpack.c.l.b16 %v4780
  %v5369 = vunpack.c.h.b16 %v4780
  %v5370 = vunpack.c.l.b16 %v4781
  %v5371 = vunpack.c.h.b16 %v4781
  %v5372 = vunpack.c.l.b16 %v4782
  %v5373 = vunpack.c.h.b16 %v4782
  %v5374 = vunpack.c.l.b16 %v4783
  %v5375 = vunpack.c.h.b16 %v4783
  %v5376 = vunpack.c.l.b16 %v4784
  %v5377 = vunpack.c.h.b16 %v4784
  %v5378 = vunpack.c.l.b16 %v4785
  %v5379 = vunpack.c.h.b16 %v4785
  %v5380 = vunpack.c.l.b16 %v4786
  %v5381 = vunpack.c.h.b16 %v4786
  %v5382 = vunpack.c.l.b16 %v4787
  %v5383 = vunpack.c.h.b16 %v4787
  %v5384 = vunpack.c.l.b16 %v4788
  %v5385 = vunpack.c.h.b16 %v4788
  %v5386 = vunpack.c.l.b16 %v4789
  %v5387 = vunpack.c.h.b16 %v4789
  %v5388 = vunpack.c.l.b16 %v4790
  %v5389 = vunpack.c.h.b16 %v4790
  %v5390 = vunpack.c.l.b16 %v4791
  %v5391 = vunpack.c.h.b16 %v4791
  %v5392 = vunpack.c.l.b16 %v4792
  %v5393 = vunpack.c.h.b16 %v4792
  %v5394 = vunpack.c.l.b16 %v4793
  %v5395 = vunpack.c.h.b16 %v4793
  %v5396 = vunpack.c.l.b16 %v4794
  %v5397 = vunpack.c.h.b16 %v4794
  %v5398 = vunpack.c.l.b16 %v4795
  %v5399 = vunpack.c.h.b16 %v4795
  %v5400 = vunpack.c.l.b16 %v4796
  %v5401 = vunpack.c.h.b16 %v4796
  %v5402 = vunpack.c.l.b16 %v4797
  %v5403 = vunpack.c.h.b16 %v4797
  %v5404 = vunpack.c.l.b16 %v4798
  %v5405 = vunpack.c.h.b16 %v4798
  %v5406 = vunpack.c.l.b16 %v4799
  %v5407 = vunpack.c.h.b16 %v4799
  %v5408 = vunpack.c.l.b16 %v4800
  %v5409 = vunpack.c.h.b16 %v4800
  %v5410 = vunpack.c.l.b16 %v4801
  %v5411 = vunpack.c.h.b16 %v4801
  %v5412 = vunpack.c.l.b16 %v4802
  %v5413 = vunpack.c.h.b16 %v4802
  %v5414 = vunpack.c.l.b16 %v4803
  %v5415 = vunpack.c.h.b16 %v4803
  %v5416 = vunpack.c.l.b16 %v4804
  %v5417 = vunpack.c.h.b16 %v4804
  %v5418 = vunpack.c.l.b16 %v4805
  %v5419 = vunpack.c.h.b16 %v4805
  %v5420 = vunpack.c.l.b16 %v4806
  %v5421 = vunpack.c.h.b16 %v4806
  %v5422 = vunpack.c.l.b16 %v4807
  %v5423 = vunpack.c.h.b16 %v4807
  %v5424 = vunpack.c.l.b16 %v4808
  %v5425 = vunpack.c.h.b16 %v4808
  %v5426 = vunpack.c.l.b16 %v4809
  %v5427 = vunpack.c.h.b16 %v4809
  %v5428 = vunpack.c.l.b16 %v4810
  %v5429 = vunpack.c.h.b16 %v4810
  %v5430 = vunpack.c.l.b16 %v4811
  %v5431 = vunpack.c.h.b16 %v4811
  %v5432 = vunpack.c.l.b16 %v4812
  %v5433 = vunpack.c.h.b16 %v4812
  %v5434 = vunpack.c.l.b16 %v4813
  %v5435 = vunpack.c.h.b16 %v4813
  %v5436 = vunpack.c.l.b16 %v4814
  %v5437 = vunpack.c.h.b16 %v4814
  %v5438 = vunpack.c.l.b16 %v4815
  %v5439 = vunpack.c.h.b16 %v4815
  %v5440 = vunpack.c.l.b16 %v4816
  %v5441 = vunpack.c.h.b16 %v4816
  %v5442 = vunpack.c.l.b16 %v4817
  %v5443 = vunpack.c.h.b16 %v4817
  %v5444 = vunpack.c.l.b16 %v4818
  %v5445 = vunpack.c.h.b16 %v4818
  %v5446 = vunpack.c.l.b16 %v4819
  %v5447 = vunpack.c.h.b16 %v4819
  %v5448 = vunpack.c.l.b16 %v4820
  %v5449 = vunpack.c.h.b16 %v4820
  %v5450 = vunpack.c.l.b16 %v4821
  %v5451 = vunpack.c.h.b16 %v4821
  %v5452 = vunpack.c.l.b16 %v4822
  %v5453 = vunpack.c.h.b16 %v4822
  %v5454 = vunpack.c.l.b16 %v4823
  %v5455 = vunpack.c.h.b16 %v4823
  %v5456 = vunpack.c.l.b16 %v4824
  %v5457 = vunpack.c.h.b16 %v4824
  %v5458 = vunpack.c.l.b16 %v4825
  %v5459 = vunpack.c.h.b16 %v4825
  %v5460 = vunpack.c.l.b16 %v4826
  %v5461 = vunpack.c.h.b16 %v4826
  %v5462 = vunpack.c.l.b16 %v4827
  %v5463 = vunpack.c.h.b16 %v4827
  %v5464 = vunpack.c.l.b16 %v4828
  %v5465 = vunpack.c.h.b16 %v4828
  %v5466 = vunpack.c.l.b16 %v4829
  %v5467 = vunpack.c.h.b16 %v4829
  %v5468 = vunpack.c.l.b16 %v4830
  %v5469 = vunpack.c.h.b16 %v4830
  %v5470 = vunpack.c.l.b16 %v4831
  %v5471 = vunpack.c.h.b16 %v4831
  %v5472 = vunpack.c.l.b16 %v4832
  %v5473 = vunpack.c.h.b16 %v4832
  %v5474 = vunpack.c.l.b16 %v4833
  %v5475 = vunpack.c.h.b16 %v4833
  %v5476 = vunpack.c.l.b16 %v4834
  %v5477 = vunpack.c.h.b16 %v4834
  %v5478 = vunpack.c.l.b16 %v4835
  %v5479 = vunpack.c.h.b16 %v4835
  %v5480 = vunpack.c.l.b16 %v4836
  %v5481 = vunpack.c.h.b16 %v4836
  %v5482 = vunpack.c.l.b16 %v4837
  %v5483 = vunpack.c.h.b16 %v4837
  %v5484 = vunpack.c.l.b16 %v4838
  %v5485 = vunpack.c.h.b16 %v4838
  %v5486 = vunpack.c.l.b16 %v4839
  %v5487 = vunpack.c.h.b16 %v4839
  %v5488 = vunpack.c.l.b16 %v4840
  %v5489 = vunpack.c.h.b16 %v4840
  %v5490 = vunpack.c.l.b16 %v4841
  %v5491 = vunpack.c.h.b16 %v4841
  %v5492 = vunpack.c.l.b16 %v4842
  %v5493 = vunpack.c.h.b16 %v4842
  %v5494 = vunpack.c.l.b16 %v4843
  %v5495 = vunpack.c.h.b16 %v4843
  %v5496 = vunpack.c.l.b16 %v4844
  %v5497 = vunpack.c.h.b16 %v4844
  %v5498 = vunpack.c.l.b16 %v4845
  %v5499 = vunpack.c.h.b16 %v4845
  %v5500 = vunpack.c.l.b16 %v4846
  %v5501 = vunpack.c.h.b16 %v4846
  %v5502 = vunpack.c.l.b16 %v4847
  %v5503 = vunpack.c.h.b16 %v4847
  %v5504 = vunpack.c.l.b16 %v4848
  %v5505 = vunpack.c.h.b16 %v4848
  %v5506 = vunpack.c.l.b16 %v4849
  %v5507 = vunpack.c.h.b16 %v4849
  %v5508 = vunpack.c.l.b16 %v4850
  %v5509 = vunpack.c.h.b16 %v4850
  %v5510 = vunpack.c.l.b16 %v4851
  %v5511 = vunpack.c.h.b16 %v4851
  %v5512 = vunpack.c.l.b16 %v4852
  %v5513 = vunpack.c.h.b16 %v4852
  %v5514 = vunpack.c.l.b16 %v4853
  %v5515 = vunpack.c.h.b16 %v4853
  %v5516 = vunpack.c.l.b16 %v4854
  %v5517 = vunpack.c.h.b16 %v4854
  %v5518 = vunpack.c.l.b16 %v4855
  %v5519 = vunpack.c.h.b16 %v4855
  %v5520 = vunpack.c.l.b16 %v4856
  %v5521 = vunpack.c.h.b16 %v4856
  %v5522 = vunpack.c.l.b16 %v4857
  %v5523 = vunpack.c.h.b16 %v4857
  %v5524 = vunpack.c.l.b16 %v4858
  %v5525 = vunpack.c.h.b16 %v4858
  %v5526 = vunpack.c.l.b16 %v4859
  %v5527 = vunpack.c.h.b16 %v4859
  %v5528 = vunpack.c.l.b16 %v4860
  %v5529 = vunpack.c.h.b16 %v4860
  %v5530 = vunpack.c.l.b16 %v4861
  %v5531 = vunpack.c.h.b16 %v4861
  %v5532 = vunpack.c.l.b16 %v4862
  %v5533 = vunpack.c.h.b16 %v4862
  %v5534 = vunpack.c.l.b16 %v4863
  %v5535 = vunpack.c.h.b16 %v4863
  %v5536 = vunpack.c.l.b16 %v4864
  %v5537 = vunpack.c.h.b16 %v4864
  %v5538 = vunpack.c.l.b16 %v4865
  %v5539 = vunpack.c.h.b16 %v4865
  %v5540 = vunpack.c.l.b16 %v4866
  %v5541 = vunpack.c.h.b16 %v4866
  %v5542 = vunpack.c.l.b16 %v4867
  %v5543 = vunpack.c.h.b16 %v4867
  %v5544 = vunpack.c.l.b16 %v4868
  %v5545 = vunpack.c.h.b16 %v4868
  %v5546 = vunpack.c.l.b16 %v4869
  %v5547 = vunpack.c.h.b16 %v4869
  %v5548 = vunpack.c.l.b16 %v4870
  %v5549 = vunpack.c.h.b16 %v4870
  %v5550 = vunpack.c.l.b16 %v4871
  %v5551 = vunpack.c.h.b16 %v4871
  %v5552 = vunpack.c.l.b16 %v4872
  %v5553 = vunpack.c.h.b16 %v4872
  %v5554 = vunpack.c.l.b16 %v4873
  %v5555 = vunpack.c.h.b16 %v4873
  %v5556 = vunpack.c.l.b16 %v4874
  %v5557 = vunpack.c.h.b16 %v4874
  %v5558 = vunpack.c.l.b16 %v4875
  %v5559 = vunpack.c.h.b16 %v4875
  %v5560 = vunpack.c.l.b16 %v4876
  %v5561 = vunpack.c.h.b16 %v4876
  %v5562 = vunpack.c.l.b16 %v4877
  %v5563 = vunpack.c.h.b16 %v4877
  %v5564 = vunpack.c.l.b16 %v4878
  %v5565 = vunpack.c.h.b16 %v4878
  %v5566 = vunpack.c.l.b16 %v4879
  %v5567 = vunpack.c.h.b16 %v4879
  %v5568 = vunpack.c.l.b16 %v4880
  %v5569 = vunpack.c.h.b16 %v4880
  %v5570 = vunpack.c.l.b16 %v4881
  %v5571 = vunpack.c.h.b16 %v4881
  %v5572 = vunpack.c.l.b16 %v4882
  %v5573 = vunpack.c.h.b16 %v4882
  %v5574 = vunpack.c.l.b16 %v4883
  %v5575 = vunpack.c.h.b16 %v4883
  %v5576 = vunpack.c.l.b16 %v4884
  %v5577 = vunpack.c.h.b16 %v4884
  %v5578 = vunpack.c.l.b16 %v4885
  %v5579 = vunpack.c.h.b16 %v4885
  %v5580 = vunpack.c.l.b16 %v4886
  %v5581 = vunpack.c.h.b16 %v4886
  %v5582 = vunpack.c.l.b16 %v4887
  %v5583 = vunpack.c.h.b16 %v4887
  %v5584 = vunpack.c.l.b16 %v4888
  %v5585 = vunpack.c.h.b16 %v4888
  %v5586 = vunpack.c.l.b16 %v4889
  %v5587 = vunpack.c.h.b16 %v4889
  %v5588 = vunpack.c.l.b16 %v4890
  %v5589 = vunpack.c.h.b16 %v4890
  %v5590 = vunpack.c.l.b16 %v4891
  %v5591 = vunpack.c.h.b16 %v4891
  %v5592 = vunpack.c.l.b16 %v4892
  %v5593 = vunpack.c.h.b16 %v4892
  %v5594 = vunpack.c.l.b16 %v4893
  %v5595 = vunpack.c.h.b16 %v4893
  %v5596 = vunpack.c.l.b16 %v4894
  %v5597 = vunpack.c.h.b16 %v4894
  %v5598 = vunpack.c.l.b16 %v4895
  %v5599 = vunpack.c.h.b16 %v4895
  %v5600 = vunpack.c.l.b16 %v4896
  %v5601 = vunpack.c.h.b16 %v4896
  %v5602 = vunpack.c.l.b16 %v4897
  %v5603 = vunpack.c.h.b16 %v4897
  %v5604 = vunpack.c.l.b16 %v4898
  %v5605 = vunpack.c.h.b16 %v4898
  %v5606 = vunpack.c.l.b16 %v4899
  %v5607 = vunpack.c.h.b16 %v4899
  %v5608 = vunpack.c.l.b16 %v4900
  %v5609 = vunpack.c.h.b16 %v4900
  %v5610 = vunpack.c.l.b16 %v4901
  %v5611 = vunpack.c.h.b16 %v4901
  %v5612 = vunpack.c.l.b16 %v4902
  %v5613 = vunpack.c.h.b16 %v4902
  %v5614 = vunpack.c.l.b16 %v4903
  %v5615 = vunpack.c.h.b16 %v4903
  %v5616 = vunpack.c.l.b16 %v4904
  %v5617 = vunpack.c.h.b16 %v4904
  %v5618 = vunpack.c.l.b16 %v4905
  %v5619 = vunpack.c.h.b16 %v4905
  %v5620 = vunpack.c.l.b16 %v4906
  %v5621 = vunpack.c.h.b16 %v4906
  %v5622 = vunpack.c.l.b16 %v4907
  %v5623 = vunpack.c.h.b16 %v4907
  %v5624 = vunpack.c.l.b16 %v4908
  %v5625 = vunpack.c.h.b16 %v4908
  %v5626 = vunpack.c.l.b16 %v4909
  %v5627 = vunpack.c.h.b16 %v4909
  %v5628 = vunpack.c.l.b16 %v4910
  %v5629 = vunpack.c.h.b16 %v4910
  %v5630 = vunpack.c.l.b16 %v4911
  %v5631 = vunpack.c.h.b16 %v4911
  %v5632 = vunpack.c.l.b16 %v4912
  %v5633 = vunpack.c.h.b16 %v4912
  %v5634 = vunpack.c.l.b16 %v4913
  %v5635 = vunpack.c.h.b16 %v4913
  %v5636 = vunpack.c.l.b16 %v4914
  %v5637 = vunpack.c.h.b16 %v4914
  %v5638 = vunpack.c.l.b16 %v4915
  %v5639 = vunpack.c.h.b16 %v4915
  %v5640 = vunpack.c.l.b16 %v4916
  %v5641 = vunpack.c.h.b16 %v4916
  %v5642 = vunpack.c.l.b16 %v4917
  %v5643 = vunpack.c.h.b16 %v4917
  %v5644 = vunpack.c.l.b16 %v4918
  %v5645 = vunpack.c.h.b16 %v4918
  %v5646 = vunpack.c.l.b16 %v4919
  %v5647 = vunpack.c.h.b16 %v4919
  %v5648 = vunpack.c.l.b16 %v4920
  %v5649 = vunpack.c.h.b16 %v4920
  %v5650 = vunpack.c.l.b16 %v4921
  %v5651 = vunpack.c.h.b16 %v4921
  %v5652 = vunpack.c.l.b16 %v4922
  %v5653 = vunpack.c.h.b16 %v4922
  %v5654 = vunpack.c.l.b16 %v4923
  %v5655 = vunpack.c.h.b16 %v4923
  %v5656 = vunpack.c.l.b16 %v4924
  %v5657 = vunpack.c.h.b16 %v4924
  %v5658 = vunpack.c.l.b16 %v4925
  %v5659 = vunpack.c.h.b16 %v4925
  %v5660 = vunpack.c.l.b16 %v4926
  %v5661 = vunpack.c.h.b16 %v4926
  %v5662 = vunpack.c.l.b16 %v4927
  %v5663 = vunpack.c.h.b16 %v4927
  %v5664 = vunpack.c.l.b16 %v4928
  %v5665 = vunpack.c.h.b16 %v4928
  %v5666 = vunpack.c.l.b16 %v4929
  %v5667 = vunpack.c.h.b16 %v4929
  %v5668 = vunpack.c.l.b16 %v4930
  %v5669 = vunpack.c.h.b16 %v4930
  %v5670 = vunpack.c.l.b16 %v4931
  %v5671 = vunpack.c.h.b16 %v4931
  %v5672 = vunpack.c.l.b16 %v4932
  %v5673 = vunpack.c.h.b16 %v4932
  %v5674 = vunpack.c.l.b16 %v4933
  %v5675 = vunpack.c.h.b16 %v4933
  %v5676 = vunpack.c.l.b16 %v4934
  %v5677 = vunpack.c.h.b16 %v4934
  %v5678 = vunpack.c.l.b16 %v4935
  %v5679 = vunpack.c.h.b16 %v4935
  %v5680 = vunpack.c.l.b16 %v4936
  %v5681 = vunpack.c.h.b16 %v4936
  %v5682 = vunpack.c.l.b16 %v4937
  %v5683 = vunpack.c.h.b16 %v4937
  %v5684 = vunpack.c.l.b16 %v4938
  %v5685 = vunpack.c.h.b16 %v4938
  %v5686 = vunpack.c.l.b16 %v4939
  %v5687 = vunpack.c.h.b16 %v4939
  %v5688 = vunpack.c.l.b16 %v4940
  %v5689 = vunpack.c.h.b16 %v4940
  %v5690 = vunpack.c.l.b16 %v4941
  %v5691 = vunpack.c.h.b16 %v4941
  %v5692 = vunpack.c.l.b16 %v4942
  %v5693 = vunpack.c.h.b16 %v4942
  %v5694 = vunpack.c.l.b16 %v4943
  %v5695 = vunpack.c.h.b16 %v4943
  %v5696 = vunpack.c.l.b16 %v4944
  %v5697 = vunpack.c.h.b16 %v4944
  %v5698 = vunpack.c.l.b16 %v4945
  %v5699 = vunpack.c.h.b16 %v4945
  %v5700 = vunpack.c.l.b16 %v4946
  %v5701 = vunpack.c.h.b16 %v4946
  %v5702 = vunpack.c.l.b16 %v4947
  %v5703 = vunpack.c.h.b16 %v4947
  %v5704 = vunpack.c.l.b16 %v4948
  %v5705 = vunpack.c.h.b16 %v4948
  %v5706 = vunpack.c.l.b16 %v4949
  %v5707 = vunpack.c.h.b16 %v4949
  %v5708 = vunpack.c.l.b16 %v4950
  %v5709 = vunpack.c.h.b16 %v4950
  %v5710 = vunpack.c.l.b16 %v4951
  %v5711 = vunpack.c.h.b16 %v4951
  %v5712 = vunpack.c.l.b16 %v4952
  %v5713 = vunpack.c.h.b16 %v4952
  %v5714 = vunpack.c.l.b16 %v4953
  %v5715 = vunpack.c.h.b16 %v4953
  %v5716 = vunpack.c.l.b16 %v4954
  %v5717 = vunpack.c.h.b16 %v4954
  %v5718 = vunpack.c.l.b16 %v4955
  %v5719 = vunpack.c.h.b16 %v4955
  %v5720 = vunpack.c.l.b16 %v4956
  %v5721 = vunpack.c.h.b16 %v4956
  %v5722 = vunpack.c.l.b16 %v4957
  %v5723 = vunpack.c.h.b16 %v4957
  %v5724 = vunpack.c.l.b16 %v4958
  %v5725 = vunpack.c.h.b16 %v4958
  %v5726 = vunpack.c.l.b16 %v4959
  %v5727 = vunpack.c.h.b16 %v4959
  %v5728 = vpack.c.b16 %v5218, %v5216
  %v5729 = vpack.c.b16 %v5219, %v5217
  %v5730 = vpack.c.b16 %v5222, %v5220
  %v5731 = vpack.c.b16 %v5223, %v5221
  %v5732 = vpack.c.b16 %v5226, %v5224
  %v5733 = vpack.c.b16 %v5227, %v5225
  %v5734 = vpack.c.b16 %v5230, %v5228
  %v5735 = vpack.c.b16 %v5231, %v5229
  %v5736 = vpack.c.b16 %v5234, %v5232
  %v5737 = vpack.c.b16 %v5235, %v5233
  %v5738 = vpack.c.b16 %v5238, %v5236
  %v5739 = vpack.c.b16 %v5239, %v5237
  %v5740 = vpack.c.b16 %v5242, %v5240
  %v5741 = vpack.c.b16 %v5243, %v5241
  %v5742 = vpack.c.b16 %v5246, %v5244
  %v5743 = vpack.c.b16 %v5247, %v5245
  %v5744 = vpack.c.b16 %v5250, %v5248
  %v5745 = vpack.c.b16 %v5251, %v5249
  %v5746 = vpack.c.b16 %v5254, %v5252
  %v5747 = vpack.c.b16 %v5255, %v5253
  %v5748 = vpack.c.b16 %v5258, %v5256
  %v5749 = vpack.c.b16 %v5259, %v5257
  %v5750 = vpack.c.b16 %v5262, %v5260
  %v5751 = vpack.c.b16 %v5263, %v5261
  %v5752 = vpack.c.b16 %v5266, %v5264
  %v5753 = vpack.c.b16 %v5267, %v5265
  %v5754 = vpack.c.b16 %v5270, %v5268
  %v5755 = vpack.c.b16 %v5271, %v5269
  %v5756 = vpack.c.b16 %v5274, %v5272
  %v5757 = vpack.c.b16 %v5275, %v5273
  %v5758 = vpack.c.b16 %v5278, %v5276
  %v5759 = vpack.c.b16 %v5279, %v5277
  %v5760 = vpack.c.b16 %v5282, %v5280
  %v5761 = vpack.c.b16 %v5283, %v5281
  %v5762 = vpack.c.b16 %v5286, %v5284
  %v5763 = vpack.c.b16 %v5287, %v5285
  %v5764 = vpack.c.b16 %v5290, %v5288
  %v5765 = vpack.c.b16 %v5291, %v5289
  %v5766 = vpack.c.b16 %v5294, %v5292
  %v5767 = vpack.c.b16 %v5295, %v5293
  %v5768 = vpack.c.b16 %v5298, %v5296
  %v5769 = vpack.c.b16 %v5299, %v5297
  %v5770 = vpack.c.b16 %v5302, %v5300
  %v5771 = vpack.c.b16 %v5303, %v5301
  %v5772 = vpack.c.b16 %v5306, %v5304
  %v5773 = vpack.c.b16 %v5307, %v5305
  %v5774 = vpack.c.b16 %v5310, %v5308
  %v5775 = vpack.c.b16 %v5311, %v5309
  %v5776 = vpack.c.b16 %v5314, %v5312
  %v5777 = vpack.c.b16 %v5315, %v5313
  %v5778 = vpack.c.b16 %v5318, %v5316
  %v5779 = vpack.c.b16 %v5319, %v5317
  %v5780 = vpack.c.b16 %v5322, %v5320
  %v5781 = vpack.c.b16 %v5323, %v5321
  %v5782 = vpack.c.b16 %v5326, %v5324
  %v5783 = vpack.c.b16 %v5327, %v5325
  %v5784 = vpack.c.b16 %v5330, %v5328
  %v5785 = vpack.c.b16 %v5331, %v5329
  %v5786 = vpack.c.b16 %v5334, %v5332
  %v5787 = vpack.c.b16 %v5335, %v5333
  %v5788 = vpack.c.b16 %v5338, %v5336
  %v5789 = vpack.c.b16 %v5339, %v5337
  %v5790 = vpack.c.b16 %v5342, %v5340
  %v5791 = vpack.c.b16 %v5343, %v5341
  %v5792 = vpack.c.b16 %v5346, %v5344
  %v5793 = vpack.c.b16 %v5347, %v5345
  %v5794 = vpack.c.b16 %v5350, %v5348
  %v5795 = vpack.c.b16 %v5351, %v5349
  %v5796 = vpack.c.b16 %v5354, %v5352
  %v5797 = vpack.c.b16 %v5355, %v5353
  %v5798 = vpack.c.b16 %v5358, %v5356
  %v5799 = vpack.c.b16 %v5359, %v5357
  %v5800 = vpack.c.b16 %v5362, %v5360
  %v5801 = vpack.c.b16 %v5363, %v5361
  %v5802 = vpack.c.b16 %v5366, %v5364
  %v5803 = vpack.c.b16 %v5367, %v5365
  %v5804 = vpack.c.b16 %v5370, %v5368
  %v5805 = vpack.c.b16 %v5371, %v5369
  %v5806 = vpack.c.b16 %v5374, %v5372
  %v5807 = vpack.c.b16 %v5375, %v5373
  %v5808 = vpack.c.b16 %v5378, %v5376
  %v5809 = vpack.c.b16 %v5379, %v5377
  %v5810 = vpack.c.b16 %v5382, %v5380
  %v5811 = vpack.c.b16 %v5383, %v5381
  %v5812 = vpack.c.b16 %v5386, %v5384
  %v5813 = vpack.c.b16 %v5387, %v5385
  %v5814 = vpack.c.b16 %v5390, %v5388
  %v5815 = vpack.c.b16 %v5391, %v5389
  %v5816 = vpack.c.b16 %v5394, %v5392
  %v5817 = vpack.c.b16 %v5395, %v5393
  %v5818 = vpack.c.b16 %v5398, %v5396
  %v5819 = vpack.c.b16 %v5399, %v5397
  %v5820 = vpack.c.b16 %v5402, %v5400
  %v5821 = vpack.c.b16 %v5403, %v5401
  %v5822 = vpack.c.b16 %v5406, %v5404
  %v5823 = vpack.c.b16 %v5407, %v5405
  %v5824 = vpack.c.b16 %v5410, %v5408
  %v5825 = vpack.c.b16 %v5411, %v5409
  %v5826 = vpack.c.b16 %v5414, %v5412
  %v5827 = vpack.c.b16 %v5415, %v5413
  %v5828 = vpack.c.b16 %v5418, %v5416
  %v5829 = vpack.c.b16 %v5419, %v5417
  %v5830 = vpack.c.b16 %v5422, %v5420
  %v5831 = vpack.c.b16 %v5423, %v5421
  %v5832 = vpack.c.b16 %v5426, %v5424
  %v5833 = vpack.c.b16 %v5427, %v5425
  %v5834 = vpack.c.b16 %v5430, %v5428
  %v5835 = vpack.c.b16 %v5431, %v5429
  %v5836 = vpack.c.b16 %v5434, %v5432
  %v5837 = vpack.c.b16 %v5435, %v5433
  %v5838 = vpack.c.b16 %v5438, %v5436
  %v5839 = vpack.c.b16 %v5439, %v5437
  %v5840 = vpack.c.b16 %v5442, %v5440
  %v5841 = vpack.c.b16 %v5443, %v5441
  %v5842 = vpack.c.b16 %v5446, %v5444
  %v5843 = vpack.c.b16 %v5447, %v5445
  %v5844 = vpack.c.b16 %v5450, %v5448
  %v5845 = vpack.c.b16 %v5451, %v5449
  %v5846 = vpack.c.b16 %v5454, %v5452
  %v5847 = vpack.c.b16 %v5455, %v5453
  %v5848 = vpack.c.b16 %v5458, %v5456
  %v5849 = vpack.c.b16 %v5459, %v5457
  %v5850 = vpack.c.b16 %v5462, %v5460
  %v5851 = vpack.c.b16 %v5463, %v5461
  %v5852 = vpack.c.b16 %v5466, %v5464
  %v5853 = vpack.c.b16 %v5467, %v5465
  %v5854 = vpack.c.b16 %v5470, %v5468
  %v5855 = vpack.c.b16 %v5471, %v5469
  %v5856 = vpack.c.b16 %v5474, %v5472
  %v5857 = vpack.c.b16 %v5475, %v5473
  %v5858 = vpack.c.b16 %v5478, %v5476
  %v5859 = vpack.c.b16 %v5479, %v5477
  %v5860 = vpack.c.b16 %v5482, %v5480
  %v5861 = vpack.c.b16 %v5483, %v5481
  %v5862 = vpack.c.b16 %v5486, %v5484
  %v5863 = vpack.c.b16 %v5487, %v5485
  %v5864 = vpack.c.b16 %v5490, %v5488
  %v5865 = vpack.c.b16 %v5491, %v5489
  %v5866 = vpack.c.b16 %v5494, %v5492
  %v5867 = vpack.c.b16 %v5495, %v5493
  %v5868 = vpack.c.b16 %v5498, %v5496
  %v5869 = vpack.c.b16 %v5499, %v5497
  %v5870 = vpack.c.b16 %v5502, %v5500
  %v5871 = vpack.c.b16 %v5503, %v5501
  %v5872 = vpack.c.b16 %v5506, %v5504
  %v5873 = vpack.c.b16 %v5507, %v5505
  %v5874 = vpack.c.b16 %v5510, %v5508
  %v5875 = vpack.c.b16 %v5511, %v5509
  %v5876 = vpack.c.b16 %v5514, %v5512
  %v5877 = vpack.c.b16 %v5515, %v5513
  %v5878 = vpack.c.b16 %v5518, %v5516
  %v5879 = vpack.c.b16 %v5519, %v5517
  %v5880 = vpack.c.b16 %v5522, %v5520
  %v5881 = vpack.c.b16 %v5523, %v5521
  %v5882 = vpack.c.b16 %v5526, %v5524
  %v5883 = vpack.c.b16 %v5527, %v5525
  %v5884 = vpack.c.b16 %v5530, %v5528
  %v5885 = vpack.c.b16 %v5531, %v5529
  %v5886 = vpack.c.b16 %v5534, %v5532
  %v5887 = vpack.c.b16 %v5535, %v5533
  %v5888 = vpack.c.b16 %v5538, %v5536
  %v5889 = vpack.c.b16 %v5539, %v5537
  %v5890 = vpack.c.b16 %v5542, %v5540
  %v5891 = vpack.c.b16 %v5543, %v5541
  %v5892 = vpack.c.b16 %v5546, %v5544
  %v5893 = vpack.c.b16 %v5547, %v5545
  %v5894 = vpack.c.b16 %v5550, %v5548
  %v5895 = vpack.c.b16 %v5551, %v5549
  %v5896 = vpack.c.b16 %v5554, %v5552
  %v5897 = vpack.c.b16 %v5555, %v5553
  %v5898 = vpack.c.b16 %v5558, %v5556
  %v5899 = vpack.c.b16 %v5559, %v5557
  %v5900 = vpack.c.b16 %v5562, %v5560
  %v5901 = vpack.c.b16 %v5563, %v5561
  %v5902 = vpack.c.b16 %v5566, %v5564
  %v5903 = vpack.c.b16 %v5567, %v5565
  %v5904 = vpack.c.b16 %v5570, %v5568
  %v5905 = vpack.c.b16 %v5571, %v5569
  %v5906 = vpack.c.b16 %v5574, %v5572
  %v5907 = vpack.c.b16 %v5575, %v5573
  %v5908 = vpack.c.b16 %v5578, %v5576
  %v5909 = vpack.c.b16 %v5579, %v5577
  %v5910 = vpack.c.b16 %v5582, %v5580
  %v5911 = vpack.c.b16 %v5583, %v5581
  %v5912 = vpack.c.b16 %v5586, %v5584
  %v5913 = vpack.c.b16 %v5587, %v5585
  %v5914 = vpack.c.b16 %v5590, %v5588
  %v5915 = vpack.c.b16 %v5591, %v5589
  %v5916 = vpack.c.b16 %v5594, %v5592
  %v5917 = vpack.c.b16 %v5595, %v5593
  %v5918 = vpack.c.b16 %v5598, %v5596
  %v5919 = vpack.c.b16 %v5599, %v5597
  %v5920 = vpack.c.b16 %v5602, %v5600
  %v5921 = vpack.c.b16 %v5603, %v5601
  %v5922 = vpack.c.b16 %v5606, %v5604
  %v5923 = vpack.c.b16 %v5607, %v5605
  %v5924 = vpack.c.b16 %v5610, %v5608
  %v5925 = vpack.c.b16 %v5611, %v5609
  %v5926 = vpack.c.b16 %v5614, %v5612
  %v5927 = vpack.c.b16 %v5615, %v5613
  %v5928 = vpack.c.b16 %v5618, %v5616
  %v5929 = vpack.c.b16 %v5619, %v5617
  %v5930 = vpack.c.b16 %v5622, %v5620
  %v5931 = vpack.c.b16 %v5623, %v5621
  %v5932 = vpack.c.b16 %v5626, %v5624
  %v5933 = vpack.c.b16 %v5627, %v5625
  %v5934 = vpack.c.b16 %v5630, %v5628
  %v5935 = vpack.c.b16 %v5631, %v5629
  %v5936 = vpack.c.b16 %v5634, %v5632
  %v5937 = vpack.c.b16 %v5635, %v5633
  %v5938 = vpack.c.b16 %v5638, %v5636
  %v5939 = vpack.c.b16 %v5639, %v5637
  %v5940 = vpack.c.b16 %v5642, %v5640
  %v5941 = vpack.c.b16 %v5643, %v5641
  %v5942 = vpack.c.b16 %v5646, %v5644
  %v5943 = vpack.c.b16 %v5647, %v5645
  %v5944 = vpack.c.b16 %v5650, %v5648
  %v5945 = vpack.c.b16 %v5651, %v5649
  %v5946 = vpack.c.b16 %v5654, %v5652
  %v5947 = vpack.c.b16 %v5655, %v5653
  %v5948 = vpack.c.b16 %v5658, %v5656
  %v5949 = vpack.c.b16 %v5659, %v5657
  %v5950 = vpack.c.b16 %v5662, %v5660
  %v5951 = vpack.c.b16 %v5663, %v5661
  %v5952 = vpack.c.b16 %v5666, %v5664
  %v5953 = vpack.c.b16 %v5667, %v5665
  %v5954 = vpack.c.b16 %v5670, %v5668
  %v5955 = vpack.c.b16 %v5671, %v5669
  %v5956 = vpack.c.b16 %v5674, %v5672
  %v5957 = vpack.c.b16 %v5675, %v5673
  %v5958 = vpack.c.b16 %v5678, %v5676
  %v5959 = vpack.c.b16 %v5679, %v5677
  %v5960 = vpack.c.b16 %v5682, %v5680
  %v5961 = vpack.c.b16 %v5683, %v5681
  %v5962 = vpack.c.b16 %v5686, %v5684
  %v5963 = vpack.c.b16 %v5687, %v5685
  %v5964 = vpack.c.b16 %v5690, %v5688
  %v5965 = vpack.c.b16 %v5691, %v5689
  %v5966 = vpack.c.b16 %v5694, %v5692
  %v5967 = vpack.c.b16 %v5695, %v5693
  %v5968 = vpack.c.b16 %v5698, %v5696
  %v5969 = vpack.c.b16 %v5699, %v5697
  %v5970 = vpack.c.b16 %v5702, %v5700
  %v5971 = vpack.c.b16 %v5703, %v5701
  %v5972 = vpack.c.b16 %v5706, %v5704
  %v5973 = vpack.c.b16 %v5707, %v5705
  %v5974 = vpack.c.b16 %v5710, %v5708
  %v5975 = vpack.c.b16 %v5711, %v5709
  %v5976 = vpack.c.b16 %v5714, %v5712
  %v5977 = vpack.c.b16 %v5715, %v5713
  %v5978 = vpack.c.b16 %v5718, %v5716
  %v5979 = vpack.c.b16 %v5719, %v5717
  %v5980 = vpack.c.b16 %v5722, %v5720
  %v5981 = vpack.c.b16 %v5723, %v5721
  %v5982 = vpack.c.b16 %v5726, %v5724
  %v5983 = vpack.c.b16 %v5727, %v5725
  %6240 = vmatpush.bf16.msra.mxu0 %v5742
  %6241 = vmatpush.bf16.msra.mxu0 %v5740
  %6242 = vmatpush.bf16.msra.mxu0 %v5738
  %6243 = vmatpush.bf16.msra.mxu0 %v5736
  %6244 = vmatpush.bf16.msra.mxu0 %v5734
  %6245 = vmatpush.bf16.msra.mxu0 %v5732
  %6246 = vmatpush.bf16.msra.mxu0 %v5730
  %6247 = vmatpush.bf16.msra.mxu0 %v5728
  %6248 = vmatmul.bf16.gmra.mxu0 %v4548
  %v6249 = vpop.f32.mrf.mxu0
  %v6250 = vadd.f32 0.0, %v6249
  %v6251 = vpop.f32.mrf.mxu0
  %v6252 = vadd.f32 0.0, %v6251
  %6253 = vmatmul.bf16.gmra.mxu0 %v4642
  %v6254 = vpop.f32.mrf.mxu0
  %v6255 = vadd.f32 0.0, %v6254
  %v6256 = vpop.f32.mrf.mxu0
  %v6257 = vadd.f32 0.0, %v6256
  %6258 = vdwg.mxu0
  %6259 = vmatpush.bf16.msra.mxu0 %v5758
  %6260 = vmatpush.bf16.msra.mxu0 %v5756
  %6261 = vmatpush.bf16.msra.mxu0 %v5754
  %6262 = vmatpush.bf16.msra.mxu0 %v5752
  %6263 = vmatpush.bf16.msra.mxu0 %v5750
  %6264 = vmatpush.bf16.msra.mxu0 %v5748
  %6265 = vmatpush.bf16.msra.mxu0 %v5746
  %6266 = vmatpush.bf16.msra.mxu0 %v5744
  %6267 = vmatmul.bf16.gmra.mxu0 %v4554
  %v6268 = vpop.f32.mrf.mxu0
  %v6269 = vadd.f32 %v6250, %v6268
  %v6270 = vpop.f32.mrf.mxu0
  %v6271 = vadd.f32 %v6252, %v6270
  %6272 = vmatmul.bf16.gmra.mxu0 %v4646
  %v6273 = vpop.f32.mrf.mxu0
  %v6274 = vadd.f32 %v6255, %v6273
  %v6275 = vpop.f32.mrf.mxu0
  %v6276 = vadd.f32 %v6257, %v6275
  %6277 = vdwg.mxu0
  %6278 = vmatpush.bf16.msra.mxu0 %v5774
  %6279 = vmatpush.bf16.msra.mxu0 %v5772
  %6280 = vmatpush.bf16.msra.mxu0 %v5770
  %6281 = vmatpush.bf16.msra.mxu0 %v5768
  %6282 = vmatpush.bf16.msra.mxu0 %v5766
  %6283 = vmatpush.bf16.msra.mxu0 %v5764
  %6284 = vmatpush.bf16.msra.mxu0 %v5762
  %6285 = vmatpush.bf16.msra.mxu0 %v5760
  %6286 = vmatmul.bf16.gmra.mxu0 %v4560
  %v6287 = vpop.f32.mrf.mxu0
  %v6288 = vadd.f32 %v6269, %v6287
  %v6289 = vpop.f32.mrf.mxu0
  %v6290 = vadd.f32 %v6271, %v6289
  %6291 = vmatmul.bf16.gmra.mxu0 %v4650
  %v6292 = vpop.f32.mrf.mxu0
  %v6293 = vadd.f32 %v6274, %v6292
  %v6294 = vpop.f32.mrf.mxu0
  %v6295 = vadd.f32 %v6276, %v6294
  %6296 = vdwg.mxu0
  %6297 = vmatpush.bf16.msra.mxu0 %v5790
  %6298 = vmatpush.bf16.msra.mxu0 %v5788
  %6299 = vmatpush.bf16.msra.mxu0 %v5786
  %6300 = vmatpush.bf16.msra.mxu0 %v5784
  %6301 = vmatpush.bf16.msra.mxu0 %v5782
  %6302 = vmatpush.bf16.msra.mxu0 %v5780
  %6303 = vmatpush.bf16.msra.mxu0 %v5778
  %6304 = vmatpush.bf16.msra.mxu0 %v5776
  %6305 = vmatmul.bf16.gmra.mxu0 %v4566
  %v6306 = vpop.f32.mrf.mxu0
  %v6307 = vadd.f32 %v6288, %v6306
  %v6308 = vpop.f32.mrf.mxu0
  %v6309 = vadd.f32 %v6290, %v6308
  %6310 = vmatmul.bf16.gmra.mxu0 %v4654
  %v6311 = vpop.f32.mrf.mxu0
  %v6312 = vadd.f32 %v6293, %v6311
  %v6313 = vpop.f32.mrf.mxu0
  %v6314 = vadd.f32 %v6295, %v6313
  %6315 = vdwg.mxu0
  %6316 = vmatpush.bf16.msra.mxu0 %v5806
  %6317 = vmatpush.bf16.msra.mxu0 %v5804
  %6318 = vmatpush.bf16.msra.mxu0 %v5802
  %6319 = vmatpush.bf16.msra.mxu0 %v5800
  %6320 = vmatpush.bf16.msra.mxu0 %v5798
  %6321 = vmatpush.bf16.msra.mxu0 %v5796
  %6322 = vmatpush.bf16.msra.mxu0 %v5794
  %6323 = vmatpush.bf16.msra.mxu0 %v5792
  %6324 = vmatmul.bf16.gmra.mxu0 %v4572
  %v6325 = vpop.f32.mrf.mxu0
  %v6326 = vadd.f32 %v6307, %v6325
  %v6327 = vpop.f32.mrf.mxu0
  %v6328 = vadd.f32 %v6309, %v6327
  %6329 = vmatmul.bf16.gmra.mxu0 %v4658
  %v6330 = vpop.f32.mrf.mxu0
  %v6331 = vadd.f32 %v6312, %v6330
  %v6332 = vpop.f32.mrf.mxu0
  %v6333 = vadd.f32 %v6314, %v6332
  %6334 = vdwg.mxu0
  %6335 = vmatpush.bf16.msra.mxu0 %v5822
  %6336 = vmatpush.bf16.msra.mxu0 %v5820
  %6337 = vmatpush.bf16.msra.mxu0 %v5818
  %6338 = vmatpush.bf16.msra.mxu0 %v5816
  %6339 = vmatpush.bf16.msra.mxu0 %v5814
  %6340 = vmatpush.bf16.msra.mxu0 %v5812
  %6341 = vmatpush.bf16.msra.mxu0 %v5810
  %6342 = vmatpush.bf16.msra.mxu0 %v5808
  %6343 = vmatmul.bf16.gmra.mxu0 %v4578
  %v6344 = vpop.f32.mrf.mxu0
  %v6345 = vadd.f32 %v6326, %v6344
  %v6346 = vpop.f32.mrf.mxu0
  %v6347 = vadd.f32 %v6328, %v6346
  %6348 = vmatmul.bf16.gmra.mxu0 %v4662
  %v6349 = vpop.f32.mrf.mxu0
  %v6350 = vadd.f32 %v6331, %v6349
  %v6351 = vpop.f32.mrf.mxu0
  %v6352 = vadd.f32 %v6333, %v6351
  %6353 = vdwg.mxu0
  %6354 = vmatpush.bf16.msra.mxu0 %v5838
  %6355 = vmatpush.bf16.msra.mxu0 %v5836
  %6356 = vmatpush.bf16.msra.mxu0 %v5834
  %6357 = vmatpush.bf16.msra.mxu0 %v5832
  %6358 = vmatpush.bf16.msra.mxu0 %v5830
  %6359 = vmatpush.bf16.msra.mxu0 %v5828
  %6360 = vmatpush.bf16.msra.mxu0 %v5826
  %6361 = vmatpush.bf16.msra.mxu0 %v5824
  %6362 = vmatmul.bf16.gmra.mxu0 %v4584
  %v6363 = vpop.f32.mrf.mxu0
  %v6364 = vadd.f32 %v6345, %v6363
  %v6365 = vpop.f32.mrf.mxu0
  %v6366 = vadd.f32 %v6347, %v6365
  %6367 = vmatmul.bf16.gmra.mxu0 %v4666
  %v6368 = vpop.f32.mrf.mxu0
  %v6369 = vadd.f32 %v6350, %v6368
  %v6370 = vpop.f32.mrf.mxu0
  %v6371 = vadd.f32 %v6352, %v6370
  %6372 = vdwg.mxu0
  %6373 = vmatpush.bf16.msra.mxu0 %v5854
  %6374 = vmatpush.bf16.msra.mxu0 %v5852
  %6375 = vmatpush.bf16.msra.mxu0 %v5850
  %6376 = vmatpush.bf16.msra.mxu0 %v5848
  %6377 = vmatpush.bf16.msra.mxu0 %v5846
  %6378 = vmatpush.bf16.msra.mxu0 %v5844
  %6379 = vmatpush.bf16.msra.mxu0 %v5842
  %6380 = vmatpush.bf16.msra.mxu0 %v5840
  %6381 = vmatmul.bf16.gmra.mxu0 %v4590
  %v6382 = vpop.f32.mrf.mxu0
  %v6383 = vadd.f32 %v6364, %v6382
  %v6384 = vpop.f32.mrf.mxu0
  %v6385 = vadd.f32 %v6366, %v6384
  %6386 = vmatmul.bf16.gmra.mxu0 %v4670
  %v6387 = vpop.f32.mrf.mxu0
  %v6388 = vadd.f32 %v6369, %v6387
  %v6389 = vpop.f32.mrf.mxu0
  %v6390 = vadd.f32 %v6371, %v6389
  %6391 = vdwg.mxu0
  %6392 = vmatpush.bf16.msra.mxu0 %v5870
  %6393 = vmatpush.bf16.msra.mxu0 %v5868
  %6394 = vmatpush.bf16.msra.mxu0 %v5866
  %6395 = vmatpush.bf16.msra.mxu0 %v5864
  %6396 = vmatpush.bf16.msra.mxu0 %v5862
  %6397 = vmatpush.bf16.msra.mxu0 %v5860
  %6398 = vmatpush.bf16.msra.mxu0 %v5858
  %6399 = vmatpush.bf16.msra.mxu0 %v5856
  %6400 = vmatmul.bf16.gmra.mxu0 %v4596
  %v6401 = vpop.f32.mrf.mxu0
  %v6402 = vadd.f32 %v6383, %v6401
  %v6403 = vpop.f32.mrf.mxu0
  %v6404 = vadd.f32 %v6385, %v6403
  %6405 = vmatmul.bf16.gmra.mxu0 %v4674
  %v6406 = vpop.f32.mrf.mxu0
  %v6407 = vadd.f32 %v6388, %v6406
  %v6408 = vpop.f32.mrf.mxu0
  %v6409 = vadd.f32 %v6390, %v6408
  %6410 = vdwg.mxu0
  %6411 = vmatpush.bf16.msra.mxu0 %v5886
  %6412 = vmatpush.bf16.msra.mxu0 %v5884
  %6413 = vmatpush.bf16.msra.mxu0 %v5882
  %6414 = vmatpush.bf16.msra.mxu0 %v5880
  %6415 = vmatpush.bf16.msra.mxu0 %v5878
  %6416 = vmatpush.bf16.msra.mxu0 %v5876
  %6417 = vmatpush.bf16.msra.mxu0 %v5874
  %6418 = vmatpush.bf16.msra.mxu0 %v5872
  %6419 = vmatmul.bf16.gmra.mxu0 %v4602
  %v6420 = vpop.f32.mrf.mxu0
  %v6421 = vadd.f32 %v6402, %v6420
  %v6422 = vpop.f32.mrf.mxu0
  %v6423 = vadd.f32 %v6404, %v6422
  %6424 = vmatmul.bf16.gmra.mxu0 %v4678
  %v6425 = vpop.f32.mrf.mxu0
  %v6426 = vadd.f32 %v6407, %v6425
  %v6427 = vpop.f32.mrf.mxu0
  %v6428 = vadd.f32 %v6409, %v6427
  %6429 = vdwg.mxu0
  %6430 = vmatpush.bf16.msra.mxu0 %v5902
  %6431 = vmatpush.bf16.msra.mxu0 %v5900
  %6432 = vmatpush.bf16.msra.mxu0 %v5898
  %6433 = vmatpush.bf16.msra.mxu0 %v5896
  %6434 = vmatpush.bf16.msra.mxu0 %v5894
  %6435 = vmatpush.bf16.msra.mxu0 %v5892
  %6436 = vmatpush.bf16.msra.mxu0 %v5890
  %6437 = vmatpush.bf16.msra.mxu0 %v5888
  %6438 = vmatmul.bf16.gmra.mxu0 %v4608
  %v6439 = vpop.f32.mrf.mxu0
  %v6440 = vadd.f32 %v6421, %v6439
  %v6441 = vpop.f32.mrf.mxu0
  %v6442 = vadd.f32 %v6423, %v6441
  %6443 = vmatmul.bf16.gmra.mxu0 %v4682
  %v6444 = vpop.f32.mrf.mxu0
  %v6445 = vadd.f32 %v6426, %v6444
  %v6446 = vpop.f32.mrf.mxu0
  %v6447 = vadd.f32 %v6428, %v6446
  %6448 = vdwg.mxu0
  %6449 = vmatpush.bf16.msra.mxu0 %v5918
  %6450 = vmatpush.bf16.msra.mxu0 %v5916
  %6451 = vmatpush.bf16.msra.mxu0 %v5914
  %6452 = vmatpush.bf16.msra.mxu0 %v5912
  %6453 = vmatpush.bf16.msra.mxu0 %v5910
  %6454 = vmatpush.bf16.msra.mxu0 %v5908
  %6455 = vmatpush.bf16.msra.mxu0 %v5906
  %6456 = vmatpush.bf16.msra.mxu0 %v5904
  %6457 = vmatmul.bf16.gmra.mxu0 %v4614
  %v6458 = vpop.f32.mrf.mxu0
  %v6459 = vadd.f32 %v6440, %v6458
  %v6460 = vpop.f32.mrf.mxu0
  %v6461 = vadd.f32 %v6442, %v6460
  %6462 = vmatmul.bf16.gmra.mxu0 %v4686
  %v6463 = vpop.f32.mrf.mxu0
  %v6464 = vadd.f32 %v6445, %v6463
  %v6465 = vpop.f32.mrf.mxu0
  %v6466 = vadd.f32 %v6447, %v6465
  %6467 = vdwg.mxu0
  %6468 = vmatpush.bf16.msra.mxu0 %v5934
  %6469 = vmatpush.bf16.msra.mxu0 %v5932
  %6470 = vmatpush.bf16.msra.mxu0 %v5930
  %6471 = vmatpush.bf16.msra.mxu0 %v5928
  %6472 = vmatpush.bf16.msra.mxu0 %v5926
  %6473 = vmatpush.bf16.msra.mxu0 %v5924
  %6474 = vmatpush.bf16.msra.mxu0 %v5922
  %6475 = vmatpush.bf16.msra.mxu0 %v5920
  %6476 = vmatmul.bf16.gmra.mxu0 %v4620
  %v6477 = vpop.f32.mrf.mxu0
  %v6478 = vadd.f32 %v6459, %v6477
  %v6479 = vpop.f32.mrf.mxu0
  %v6480 = vadd.f32 %v6461, %v6479
  %6481 = vmatmul.bf16.gmra.mxu0 %v4690
  %v6482 = vpop.f32.mrf.mxu0
  %v6483 = vadd.f32 %v6464, %v6482
  %v6484 = vpop.f32.mrf.mxu0
  %v6485 = vadd.f32 %v6466, %v6484
  %6486 = vdwg.mxu0
  %6487 = vmatpush.bf16.msra.mxu0 %v5950
  %6488 = vmatpush.bf16.msra.mxu0 %v5948
  %6489 = vmatpush.bf16.msra.mxu0 %v5946
  %6490 = vmatpush.bf16.msra.mxu0 %v5944
  %6491 = vmatpush.bf16.msra.mxu0 %v5942
  %6492 = vmatpush.bf16.msra.mxu0 %v5940
  %6493 = vmatpush.bf16.msra.mxu0 %v5938
  %6494 = vmatpush.bf16.msra.mxu0 %v5936
  %6495 = vmatmul.bf16.gmra.mxu0 %v4626
  %v6496 = vpop.f32.mrf.mxu0
  %v6497 = vadd.f32 %v6478, %v6496
  %v6498 = vpop.f32.mrf.mxu0
  %v6499 = vadd.f32 %v6480, %v6498
  %6500 = vmatmul.bf16.gmra.mxu0 %v4694
  %v6501 = vpop.f32.mrf.mxu0
  %v6502 = vadd.f32 %v6483, %v6501
  %v6503 = vpop.f32.mrf.mxu0
  %v6504 = vadd.f32 %v6485, %v6503
  %6505 = vdwg.mxu0
  %6506 = vmatpush.bf16.msra.mxu0 %v5966
  %6507 = vmatpush.bf16.msra.mxu0 %v5964
  %6508 = vmatpush.bf16.msra.mxu0 %v5962
  %6509 = vmatpush.bf16.msra.mxu0 %v5960
  %6510 = vmatpush.bf16.msra.mxu0 %v5958
  %6511 = vmatpush.bf16.msra.mxu0 %v5956
  %6512 = vmatpush.bf16.msra.mxu0 %v5954
  %6513 = vmatpush.bf16.msra.mxu0 %v5952
  %6514 = vmatmul.bf16.gmra.mxu0 %v4632
  %v6515 = vpop.f32.mrf.mxu0
  %v6516 = vadd.f32 %v6497, %v6515
  %v6517 = vpop.f32.mrf.mxu0
  %v6518 = vadd.f32 %v6499, %v6517
  %6519 = vmatmul.bf16.gmra.mxu0 %v4698
  %v6520 = vpop.f32.mrf.mxu0
  %v6521 = vadd.f32 %v6502, %v6520
  %v6522 = vpop.f32.mrf.mxu0
  %v6523 = vadd.f32 %v6504, %v6522
  %6524 = vdwg.mxu0
  %6525 = vmatpush.bf16.msra.mxu0 %v5982
  %6526 = vmatpush.bf16.msra.mxu0 %v5980
  %6527 = vmatpush.bf16.msra.mxu0 %v5978
  %6528 = vmatpush.bf16.msra.mxu0 %v5976
  %6529 = vmatpush.bf16.msra.mxu0 %v5974
  %6530 = vmatpush.bf16.msra.mxu0 %v5972
  %6531 = vmatpush.bf16.msra.mxu0 %v5970
  %6532 = vmatpush.bf16.msra.mxu0 %v5968
  %6533 = vmatmul.bf16.gmra.mxu0 %v4638
  %v6534 = vpop.f32.mrf.mxu0
  %v6535 = vadd.f32 %v6516, %v6534
  %v6536 = vpop.f32.mrf.mxu0
  %v6537 = vadd.f32 %v6518, %v6536
  %6538 = vmatmul.bf16.gmra.mxu0 %v4702
  %v6539 = vpop.f32.mrf.mxu0
  %v6540 = vadd.f32 %v6521, %v6539
  %v6541 = vpop.f32.mrf.mxu0
  %v6542 = vadd.f32 %v6523, %v6541
  %6543 = vdwg.mxu0
  %6544 = vmatpush.bf16.msra.mxu0 %v5743
  %6545 = vmatpush.bf16.msra.mxu0 %v5741
  %6546 = vmatpush.bf16.msra.mxu0 %v5739
  %6547 = vmatpush.bf16.msra.mxu0 %v5737
  %6548 = vmatpush.bf16.msra.mxu0 %v5735
  %6549 = vmatpush.bf16.msra.mxu0 %v5733
  %6550 = vmatpush.bf16.msra.mxu0 %v5731
  %6551 = vmatpush.bf16.msra.mxu0 %v5729
  %6552 = vmatmul.bf16.gmra.mxu0 %v4548
  %v6553 = vpop.f32.mrf.mxu0
  %v6554 = vadd.f32 0.0, %v6553
  %v6555 = vpop.f32.mrf.mxu0
  %v6556 = vadd.f32 0.0, %v6555
  %6557 = vmatmul.bf16.gmra.mxu0 %v4642
  %v6558 = vpop.f32.mrf.mxu0
  %v6559 = vadd.f32 0.0, %v6558
  %v6560 = vpop.f32.mrf.mxu0
  %v6561 = vadd.f32 0.0, %v6560
  %6562 = vdwg.mxu0
  %6563 = vmatpush.bf16.msra.mxu0 %v5759
  %6564 = vmatpush.bf16.msra.mxu0 %v5757
  %6565 = vmatpush.bf16.msra.mxu0 %v5755
  %6566 = vmatpush.bf16.msra.mxu0 %v5753
  %6567 = vmatpush.bf16.msra.mxu0 %v5751
  %6568 = vmatpush.bf16.msra.mxu0 %v5749
  %6569 = vmatpush.bf16.msra.mxu0 %v5747
  %6570 = vmatpush.bf16.msra.mxu0 %v5745
  %6571 = vmatmul.bf16.gmra.mxu0 %v4554
  %v6572 = vpop.f32.mrf.mxu0
  %v6573 = vadd.f32 %v6554, %v6572
  %v6574 = vpop.f32.mrf.mxu0
  %v6575 = vadd.f32 %v6556, %v6574
  %6576 = vmatmul.bf16.gmra.mxu0 %v4646
  %v6577 = vpop.f32.mrf.mxu0
  %v6578 = vadd.f32 %v6559, %v6577
  %v6579 = vpop.f32.mrf.mxu0
  %v6580 = vadd.f32 %v6561, %v6579
  %6581 = vdwg.mxu0
  %6582 = vmatpush.bf16.msra.mxu0 %v5775
  %6583 = vmatpush.bf16.msra.mxu0 %v5773
  %6584 = vmatpush.bf16.msra.mxu0 %v5771
  %6585 = vmatpush.bf16.msra.mxu0 %v5769
  %6586 = vmatpush.bf16.msra.mxu0 %v5767
  %6587 = vmatpush.bf16.msra.mxu0 %v5765
  %6588 = vmatpush.bf16.msra.mxu0 %v5763
  %6589 = vmatpush.bf16.msra.mxu0 %v5761
  %6590 = vmatmul.bf16.gmra.mxu0 %v4560
  %v6591 = vpop.f32.mrf.mxu0
  %v6592 = vadd.f32 %v6573, %v6591
  %v6593 = vpop.f32.mrf.mxu0
  %v6594 = vadd.f32 %v6575, %v6593
  %6595 = vmatmul.bf16.gmra.mxu0 %v4650
  %v6596 = vpop.f32.mrf.mxu0
  %v6597 = vadd.f32 %v6578, %v6596
  %v6598 = vpop.f32.mrf.mxu0
  %v6599 = vadd.f32 %v6580, %v6598
  %6600 = vdwg.mxu0
  %6601 = vmatpush.bf16.msra.mxu0 %v5791
  %6602 = vmatpush.bf16.msra.mxu0 %v5789
  %6603 = vmatpush.bf16.msra.mxu0 %v5787
  %6604 = vmatpush.bf16.msra.mxu0 %v5785
  %6605 = vmatpush.bf16.msra.mxu0 %v5783
  %6606 = vmatpush.bf16.msra.mxu0 %v5781
  %6607 = vmatpush.bf16.msra.mxu0 %v5779
  %6608 = vmatpush.bf16.msra.mxu0 %v5777
  %6609 = vmatmul.bf16.gmra.mxu0 %v4566
  %v6610 = vpop.f32.mrf.mxu0
  %v6611 = vadd.f32 %v6592, %v6610
  %v6612 = vpop.f32.mrf.mxu0
  %v6613 = vadd.f32 %v6594, %v6612
  %6614 = vmatmul.bf16.gmra.mxu0 %v4654
  %v6615 = vpop.f32.mrf.mxu0
  %v6616 = vadd.f32 %v6597, %v6615
  %v6617 = vpop.f32.mrf.mxu0
  %v6618 = vadd.f32 %v6599, %v6617
  %6619 = vdwg.mxu0
  %6620 = vmatpush.bf16.msra.mxu0 %v5807
  %6621 = vmatpush.bf16.msra.mxu0 %v5805
  %6622 = vmatpush.bf16.msra.mxu0 %v5803
  %6623 = vmatpush.bf16.msra.mxu0 %v5801
  %6624 = vmatpush.bf16.msra.mxu0 %v5799
  %6625 = vmatpush.bf16.msra.mxu0 %v5797
  %6626 = vmatpush.bf16.msra.mxu0 %v5795
  %6627 = vmatpush.bf16.msra.mxu0 %v5793
  %6628 = vmatmul.bf16.gmra.mxu0 %v4572
  %v6629 = vpop.f32.mrf.mxu0
  %v6630 = vadd.f32 %v6611, %v6629
  %v6631 = vpop.f32.mrf.mxu0
  %v6632 = vadd.f32 %v6613, %v6631
  %6633 = vmatmul.bf16.gmra.mxu0 %v4658
  %v6634 = vpop.f32.mrf.mxu0
  %v6635 = vadd.f32 %v6616, %v6634
  %v6636 = vpop.f32.mrf.mxu0
  %v6637 = vadd.f32 %v6618, %v6636
  %6638 = vdwg.mxu0
  %6639 = vmatpush.bf16.msra.mxu0 %v5823
  %6640 = vmatpush.bf16.msra.mxu0 %v5821
  %6641 = vmatpush.bf16.msra.mxu0 %v5819
  %6642 = vmatpush.bf16.msra.mxu0 %v5817
  %6643 = vmatpush.bf16.msra.mxu0 %v5815
  %6644 = vmatpush.bf16.msra.mxu0 %v5813
  %6645 = vmatpush.bf16.msra.mxu0 %v5811
  %6646 = vmatpush.bf16.msra.mxu0 %v5809
  %6647 = vmatmul.bf16.gmra.mxu0 %v4578
  %v6648 = vpop.f32.mrf.mxu0
  %v6649 = vadd.f32 %v6630, %v6648
  %v6650 = vpop.f32.mrf.mxu0
  %v6651 = vadd.f32 %v6632, %v6650
  %6652 = vmatmul.bf16.gmra.mxu0 %v4662
  %v6653 = vpop.f32.mrf.mxu0
  %v6654 = vadd.f32 %v6635, %v6653
  %v6655 = vpop.f32.mrf.mxu0
  %v6656 = vadd.f32 %v6637, %v6655
  %6657 = vdwg.mxu0
  %6658 = vmatpush.bf16.msra.mxu0 %v5839
  %6659 = vmatpush.bf16.msra.mxu0 %v5837
  %6660 = vmatpush.bf16.msra.mxu0 %v5835
  %6661 = vmatpush.bf16.msra.mxu0 %v5833
  %6662 = vmatpush.bf16.msra.mxu0 %v5831
  %6663 = vmatpush.bf16.msra.mxu0 %v5829
  %6664 = vmatpush.bf16.msra.mxu0 %v5827
  %6665 = vmatpush.bf16.msra.mxu0 %v5825
  %6666 = vmatmul.bf16.gmra.mxu0 %v4584
  %v6667 = vpop.f32.mrf.mxu0
  %v6668 = vadd.f32 %v6649, %v6667
  %v6669 = vpop.f32.mrf.mxu0
  %v6670 = vadd.f32 %v6651, %v6669
  %6671 = vmatmul.bf16.gmra.mxu0 %v4666
  %v6672 = vpop.f32.mrf.mxu0
  %v6673 = vadd.f32 %v6654, %v6672
  %v6674 = vpop.f32.mrf.mxu0
  %v6675 = vadd.f32 %v6656, %v6674
  %6676 = vdwg.mxu0
  %6677 = vmatpush.bf16.msra.mxu0 %v5855
  %6678 = vmatpush.bf16.msra.mxu0 %v5853
  %6679 = vmatpush.bf16.msra.mxu0 %v5851
  %6680 = vmatpush.bf16.msra.mxu0 %v5849
  %6681 = vmatpush.bf16.msra.mxu0 %v5847
  %6682 = vmatpush.bf16.msra.mxu0 %v5845
  %6683 = vmatpush.bf16.msra.mxu0 %v5843
  %6684 = vmatpush.bf16.msra.mxu0 %v5841
  %6685 = vmatmul.bf16.gmra.mxu0 %v4590
  %v6686 = vpop.f32.mrf.mxu0
  %v6687 = vadd.f32 %v6668, %v6686
  %v6688 = vpop.f32.mrf.mxu0
  %v6689 = vadd.f32 %v6670, %v6688
  %6690 = vmatmul.bf16.gmra.mxu0 %v4670
  %v6691 = vpop.f32.mrf.mxu0
  %v6692 = vadd.f32 %v6673, %v6691
  %v6693 = vpop.f32.mrf.mxu0
  %v6694 = vadd.f32 %v6675, %v6693
  %6695 = vdwg.mxu0
  %6696 = vmatpush.bf16.msra.mxu0 %v5871
  %6697 = vmatpush.bf16.msra.mxu0 %v5869
  %6698 = vmatpush.bf16.msra.mxu0 %v5867
  %6699 = vmatpush.bf16.msra.mxu0 %v5865
  %6700 = vmatpush.bf16.msra.mxu0 %v5863
  %6701 = vmatpush.bf16.msra.mxu0 %v5861
  %6702 = vmatpush.bf16.msra.mxu0 %v5859
  %6703 = vmatpush.bf16.msra.mxu0 %v5857
  %6704 = vmatmul.bf16.gmra.mxu0 %v4596
  %v6705 = vpop.f32.mrf.mxu0
  %v6706 = vadd.f32 %v6687, %v6705
  %v6707 = vpop.f32.mrf.mxu0
  %v6708 = vadd.f32 %v6689, %v6707
  %6709 = vmatmul.bf16.gmra.mxu0 %v4674
  %v6710 = vpop.f32.mrf.mxu0
  %v6711 = vadd.f32 %v6692, %v6710
  %v6712 = vpop.f32.mrf.mxu0
  %v6713 = vadd.f32 %v6694, %v6712
  %6714 = vdwg.mxu0
  %6715 = vmatpush.bf16.msra.mxu0 %v5887
  %6716 = vmatpush.bf16.msra.mxu0 %v5885
  %6717 = vmatpush.bf16.msra.mxu0 %v5883
  %6718 = vmatpush.bf16.msra.mxu0 %v5881
  %6719 = vmatpush.bf16.msra.mxu0 %v5879
  %6720 = vmatpush.bf16.msra.mxu0 %v5877
  %6721 = vmatpush.bf16.msra.mxu0 %v5875
  %6722 = vmatpush.bf16.msra.mxu0 %v5873
  %6723 = vmatmul.bf16.gmra.mxu0 %v4602
  %v6724 = vpop.f32.mrf.mxu0
  %v6725 = vadd.f32 %v6706, %v6724
  %v6726 = vpop.f32.mrf.mxu0
  %v6727 = vadd.f32 %v6708, %v6726
  %6728 = vmatmul.bf16.gmra.mxu0 %v4678
  %v6729 = vpop.f32.mrf.mxu0
  %v6730 = vadd.f32 %v6711, %v6729
  %v6731 = vpop.f32.mrf.mxu0
  %v6732 = vadd.f32 %v6713, %v6731
  %6733 = vdwg.mxu0
  %6734 = vmatpush.bf16.msra.mxu0 %v5903
  %6735 = vmatpush.bf16.msra.mxu0 %v5901
  %6736 = vmatpush.bf16.msra.mxu0 %v5899
  %6737 = vmatpush.bf16.msra.mxu0 %v5897
  %6738 = vmatpush.bf16.msra.mxu0 %v5895
  %6739 = vmatpush.bf16.msra.mxu0 %v5893
  %6740 = vmatpush.bf16.msra.mxu0 %v5891
  %6741 = vmatpush.bf16.msra.mxu0 %v5889
  %6742 = vmatmul.bf16.gmra.mxu0 %v4608
  %v6743 = vpop.f32.mrf.mxu0
  %v6744 = vadd.f32 %v6725, %v6743
  %v6745 = vpop.f32.mrf.mxu0
  %v6746 = vadd.f32 %v6727, %v6745
  %6747 = vmatmul.bf16.gmra.mxu0 %v4682
  %v6748 = vpop.f32.mrf.mxu0
  %v6749 = vadd.f32 %v6730, %v6748
  %v6750 = vpop.f32.mrf.mxu0
  %v6751 = vadd.f32 %v6732, %v6750
  %6752 = vdwg.mxu0
  %6753 = vmatpush.bf16.msra.mxu0 %v5919
  %6754 = vmatpush.bf16.msra.mxu0 %v5917
  %6755 = vmatpush.bf16.msra.mxu0 %v5915
  %6756 = vmatpush.bf16.msra.mxu0 %v5913
  %6757 = vmatpush.bf16.msra.mxu0 %v5911
  %6758 = vmatpush.bf16.msra.mxu0 %v5909
  %6759 = vmatpush.bf16.msra.mxu0 %v5907
  %6760 = vmatpush.bf16.msra.mxu0 %v5905
  %6761 = vmatmul.bf16.gmra.mxu0 %v4614
  %v6762 = vpop.f32.mrf.mxu0
  %v6763 = vadd.f32 %v6744, %v6762
  %v6764 = vpop.f32.mrf.mxu0
  %v6765 = vadd.f32 %v6746, %v6764
  %6766 = vmatmul.bf16.gmra.mxu0 %v4686
  %v6767 = vpop.f32.mrf.mxu0
  %v6768 = vadd.f32 %v6749, %v6767
  %v6769 = vpop.f32.mrf.mxu0
  %v6770 = vadd.f32 %v6751, %v6769
  %6771 = vdwg.mxu0
  %6772 = vmatpush.bf16.msra.mxu0 %v5935
  %6773 = vmatpush.bf16.msra.mxu0 %v5933
  %6774 = vmatpush.bf16.msra.mxu0 %v5931
  %6775 = vmatpush.bf16.msra.mxu0 %v5929
  %6776 = vmatpush.bf16.msra.mxu0 %v5927
  %6777 = vmatpush.bf16.msra.mxu0 %v5925
  %6778 = vmatpush.bf16.msra.mxu0 %v5923
  %6779 = vmatpush.bf16.msra.mxu0 %v5921
  %6780 = vmatmul.bf16.gmra.mxu0 %v4620
  %v6781 = vpop.f32.mrf.mxu0
  %v6782 = vadd.f32 %v6763, %v6781
  %v6783 = vpop.f32.mrf.mxu0
  %v6784 = vadd.f32 %v6765, %v6783
  %6785 = vmatmul.bf16.gmra.mxu0 %v4690
  %v6786 = vpop.f32.mrf.mxu0
  %v6787 = vadd.f32 %v6768, %v6786
  %v6788 = vpop.f32.mrf.mxu0
  %v6789 = vadd.f32 %v6770, %v6788
  %6790 = vdwg.mxu0
  %6791 = vmatpush.bf16.msra.mxu0 %v5951
  %6792 = vmatpush.bf16.msra.mxu0 %v5949
  %6793 = vmatpush.bf16.msra.mxu0 %v5947
  %6794 = vmatpush.bf16.msra.mxu0 %v5945
  %6795 = vmatpush.bf16.msra.mxu0 %v5943
  %6796 = vmatpush.bf16.msra.mxu0 %v5941
  %6797 = vmatpush.bf16.msra.mxu0 %v5939
  %6798 = vmatpush.bf16.msra.mxu0 %v5937
  %6799 = vmatmul.bf16.gmra.mxu0 %v4626
  %v6800 = vpop.f32.mrf.mxu0
  %v6801 = vadd.f32 %v6782, %v6800
  %v6802 = vpop.f32.mrf.mxu0
  %v6803 = vadd.f32 %v6784, %v6802
  %6804 = vmatmul.bf16.gmra.mxu0 %v4694
  %v6805 = vpop.f32.mrf.mxu0
  %v6806 = vadd.f32 %v6787, %v6805
  %v6807 = vpop.f32.mrf.mxu0
  %v6808 = vadd.f32 %v6789, %v6807
  %6809 = vdwg.mxu0
  %6810 = vmatpush.bf16.msra.mxu0 %v5967
  %6811 = vmatpush.bf16.msra.mxu0 %v5965
  %6812 = vmatpush.bf16.msra.mxu0 %v5963
  %6813 = vmatpush.bf16.msra.mxu0 %v5961
  %6814 = vmatpush.bf16.msra.mxu0 %v5959
  %6815 = vmatpush.bf16.msra.mxu0 %v5957
  %6816 = vmatpush.bf16.msra.mxu0 %v5955
  %6817 = vmatpush.bf16.msra.mxu0 %v5953
  %6818 = vmatmul.bf16.gmra.mxu0 %v4632
  %v6819 = vpop.f32.mrf.mxu0
  %v6820 = vadd.f32 %v6801, %v6819
  %v6821 = vpop.f32.mrf.mxu0
  %v6822 = vadd.f32 %v6803, %v6821
  %6823 = vmatmul.bf16.gmra.mxu0 %v4698
  %v6824 = vpop.f32.mrf.mxu0
  %v6825 = vadd.f32 %v6806, %v6824
  %v6826 = vpop.f32.mrf.mxu0
  %v6827 = vadd.f32 %v6808, %v6826
  %6828 = vdwg.mxu0
  %6829 = vmatpush.bf16.msra.mxu0 %v5983
  %6830 = vmatpush.bf16.msra.mxu0 %v5981
  %6831 = vmatpush.bf16.msra.mxu0 %v5979
  %6832 = vmatpush.bf16.msra.mxu0 %v5977
  %6833 = vmatpush.bf16.msra.mxu0 %v5975
  %6834 = vmatpush.bf16.msra.mxu0 %v5973
  %6835 = vmatpush.bf16.msra.mxu0 %v5971
  %6836 = vmatpush.bf16.msra.mxu0 %v5969
  %6837 = vmatmul.bf16.gmra.mxu0 %v4638
  %v6838 = vpop.f32.mrf.mxu0
  %v6839 = vadd.f32 %v6820, %v6838
  %v6840 = vpop.f32.mrf.mxu0
  %v6841 = vadd.f32 %v6822, %v6840
  %6842 = vmatmul.bf16.gmra.mxu0 %v4702
  %v6843 = vpop.f32.mrf.mxu0
  %v6844 = vadd.f32 %v6825, %v6843
  %v6845 = vpop.f32.mrf.mxu0
  %v6846 = vadd.f32 %v6827, %v6845
  %6847 = vdwg.mxu0
  %v6848 = vadd.f32 %v6535, %v6537
  %v6849 = vadd.f32 %v6848, %v6540
  %v6850 = vadd.f32 %v6849, %v6542
  %v6851 = vrot.slane %v6850, 4
  %v6852 = vadd.f32 %v6850, %v6851
  %v6853 = vrot.slane %v6852, 2
  %v6854 = vadd.f32 %v6852, %v6853
  %v6855 = vrot.slane %v6854, 1
  %v6856 = vadd.f32 %v6854, %v6855
  %v6857 = vadd.f32 %v6839, %v6841
  %v6858 = vadd.f32 %v6857, %v6844
  %v6859 = vadd.f32 %v6858, %v6846
  %v6860 = vrot.slane %v6859, 4
  %v6861 = vadd.f32 %v6859, %v6860
  %v6862 = vrot.slane %v6861, 2
  %v6863 = vadd.f32 %v6861, %v6862
  %v6864 = vrot.slane %v6863, 1
  %v6865 = vadd.f32 %v6863, %v6864
  %v6866 = vrcp.pop 32.0
  %v6867 = vmul.f32 32.0, %v6866
  %v6868 = vsub.f32 1.0, %v6867
  %v6869 = vmul.f32 %v6866, %v6868
  %v6870 = vadd.f32 %v6866, %v6869
  %vm6871 = vweird.f32 %v6866
  %v6872 = vsel %vm6871, %v6866, %v6870
  %v6873 = vmul.f32 %v6856, %v6872
  %v6874 = vmul.f32 %v6865, %v6872
  %v6875 = vmul.f32 %v6535, %v6535
  %v6876 = vmul.f32 %v6839, %v6839
  %v6877 = vmul.f32 %v6537, %v6537
  %v6878 = vmul.f32 %v6841, %v6841
  %v6879 = vmul.f32 %v6540, %v6540
  %v6880 = vmul.f32 %v6844, %v6844
  %v6881 = vmul.f32 %v6542, %v6542
  %v6882 = vmul.f32 %v6846, %v6846
  %v6883 = vadd.f32 %v6875, %v6877
  %v6884 = vadd.f32 %v6883, %v6879
  %v6885 = vadd.f32 %v6884, %v6881
  %v6886 = vrot.slane %v6885, 4
  %v6887 = vadd.f32 %v6885, %v6886
  %v6888 = vrot.slane %v6887, 2
  %v6889 = vadd.f32 %v6887, %v6888
  %v6890 = vrot.slane %v6889, 1
  %v6891 = vadd.f32 %v6889, %v6890
  %v6892 = vadd.f32 %v6876, %v6878
  %v6893 = vadd.f32 %v6892, %v6880
  %v6894 = vadd.f32 %v6893, %v6882
  %v6895 = vrot.slane %v6894, 4
  %v6896 = vadd.f32 %v6894, %v6895
  %v6897 = vrot.slane %v6896, 2
  %v6898 = vadd.f32 %v6896, %v6897
  %v6899 = vrot.slane %v6898, 1
  %v6900 = vadd.f32 %v6898, %v6899
  %v6901 = vmul.f32 %v6891, %v6872
  %v6902 = vmul.f32 %v6900, %v6872
  %v6903 = vmul.f32 %v6873, %v6873
  %v6904 = vmul.f32 %v6874, %v6874
  %v6905 = vsub.f32 %v6901, %v6903
  %v6906 = vsub.f32 %v6902, %v6904
  %v6907 = vmax.f32 %v6905, 0.0
  %v6908 = vmax.f32 %v6906, 0.0
  %v6909 = vadd.f32 %v6907, 1e-05
  %v6910 = vadd.f32 %v6908, 1e-05
  %v6911 = vrsqrt.pop %v6909
  %v6912 = vmul.f32 %v6911, %v6909
  %v6913 = vmul.f32 %v6912, %v6911
  %v6914 = vmul.f32 0.5, %v6913
  %v6915 = vsub.f32 1.5, %v6914
  %v6916 = vmul.f32 %v6911, %v6915
  %vm6917 = vweird.f32 %v6909
  %vm6918 = vweird.f32 %v6911
  %vm6919 = vmor %vm6917, %vm6918
  %v6920 = vsel %vm6919, %v6911, %v6916
  %v6921 = vrsqrt.pop %v6910
  %v6922 = vmul.f32 %v6921, %v6910
  %v6923 = vmul.f32 %v6922, %v6921
  %v6924 = vmul.f32 0.5, %v6923
  %v6925 = vsub.f32 1.5, %v6924
  %v6926 = vmul.f32 %v6921, %v6925
  %vm6927 = vweird.f32 %v6910
  %vm6928 = vweird.f32 %v6921
  %vm6929 = vmor %vm6927, %vm6928
  %v6930 = vsel %vm6929, %v6921, %v6926
  %v6931 = vld [vmem:[%s8] sm:$0x3]
  %v6933 = vperm.slane %v6931, 0
  %v6934 = vperm.slane %v6931, 1
  %v6937 = vmul.f32 %v6920, %v6933
  %v6938 = vmul.f32 %v6930, %v6934
  %v6939 = vld [vmem:[%s9] sm:$0x3]
  %v6940 = vmul.f32 %v6873, %v6937
  %v6941 = vmul.f32 %v6874, %v6938
  %v6944 = vrot.slane %v6941, 7
  %vm6945 = vcmask 1040384
  %v6946 = vsel %vm6945, %v6940, %v6944
  %v6948 = vsub.f32 %v6939, %v6946
  %v6949 = vperm.slane %v6937, 0
  %v6950 = vperm.slane %v6938, 0
  %v6951 = vmul.f32 %v6535, %v6949
  %v6952 = vmul.f32 %v6839, %v6950
  %v6953 = vmul.f32 %v6537, %v6949
  %v6954 = vmul.f32 %v6841, %v6950
  %v6955 = vmul.f32 %v6540, %v6949
  %v6956 = vmul.f32 %v6844, %v6950
  %v6957 = vmul.f32 %v6542, %v6949
  %v6958 = vmul.f32 %v6846, %v6950
  %v6960 = vperm.slane %v6948, 0
  %v6961 = vperm.slane %v6948, 1
  %v6964 = vadd.f32 %v6951, %v6960
  %v6965 = vadd.f32 %v6952, %v6961
  %v6966 = vadd.f32 %v6953, %v6960
  %v6967 = vadd.f32 %v6954, %v6961
  %v6968 = vadd.f32 %v6955, %v6960
  %v6969 = vadd.f32 %v6956, %v6961
  %v6970 = vadd.f32 %v6957, %v6960
  %v6971 = vadd.f32 %v6958, %v6961
  %v6972 = vmul.f32 %v6964, 0.2
  %v6973 = vmul.f32 %v6965, 0.2
  %v6974 = vmul.f32 %v6966, 0.2
  %v6975 = vmul.f32 %v6967, 0.2
  %v6976 = vmul.f32 %v6968, 0.2
  %v6977 = vmul.f32 %v6969, 0.2
  %v6978 = vmul.f32 %v6970, 0.2
  %v6979 = vmul.f32 %v6971, 0.2
  %v6980 = vmax.f32 %v6964, %v6972
  %v6981 = vmax.f32 %v6965, %v6973
  %v6982 = vmax.f32 %v6966, %v6974
  %v6983 = vmax.f32 %v6967, %v6975
  %v6984 = vmax.f32 %v6968, %v6976
  %v6985 = vmax.f32 %v6969, %v6977
  %v6986 = vmax.f32 %v6970, %v6978
  %v6987 = vmax.f32 %v6971, %v6979
  %v6988 = vld [vmem:[%s10] sm:$0xff]
  %v6989 = vld [vmem:[%s10 + $0x8] sm:$0xff]
  %v6990 = vld [vmem:[%s10 + $0x10] sm:$0xff]
  %v6991 = vld [vmem:[%s10 + $0x18] sm:$0xff]
  %v6992 = vmul.f32 %v6980, %v6988
  %v6993 = vmul.f32 %v6981, %v6989
  %v6994 = vmul.f32 %v6982, %v6990
  %v6995 = vmul.f32 %v6983, %v6991
  %v6996 = vmul.f32 %v6984, %v6988
  %v6997 = vmul.f32 %v6985, %v6989
  %v6998 = vmul.f32 %v6986, %v6990
  %v6999 = vmul.f32 %v6987, %v6991
  %v7000 = vadd.f32 %v6992, %v6994
  %v7001 = vrot.slane %v7000, 4
  %v7002 = vadd.f32 %v7000, %v7001
  %v7003 = vrot.slane %v7002, 2
  %v7004 = vadd.f32 %v7002, %v7003
  %v7005 = vrot.slane %v7004, 1
  %v7006 = vadd.f32 %v7004, %v7005
  %v7007 = vadd.f32 %v6993, %v6995
  %v7008 = vrot.slane %v7007, 4
  %v7009 = vadd.f32 %v7007, %v7008
  %v7010 = vrot.slane %v7009, 2
  %v7011 = vadd.f32 %v7009, %v7010
  %v7012 = vrot.slane %v7011, 1
  %v7013 = vadd.f32 %v7011, %v7012
  %v7014 = vadd.f32 %v6996, %v6998
  %v7015 = vrot.slane %v7014, 4
  %v7016 = vadd.f32 %v7014, %v7015
  %v7017 = vrot.slane %v7016, 2
  %v7018 = vadd.f32 %v7016, %v7017
  %v7019 = vrot.slane %v7018, 1
  %v7020 = vadd.f32 %v7018, %v7019
  %v7021 = vadd.f32 %v6997, %v6999
  %v7022 = vrot.slane %v7021, 4
  %v7023 = vadd.f32 %v7021, %v7022
  %v7024 = vrot.slane %v7023, 2
  %v7025 = vadd.f32 %v7023, %v7024
  %v7026 = vrot.slane %v7025, 1
  %v7027 = vadd.f32 %v7025, %v7026
  %vm7032 = vcmask 1041409
  %v7033 = vsel %vm7032, %v7020, %v7006
  %v7034 = vsel %vm7032, %v7027, %v7013
  %vm7037 = vcmask 1041408
  %v7038 = vsel %vm7037, %v7033, 0.0
  %v7039 = vsel %vm7037, %v7034, 0.0
  %v7040 = vadd.f32 %v7038, %v7039
  %7041 = vadd.xlane.f32.xlu0 %v7040
  %v7042 = vpop.xlane.xlu0 %7041
  %v7043 = vsub.f32 0.0, %v7042
  %v7044 = vmul.f32 %v7043, 1.442695
  %v7045 = vpow.pop %v7044
  %v7046 = vadd.f32 %v7045, 1.0
  %v7047 = vrcp.pop %v7046
  %v7048 = vmul.f32 %v7046, %v7047
  %v7049 = vsub.f32 1.0, %v7048
  %v7050 = vmul.f32 %v7047, %v7049
  %v7051 = vadd.f32 %v7047, %v7050
  %vm7052 = vweird.f32 %v7046
  %vm7053 = vweird.f32 %v7047
  %vm7054 = vmor %vm7052, %vm7053
  %v7055 = vsel %vm7054, %v7047, %v7051
  %v7056 = vand.u32 2147483647, %v7046
  %vm7057 = vcmp.eq.f32.partialorder %v7056, 8.507059e+37
  %v7058 = vand.u32 %v7046, 2147483648
  %v7059 = vor.u32 1.1754944e-38, %v7058
  %v7060 = vsel %vm7057, %v7059, %v7055
  %v7061 = vmul.f32 1.0, %v7060
  %vm7062 = vcmask 1024
  %7063 = vst.msk [vmem:[%s11] sm:$0x3] %vm7062, %v7061
  // Predicated region
  $region46: #{discriminator_forward.1} parent=0 // pred_check
    _
  $region47: #{discriminator_forward.1} parent=0 // pred_check_branch
    %7065 = sbr.rel (0) target = $region49
  $region48: #{discriminator_forward.1} parent=0 // pred_region
    _
  $region49: #{discriminator_forward.1} parent=0 // pred_fallthru
    _
  // Predicated region
  $region50: #{discriminator_forward.1} parent=0 // pred_check
    _
  $region51: #{discriminator_forward.1} parent=0 // pred_check_branch
    %7067 = sbr.rel (0) target = $region53
  $region52: #{discriminator_forward.1} parent=0 // pred_region
    _
  $region53: #{discriminator_forward.1} parent=0 // pred_fallthru
    _

</llo_original>
